<compile_context>
chip_gen: v6e
topology: v6e:2x2x1
jax: 0.10.0
libtpu: 0.0.40
codegen_flags: <defaults>
</compile_context>

<pallas_src>
import numpy as np
import jax
import jax.numpy as jnp
from jax import lax
from jax.experimental import pallas as pl
from jax.experimental.pallas import tpu as pltpu


# --------------------- one-time parameter repacking (numpy) ----------------- #

def prepare_params(params, batch):
    """Repack PyTorch-layout weights into GEMM operands for the fused kernel.
    Called once, outside jit, so no per-forward transpose/reshape ops remain."""
    w1 = np.asarray(params["conv1"], np.float32)   # (C1, 1, 5, 5)
    w2 = np.asarray(params["conv2"], np.float32)   # (C2, C1, 5, 5)
    fc1 = np.asarray(params["fc1"], np.float32)    # (NH, C2*7*7)
    fc2 = np.asarray(params["fc2"], np.float32)    # (NC, NH)

    C1, Cin, KH, KW = w1.shape
    C2 = w2.shape[0]
    assert Cin == 1
    N = batch

    H = 28                      # input spatial size implied by fc1.in_features
    Hp = H + 2                  # 30  row-padded input height
    H1o = H + 2 - KH + 1        # 26  conv1 output
    P1 = H1o // 2 + 1           # 14  pool1 output
    F2 = P1 + 2                 # 16  pool1 output + conv2 zero-pad frame
    H2o = F2 - KH + 1           # 12  conv2 output
    P2 = H2o // 2 + 1           # 7   pool2 output
    NH = fc1.shape[0]
    assert fc1.shape[1] == C2 * P2 * P2

    M1f = N * Hp - KH + 1       # 56  rows of the batched conv1 output
    M2f = N * F2 - KH + 1       # 28  rows of the batched conv2 output

    # conv1 banded matrices, one per kernel row. The input is only row-padded
    # in the kernel; the column zero-padding is folded into B1.
    B1 = np.zeros((KH, H, C1 * H1o), np.float32)
    for kh in range(KH):
        for o in range(C1):
            for j in range(H1o):
                for kw in range(KW):
                    c = j + kw - 1                 # original column index
                    if 0 <= c < H:
                        B1[kh, c, o * H1o + j] = w1[o, 0, kh, kw]

    # pool1 row selection, block-diagonal over the batch. Conv1 output row i of
    # batch n sits at row n*Hp + i of the batched conv1 output (rows at the
    # batch seam are garbage and never referenced). The output is an F2 x F2
    # zero-bordered frame per (batch, channel) = conv2's padding, baked in.
    RA1 = np.zeros((N * F2, M1f), np.float32)
    RB1 = np.zeros((N * F2, M1f), np.float32)
    for n in range(N):
        for pi in range(P1):
            if 2 * pi - 1 >= 0:
                RA1[n * F2 + pi + 1, n * Hp + 2 * pi - 1] = 1.0
            if 2 * pi <= H1o - 1:
                RB1[n * F2 + pi + 1, n * Hp + 2 * pi] = 1.0

    # pool1 column selection (batch independent).
    SA1 = np.zeros((C1 * H1o, C1 * F2), np.float32)
    SB1 = np.zeros((C1 * H1o, C1 * F2), np.float32)
    for o in range(C1):
        for pj in range(P1):
            if 2 * pj - 1 >= 0:
                SA1[o * H1o + 2 * pj - 1, o * F2 + pj + 1] = 1.0
            if 2 * pj <= H1o - 1:
                SB1[o * H1o + 2 * pj, o * F2 + pj + 1] = 1.0

    # conv2 banded matrices over the channel-packed, padded pool1 frame.
    B2 = np.zeros((KH, C1 * F2, C2 * H2o), np.float32)
    for kh in range(KH):
        for o in range(C2):
            for ci in range(C1):
                for j in range(H2o):
                    for kw in range(KW):
                        B2[kh, ci * F2 + j + kw, o * H2o + j] = w2[o, ci, kh, kw]

    # pool2 row selection, block-diagonal over the batch. Conv2 output row i of
    # batch n sits at row n*F2 + i of the batched conv2 output.
    RA2 = np.zeros((N * P2, M2f), np.float32)
    RB2 = np.zeros((N * P2, M2f), np.float32)
    for n in range(N):
        for pi in range(P2):
            if 2 * pi - 1 >= 0:
                RA2[n * P2 + pi, n * F2 + 2 * pi - 1] = 1.0
            if 2 * pi <= H2o - 1:
                RB2[n * P2 + pi, n * F2 + 2 * pi] = 1.0

    # pool2 column selection (batch independent).
    SA2 = np.zeros((C2 * H2o, C2 * P2), np.float32)
    SB2 = np.zeros((C2 * H2o, C2 * P2), np.float32)
    for o in range(C2):
        for pj in range(P2):
            if 2 * pj - 1 >= 0:
                SA2[o * H2o + 2 * pj - 1, o * P2 + pj] = 1.0
            if 2 * pj <= H2o - 1:
                SB2[o * H2o + 2 * pj, o * P2 + pj] = 1.0

    # fc1 weight permuted so the packed pool2 layout p2[h, o*P2 + w] contracts
    # against PyTorch's NCHW flatten order (o*49 + h*7 + w); fc2 transposed.
    W1p = fc1.reshape(NH, C2, P2, P2).transpose(2, 1, 3, 0).reshape(
        P2, C2 * P2, NH)
    W2p = np.ascontiguousarray(fc2.T)

    arrays = dict(B1=B1, RA1=RA1, RB1=RB1, SA1=SA1, SB1=SB1,
                  B2=B2, RA2=RA2, RB2=RB2, SA2=SA2, SB2=SB2,
                  W1p=W1p, W2p=W2p)
    return {k: jnp.asarray(v, jnp.float32) for k, v in arrays.items()}


# ------------------------------- fused forward ------------------------------ #

def cnn_forward(x, prep):
    """Whole CNN forward as a single Pallas TPU kernel (batch folded into rows)."""
    N, Cin, H, W = x.shape
    assert Cin == 1 and W == H
    KH = prep["B1"].shape[0]
    NF2, M1f = prep["RA1"].shape
    F2 = NF2 // N
    NP2, M2f = prep["RA2"].shape
    P2 = NP2 // N
    NH = prep["W1p"].shape[2]
    NC = prep["W2p"].shape[1]
    Hp = H + 2
    assert M1f == N * Hp - KH + 1
    assert M2f == N * F2 - KH + 1
    f32 = jnp.float32

    def kernel(x_ref, b1_ref, ra1_ref, rb1_ref, sa1_ref, sb1_ref,
               b2_ref, ra2_ref, rb2_ref, sa2_ref, sb2_ref,
               w1p_ref, w2p_ref, out_ref, xp_ref):
        # Stacked zero row-padded input: batch n occupies rows [n*Hp, n*Hp+Hp).
        # Column zero-padding is folded into the B1 banded matrices.
        xp_ref[...] = jnp.zeros((N * Hp, H), f32)
        for n in range(N):
            xp_ref[n * Hp + 1:n * Hp + 1 + H, :] = x_ref[n, 0, :, :]

        def mm(a, b):
            return jnp.dot(a, b, preferred_element_type=f32)

        # conv1 + ReLU, all batch elements in one GEMM per kernel row.
        # Rows at the batch seam of acc1 are garbage but are never selected by
        # the (block-diagonal) pool1 row-selection matrices.
        acc1 = mm(xp_ref[0:M1f, :], b1_ref[0])
        for kh in range(1, KH):
            acc1 = acc1 + mm(xp_ref[kh:kh + M1f, :], b1_ref[kh])
        a1 = jnp.maximum(acc1, 0.0)                       # (M1f, C1*H1o)

        # maxpool1 (2x2, stride 2, pad 1), conv2 zero-pad frame baked in.
        # zero == -inf here only because a1 >= 0 (post-ReLU).
        rp1 = jnp.maximum(mm(ra1_ref[...], a1), mm(rb1_ref[...], a1))
        p1 = jnp.maximum(mm(rp1, sa1_ref[...]), mm(rp1, sb1_ref[...]))
        # p1: (N*F2, C1*F2), batch n in rows [n*F2, n*F2+F2).

        # conv2 + ReLU, batched the same way.
        acc2 = mm(p1[0:M2f, :], b2_ref[0])
        for kh in range(1, KH):
            acc2 = acc2 + mm(p1[kh:kh + M2f, :], b2_ref[kh])
        a2 = jnp.maximum(acc2, 0.0)                       # (M2f, C2*H2o)

        # maxpool2 (2x2, stride 2, pad 1), batched.
        rp2 = jnp.maximum(mm(ra2_ref[...], a2), mm(rb2_ref[...], a2))
        p2 = jnp.maximum(mm(rp2, sa2_ref[...]), mm(rp2, sb2_ref[...]))
        # p2: (N*P2, C2*P2), batch n in rows [n*P2, n*P2+P2).

        # flatten + fc1 + ReLU + fc2. The flatten is folded into the h-sum;
        # fc1's weight was permuted once in prepare_params to match it.
        w1ps = [w1p_ref[h] for h in range(P2)]
        w2p = w2p_ref[...]
        for n in range(N):
            p2n = p2[n * P2:(n + 1) * P2, :]
            h1 = mm(p2n[0:1, :], w1ps[0])
            for h in range(1, P2):
                h1 = h1 + mm(p2n[h:h + 1, :], w1ps[h])
            h1 = jnp.maximum(h1, 0.0)
            out_ref[n:n + 1, :] = mm(h1, w2p)

    return pl.pallas_call(
        kernel,
        out_shape=jax.ShapeDtypeStruct((N, NC), f32),
        scratch_shapes=[pltpu.VMEM((N * Hp, H), f32)],
    )(x, prep["B1"], prep["RA1"], prep["RB1"], prep["SA1"], prep["SB1"],
      prep["B2"], prep["RA2"], prep["RB2"], prep["SA2"], prep["SB2"],
      prep["W1p"], prep["W2p"])


# ------------------------------ pure-JAX reference -------------------------- #

def cnn_forward_ref(x, params):
    dn = ("NCHW", "OIHW", "NCHW")
    y = lax.conv_general_dilated(x, params["conv1"], (1, 1), ((1, 1), (1, 1)),
                                 dimension_numbers=dn)
    y = jnp.maximum(y, 0.0)
    y = lax.reduce_window(y, -jnp.inf, lax.max, (1, 1, 2, 2), (1, 1, 2, 2),
                          ((0, 0), (0, 0), (1, 1), (1, 1)))
    y = lax.conv_general_dilated(y, params["conv2"], (1, 1), ((1, 1), (1, 1)),
                                 dimension_numbers=dn)
    y = jnp.maximum(y, 0.0)
    y = lax.reduce_window(y, -jnp.inf, lax.max, (1, 1, 2, 2), (1, 1, 2, 2),
                          ((0, 0), (0, 0), (1, 1), (1, 1)))
    y = y.reshape(y.shape[0], -1)
    y = jnp.maximum(y @ params["fc1"].T, 0.0)
    return y @ params["fc2"].T


# ----------------------------------- main ----------------------------------- #

if __name__ == "__main__":
    batch = 2
    in_channels = 1
    hidden_channels = 4
    num_hiddens = 32
    num_classes = 10
    H = W = 28  # required so the flattened size == hidden_channels*2*7*7

    key = jax.random.PRNGKey(0)
    kx, k1, k2, k3, k4 = jax.random.split(key, 5)

    x = jax.random.normal(kx, (batch, in_channels, H, W), jnp.float32)

    params = {
        "conv1": 0.10 * jax.random.normal(
            k1, (hidden_channels, in_channels, 5, 5), jnp.float32),
        "conv2": 0.05 * jax.random.normal(
            k2, (hidden_channels * 2, hidden_channels, 5, 5), jnp.float32),
        "fc1": 0.05 * jax.random.normal(
            k3, (num_hiddens, hidden_channels * 2 * 7 * 7), jnp.float32),
        "fc2": 0.10 * jax.random.normal(
            k4, (num_classes, num_hiddens), jnp.float32),
    }

    prep = prepare_params(params, batch)    # one-time weight repacking (no jit)

    fwd = jax.jit(cnn_forward)
    out = jax.block_until_ready(fwd(x, prep))

    ref = jax.block_until_ready(cnn_forward_ref(x, params))

    assert out.shape == (batch, num_classes), out.shape
    assert jnp.allclose(out, ref, rtol=1e-2, atol=1e-2), (
        float(jnp.max(jnp.abs(out - ref))))

    print("KERNEL_OK")
</pallas_src>

<mosaic_0001>
module attributes {stable_mosaic.version = 11 : i64} {
  func.func @kernel(%arg0: memref<2x1x28x28xf32, #tpu.memory_space<vmem>>, %arg1: memref<5x28x104xf32, #tpu.memory_space<vmem>>, %arg2: memref<32x56xf32, #tpu.memory_space<vmem>>, %arg3: memref<32x56xf32, #tpu.memory_space<vmem>>, %arg4: memref<104x64xf32, #tpu.memory_space<vmem>>, %arg5: memref<104x64xf32, #tpu.memory_space<vmem>>, %arg6: memref<5x64x96xf32, #tpu.memory_space<vmem>>, %arg7: memref<14x28xf32, #tpu.memory_space<vmem>>, %arg8: memref<14x28xf32, #tpu.memory_space<vmem>>, %arg9: memref<96x56xf32, #tpu.memory_space<vmem>>, %arg10: memref<96x56xf32, #tpu.memory_space<vmem>>, %arg11: memref<7x56x32xf32, #tpu.memory_space<vmem>>, %arg12: memref<32x10xf32, #tpu.memory_space<vmem>>, %arg13: memref<2x10xf32, #tpu.memory_space<vmem>>, %arg14: memref<60x28xf32, #tpu.memory_space<vmem>>) attributes {dimension_semantics = [], scalar_prefetch = 0 : i64, scratch_operands = 1 : i64, tpu.core_type = #tpu.core_type<tc>} {
    %cst = arith.constant 0.000000e+00 : f32
    %0 = vector.broadcast %cst : f32 to vector<60x28xf32>
    %c0 = arith.constant 0 : index
    %c0_0 = arith.constant 0 : index
    %1 = vector.load %arg14[%c0, %c0_0] : memref<60x28xf32, #tpu.memory_space<vmem>>, vector<60x28xf32>
    tpu.vector_store %arg14[%c0, %c0_0], %0 {strides = array<i32>} : memref<60x28xf32, #tpu.memory_space<vmem>>, vector<60x28xf32>,
    %c0_1 = arith.constant 0 : index
    %c0_2 = arith.constant 0 : index
    %c0_3 = arith.constant 0 : index
    %c0_4 = arith.constant 0 : index
    %2 = vector.load %arg0[%c0_1, %c0_2, %c0_3, %c0_4] : memref<2x1x28x28xf32, #tpu.memory_space<vmem>>, vector<1x1x28x28xf32>
    %3 = vector.shape_cast %2 : vector<1x1x28x28xf32> to vector<28x28xf32>
    %c1 = arith.constant 1 : index
    %c0_5 = arith.constant 0 : index
    %4 = vector.load %arg14[%c1, %c0_5] : memref<60x28xf32, #tpu.memory_space<vmem>>, vector<28x28xf32>
    tpu.vector_store %arg14[%c1, %c0_5], %3 {strides = array<i32>} : memref<60x28xf32, #tpu.memory_space<vmem>>, vector<28x28xf32>,
    %c1_6 = arith.constant 1 : index
    %c0_7 = arith.constant 0 : index
    %c0_8 = arith.constant 0 : index
    %c0_9 = arith.constant 0 : index
    %5 = vector.load %arg0[%c1_6, %c0_7, %c0_8, %c0_9] : memref<2x1x28x28xf32, #tpu.memory_space<vmem>>, vector<1x1x28x28xf32>
    %6 = vector.shape_cast %5 : vector<1x1x28x28xf32> to vector<28x28xf32>
    %c31 = arith.constant 31 : index
    %c0_10 = arith.constant 0 : index
    %7 = vector.load %arg14[%c31, %c0_10] : memref<60x28xf32, #tpu.memory_space<vmem>>, vector<28x28xf32>
    tpu.vector_store %arg14[%c31, %c0_10], %6 {strides = array<i32>} : memref<60x28xf32, #tpu.memory_space<vmem>>, vector<28x28xf32>,
    %c0_11 = arith.constant 0 : index
    %c0_12 = arith.constant 0 : index
    %8 = vector.load %arg14[%c0_11, %c0_12] : memref<60x28xf32, #tpu.memory_space<vmem>>, vector<56x28xf32>
    %c0_13 = arith.constant 0 : index
    %c0_14 = arith.constant 0 : index
    %c0_15 = arith.constant 0 : index
    %9 = vector.load %arg1[%c0_13, %c0_14, %c0_15] : memref<5x28x104xf32, #tpu.memory_space<vmem>>, vector<1x28x104xf32>
    %10 = vector.shape_cast %9 : vector<1x28x104xf32> to vector<28x104xf32>
    %cst_16 = arith.constant dense<0.000000e+00> : vector<56x104xf32>
    %11 = tpu.matmul %8, %10, %cst_16 {dimension_numbers = #tpu.dot_dimension_numbers<[1], [0], [0], [1], [0, 0, 1, 1], [], []>} : vector<56x28xf32>, vector<28x104xf32>, vector<56x104xf32> -> vector<56x104xf32>
    %c1_17 = arith.constant 1 : index
    %c0_18 = arith.constant 0 : index
    %12 = vector.load %arg14[%c1_17, %c0_18] : memref<60x28xf32, #tpu.memory_space<vmem>>, vector<56x28xf32>
    %c1_19 = arith.constant 1 : index
    %c0_20 = arith.constant 0 : index
    %c0_21 = arith.constant 0 : index
    %13 = vector.load %arg1[%c1_19, %c0_20, %c0_21] : memref<5x28x104xf32, #tpu.memory_space<vmem>>, vector<1x28x104xf32>
    %14 = vector.shape_cast %13 : vector<1x28x104xf32> to vector<28x104xf32>
    %cst_22 = arith.constant dense<0.000000e+00> : vector<56x104xf32>
    %15 = tpu.matmul %12, %14, %cst_22 {dimension_numbers = #tpu.dot_dimension_numbers<[1], [0], [0], [1], [0, 0, 1, 1], [], []>} : vector<56x28xf32>, vector<28x104xf32>, vector<56x104xf32> -> vector<56x104xf32>
    %16 = arith.addf %11, %15 : vector<56x104xf32>
    %c2 = arith.constant 2 : index
    %c0_23 = arith.constant 0 : index
    %17 = vector.load %arg14[%c2, %c0_23] : memref<60x28xf32, #tpu.memory_space<vmem>>, vector<56x28xf32>
    %c2_24 = arith.constant 2 : index
    %c0_25 = arith.constant 0 : index
    %c0_26 = arith.constant 0 : index
    %18 = vector.load %arg1[%c2_24, %c0_25, %c0_26] : memref<5x28x104xf32, #tpu.memory_space<vmem>>, vector<1x28x104xf32>
    %19 = vector.shape_cast %18 : vector<1x28x104xf32> to vector<28x104xf32>
    %cst_27 = arith.constant dense<0.000000e+00> : vector<56x104xf32>
    %20 = tpu.matmul %17, %19, %cst_27 {dimension_numbers = #tpu.dot_dimension_numbers<[1], [0], [0], [1], [0, 0, 1, 1], [], []>} : vector<56x28xf32>, vector<28x104xf32>, vector<56x104xf32> -> vector<56x104xf32>
    %21 = arith.addf %16, %20 : vector<56x104xf32>
    %c3 = arith.constant 3 : index
    %c0_28 = arith.constant 0 : index
    %22 = vector.load %arg14[%c3, %c0_28] : memref<60x28xf32, #tpu.memory_space<vmem>>, vector<56x28xf32>
    %c3_29 = arith.constant 3 : index
    %c0_30 = arith.constant 0 : index
    %c0_31 = arith.constant 0 : index
    %23 = vector.load %arg1[%c3_29, %c0_30, %c0_31] : memref<5x28x104xf32, #tpu.memory_space<vmem>>, vector<1x28x104xf32>
    %24 = vector.shape_cast %23 : vector<1x28x104xf32> to vector<28x104xf32>
    %cst_32 = arith.constant dense<0.000000e+00> : vector<56x104xf32>
    %25 = tpu.matmul %22, %24, %cst_32 {dimension_numbers = #tpu.dot_dimension_numbers<[1], [0], [0], [1], [0, 0, 1, 1], [], []>} : vector<56x28xf32>, vector<28x104xf32>, vector<56x104xf32> -> vector<56x104xf32>
    %26 = arith.addf %21, %25 : vector<56x104xf32>
    %c4 = arith.constant 4 : index
    %c0_33 = arith.constant 0 : index
    %27 = vector.load %arg14[%c4, %c0_33] : memref<60x28xf32, #tpu.memory_space<vmem>>, vector<56x28xf32>
    %c4_34 = arith.constant 4 : index
    %c0_35 = arith.constant 0 : index
    %c0_36 = arith.constant 0 : index
    %28 = vector.load %arg1[%c4_34, %c0_35, %c0_36] : memref<5x28x104xf32, #tpu.memory_space<vmem>>, vector<1x28x104xf32>
    %29 = vector.shape_cast %28 : vector<1x28x104xf32> to vector<28x104xf32>
    %cst_37 = arith.constant dense<0.000000e+00> : vector<56x104xf32>
    %30 = tpu.matmul %27, %29, %cst_37 {dimension_numbers = #tpu.dot_dimension_numbers<[1], [0], [0], [1], [0, 0, 1, 1], [], []>} : vector<56x28xf32>, vector<28x104xf32>, vector<56x104xf32> -> vector<56x104xf32>
    %31 = arith.addf %26, %30 : vector<56x104xf32>
    %cst_38 = arith.constant 0.000000e+00 : f32
    %32 = vector.broadcast %cst_38 : f32 to vector<56x104xf32>
    %33 = arith.maximumf %31, %32 : vector<56x104xf32>
    %c0_39 = arith.constant 0 : index
    %c0_40 = arith.constant 0 : index
    %34 = vector.load %arg2[%c0_39, %c0_40] : memref<32x56xf32, #tpu.memory_space<vmem>>, vector<32x56xf32>
    %cst_41 = arith.constant dense<0.000000e+00> : vector<32x104xf32>
    %35 = tpu.matmul %34, %33, %cst_41 {dimension_numbers = #tpu.dot_dimension_numbers<[1], [0], [0], [1], [0, 0, 1, 1], [], []>} : vector<32x56xf32>, vector<56x104xf32>, vector<32x104xf32> -> vector<32x104xf32>
    %c0_42 = arith.constant 0 : index
    %c0_43 = arith.constant 0 : index
    %36 = vector.load %arg3[%c0_42, %c0_43] : memref<32x56xf32, #tpu.memory_space<vmem>>, vector<32x56xf32>
    %cst_44 = arith.constant dense<0.000000e+00> : vector<32x104xf32>
    %37 = tpu.matmul %36, %33, %cst_44 {dimension_numbers = #tpu.dot_dimension_numbers<[1], [0], [0], [1], [0, 0, 1, 1], [], []>} : vector<32x56xf32>, vector<56x104xf32>, vector<32x104xf32> -> vector<32x104xf32>
    %38 = arith.maximumf %35, %37 : vector<32x104xf32>
    %c0_45 = arith.constant 0 : index
    %c0_46 = arith.constant 0 : index
    %39 = vector.load %arg4[%c0_45, %c0_46] : memref<104x64xf32, #tpu.memory_space<vmem>>, vector<104x64xf32>
    %cst_47 = arith.constant dense<0.000000e+00> : vector<32x64xf32>
    %40 = tpu.matmul %38, %39, %cst_47 {dimension_numbers = #tpu.dot_dimension_numbers<[1], [0], [0], [1], [0, 0, 1, 1], [], []>} : vector<32x104xf32>, vector<104x64xf32>, vector<32x64xf32> -> vector<32x64xf32>
    %c0_48 = arith.constant 0 : index
    %c0_49 = arith.constant 0 : index
    %41 = vector.load %arg5[%c0_48, %c0_49] : memref<104x64xf32, #tpu.memory_space<vmem>>, vector<104x64xf32>
    %cst_50 = arith.constant dense<0.000000e+00> : vector<32x64xf32>
    %42 = tpu.matmul %38, %41, %cst_50 {dimension_numbers = #tpu.dot_dimension_numbers<[1], [0], [0], [1], [0, 0, 1, 1], [], []>} : vector<32x104xf32>, vector<104x64xf32>, vector<32x64xf32> -> vector<32x64xf32>
    %43 = arith.maximumf %40, %42 : vector<32x64xf32>
    %44 = vector.extract_strided_slice %43 {offsets = [0, 0], sizes = [28, 64], strides = [1, 1]} : vector<32x64xf32> to vector<28x64xf32>
    %c0_51 = arith.constant 0 : index
    %c0_52 = arith.constant 0 : index
    %c0_53 = arith.constant 0 : index
    %45 = vector.load %arg6[%c0_51, %c0_52, %c0_53] : memref<5x64x96xf32, #tpu.memory_space<vmem>>, vector<1x64x96xf32>
    %46 = vector.shape_cast %45 : vector<1x64x96xf32> to vector<64x96xf32>
    %cst_54 = arith.constant dense<0.000000e+00> : vector<28x96xf32>
    %47 = tpu.matmul %44, %46, %cst_54 {dimension_numbers = #tpu.dot_dimension_numbers<[1], [0], [0], [1], [0, 0, 1, 1], [], []>} : vector<28x64xf32>, vector<64x96xf32>, vector<28x96xf32> -> vector<28x96xf32>
    %48 = vector.extract_strided_slice %43 {offsets = [1, 0], sizes = [28, 64], strides = [1, 1]} : vector<32x64xf32> to vector<28x64xf32>
    %c1_55 = arith.constant 1 : index
    %c0_56 = arith.constant 0 : index
    %c0_57 = arith.constant 0 : index
    %49 = vector.load %arg6[%c1_55, %c0_56, %c0_57] : memref<5x64x96xf32, #tpu.memory_space<vmem>>, vector<1x64x96xf32>
    %50 = vector.shape_cast %49 : vector<1x64x96xf32> to vector<64x96xf32>
    %cst_58 = arith.constant dense<0.000000e+00> : vector<28x96xf32>
    %51 = tpu.matmul %48, %50, %cst_58 {dimension_numbers = #tpu.dot_dimension_numbers<[1], [0], [0], [1], [0, 0, 1, 1], [], []>} : vector<28x64xf32>, vector<64x96xf32>, vector<28x96xf32> -> vector<28x96xf32>
    %52 = arith.addf %47, %51 : vector<28x96xf32>
    %53 = vector.extract_strided_slice %43 {offsets = [2, 0], sizes = [28, 64], strides = [1, 1]} : vector<32x64xf32> to vector<28x64xf32>
    %c2_59 = arith.constant 2 : index
    %c0_60 = arith.constant 0 : index
    %c0_61 = arith.constant 0 : index
    %54 = vector.load %arg6[%c2_59, %c0_60, %c0_61] : memref<5x64x96xf32, #tpu.memory_space<vmem>>, vector<1x64x96xf32>
    %55 = vector.shape_cast %54 : vector<1x64x96xf32> to vector<64x96xf32>
    %cst_62 = arith.constant dense<0.000000e+00> : vector<28x96xf32>
    %56 = tpu.matmul %53, %55, %cst_62 {dimension_numbers = #tpu.dot_dimension_numbers<[1], [0], [0], [1], [0, 0, 1, 1], [], []>} : vector<28x64xf32>, vector<64x96xf32>, vector<28x96xf32> -> vector<28x96xf32>
    %57 = arith.addf %52, %56 : vector<28x96xf32>
    %58 = vector.extract_strided_slice %43 {offsets = [3, 0], sizes = [28, 64], strides = [1, 1]} : vector<32x64xf32> to vector<28x64xf32>
    %c3_63 = arith.constant 3 : index
    %c0_64 = arith.constant 0 : index
    %c0_65 = arith.constant 0 : index
    %59 = vector.load %arg6[%c3_63, %c0_64, %c0_65] : memref<5x64x96xf32, #tpu.memory_space<vmem>>, vector<1x64x96xf32>
    %60 = vector.shape_cast %59 : vector<1x64x96xf32> to vector<64x96xf32>
    %cst_66 = arith.constant dense<0.000000e+00> : vector<28x96xf32>
    %61 = tpu.matmul %58, %60, %cst_66 {dimension_numbers = #tpu.dot_dimension_numbers<[1], [0], [0], [1], [0, 0, 1, 1], [], []>} : vector<28x64xf32>, vector<64x96xf32>, vector<28x96xf32> -> vector<28x96xf32>
    %62 = arith.addf %57, %61 : vector<28x96xf32>
    %63 = vector.extract_strided_slice %43 {offsets = [4, 0], sizes = [28, 64], strides = [1, 1]} : vector<32x64xf32> to vector<28x64xf32>
    %c4_67 = arith.constant 4 : index
    %c0_68 = arith.constant 0 : index
    %c0_69 = arith.constant 0 : index
    %64 = vector.load %arg6[%c4_67, %c0_68, %c0_69] : memref<5x64x96xf32, #tpu.memory_space<vmem>>, vector<1x64x96xf32>
    %65 = vector.shape_cast %64 : vector<1x64x96xf32> to vector<64x96xf32>
    %cst_70 = arith.constant dense<0.000000e+00> : vector<28x96xf32>
    %66 = tpu.matmul %63, %65, %cst_70 {dimension_numbers = #tpu.dot_dimension_numbers<[1], [0], [0], [1], [0, 0, 1, 1], [], []>} : vector<28x64xf32>, vector<64x96xf32>, vector<28x96xf32> -> vector<28x96xf32>
    %67 = arith.addf %62, %66 : vector<28x96xf32>
    %cst_71 = arith.constant 0.000000e+00 : f32
    %68 = vector.broadcast %cst_71 : f32 to vector<28x96xf32>
    %69 = arith.maximumf %67, %68 : vector<28x96xf32>
    %c0_72 = arith.constant 0 : index
    %c0_73 = arith.constant 0 : index
    %70 = vector.load %arg7[%c0_72, %c0_73] : memref<14x28xf32, #tpu.memory_space<vmem>>, vector<14x28xf32>
    %cst_74 = arith.constant dense<0.000000e+00> : vector<14x96xf32>
    %71 = tpu.matmul %70, %69, %cst_74 {dimension_numbers = #tpu.dot_dimension_numbers<[1], [0], [0], [1], [0, 0, 1, 1], [], []>} : vector<14x28xf32>, vector<28x96xf32>, vector<14x96xf32> -> vector<14x96xf32>
    %c0_75 = arith.constant 0 : index
    %c0_76 = arith.constant 0 : index
    %72 = vector.load %arg8[%c0_75, %c0_76] : memref<14x28xf32, #tpu.memory_space<vmem>>, vector<14x28xf32>
    %cst_77 = arith.constant dense<0.000000e+00> : vector<14x96xf32>
    %73 = tpu.matmul %72, %69, %cst_77 {dimension_numbers = #tpu.dot_dimension_numbers<[1], [0], [0], [1], [0, 0, 1, 1], [], []>} : vector<14x28xf32>, vector<28x96xf32>, vector<14x96xf32> -> vector<14x96xf32>
    %74 = arith.maximumf %71, %73 : vector<14x96xf32>
    %c0_78 = arith.constant 0 : index
    %c0_79 = arith.constant 0 : index
    %75 = vector.load %arg9[%c0_78, %c0_79] : memref<96x56xf32, #tpu.memory_space<vmem>>, vector<96x56xf32>
    %cst_80 = arith.constant dense<0.000000e+00> : vector<14x56xf32>
    %76 = tpu.matmul %74, %75, %cst_80 {dimension_numbers = #tpu.dot_dimension_numbers<[1], [0], [0], [1], [0, 0, 1, 1], [], []>} : vector<14x96xf32>, vector<96x56xf32>, vector<14x56xf32> -> vector<14x56xf32>
    %c0_81 = arith.constant 0 : index
    %c0_82 = arith.constant 0 : index
    %77 = vector.load %arg10[%c0_81, %c0_82] : memref<96x56xf32, #tpu.memory_space<vmem>>, vector<96x56xf32>
    %cst_83 = arith.constant dense<0.000000e+00> : vector<14x56xf32>
    %78 = tpu.matmul %74, %77, %cst_83 {dimension_numbers = #tpu.dot_dimension_numbers<[1], [0], [0], [1], [0, 0, 1, 1], [], []>} : vector<14x96xf32>, vector<96x56xf32>, vector<14x56xf32> -> vector<14x56xf32>
    %79 = arith.maximumf %76, %78 : vector<14x56xf32>
    %c0_84 = arith.constant 0 : index
    %c0_85 = arith.constant 0 : index
    %c0_86 = arith.constant 0 : index
    %80 = vector.load %arg11[%c0_84, %c0_85, %c0_86] : memref<7x56x32xf32, #tpu.memory_space<vmem>>, vector<1x56x32xf32>
    %81 = vector.shape_cast %80 : vector<1x56x32xf32> to vector<56x32xf32>
    %c1_87 = arith.constant 1 : index
    %c0_88 = arith.constant 0 : index
    %c0_89 = arith.constant 0 : index
    %82 = vector.load %arg11[%c1_87, %c0_88, %c0_89] : memref<7x56x32xf32, #tpu.memory_space<vmem>>, vector<1x56x32xf32>
    %83 = vector.shape_cast %82 : vector<1x56x32xf32> to vector<56x32xf32>
    %c2_90 = arith.constant 2 : index
    %c0_91 = arith.constant 0 : index
    %c0_92 = arith.constant 0 : index
    %84 = vector.load %arg11[%c2_90, %c0_91, %c0_92] : memref<7x56x32xf32, #tpu.memory_space<vmem>>, vector<1x56x32xf32>
    %85 = vector.shape_cast %84 : vector<1x56x32xf32> to vector<56x32xf32>
    %c3_93 = arith.constant 3 : index
    %c0_94 = arith.constant 0 : index
    %c0_95 = arith.constant 0 : index
    %86 = vector.load %arg11[%c3_93, %c0_94, %c0_95] : memref<7x56x32xf32, #tpu.memory_space<vmem>>, vector<1x56x32xf32>
    %87 = vector.shape_cast %86 : vector<1x56x32xf32> to vector<56x32xf32>
    %c4_96 = arith.constant 4 : index
    %c0_97 = arith.constant 0 : index
    %c0_98 = arith.constant 0 : index
    %88 = vector.load %arg11[%c4_96, %c0_97, %c0_98] : memref<7x56x32xf32, #tpu.memory_space<vmem>>, vector<1x56x32xf32>
    %89 = vector.shape_cast %88 : vector<1x56x32xf32> to vector<56x32xf32>
    %c5 = arith.constant 5 : index
    %c0_99 = arith.constant 0 : index
    %c0_100 = arith.constant 0 : index
    %90 = vector.load %arg11[%c5, %c0_99, %c0_100] : memref<7x56x32xf32, #tpu.memory_space<vmem>>, vector<1x56x32xf32>
    %91 = vector.shape_cast %90 : vector<1x56x32xf32> to vector<56x32xf32>
    %c6 = arith.constant 6 : index
    %c0_101 = arith.constant 0 : index
    %c0_102 = arith.constant 0 : index
    %92 = vector.load %arg11[%c6, %c0_101, %c0_102] : memref<7x56x32xf32, #tpu.memory_space<vmem>>, vector<1x56x32xf32>
    %93 = vector.shape_cast %92 : vector<1x56x32xf32> to vector<56x32xf32>
    %c0_103 = arith.constant 0 : index
    %c0_104 = arith.constant 0 : index
    %94 = vector.load %arg12[%c0_103, %c0_104] : memref<32x10xf32, #tpu.memory_space<vmem>>, vector<32x10xf32>
    %95 = vector.extract_strided_slice %79 {offsets = [0, 0], sizes = [7, 56], strides = [1, 1]} : vector<14x56xf32> to vector<7x56xf32>
    %96 = vector.extract_strided_slice %95 {offsets = [0, 0], sizes = [1, 56], strides = [1, 1]} : vector<7x56xf32> to vector<1x56xf32>
    %cst_105 = arith.constant dense<0.000000e+00> : vector<1x32xf32>
    %97 = tpu.matmul %96, %81, %cst_105 {dimension_numbers = #tpu.dot_dimension_numbers<[1], [0], [0], [1], [0, 0, 1, 1], [], []>} : vector<1x56xf32>, vector<56x32xf32>, vector<1x32xf32> -> vector<1x32xf32>
    %98 = vector.extract_strided_slice %95 {offsets = [1, 0], sizes = [1, 56], strides = [1, 1]} : vector<7x56xf32> to vector<1x56xf32>
    %cst_106 = arith.constant dense<0.000000e+00> : vector<1x32xf32>
    %99 = tpu.matmul %98, %83, %cst_106 {dimension_numbers = #tpu.dot_dimension_numbers<[1], [0], [0], [1], [0, 0, 1, 1], [], []>} : vector<1x56xf32>, vector<56x32xf32>, vector<1x32xf32> -> vector<1x32xf32>
    %100 = arith.addf %97, %99 : vector<1x32xf32>
    %101 = vector.extract_strided_slice %95 {offsets = [2, 0], sizes = [1, 56], strides = [1, 1]} : vector<7x56xf32> to vector<1x56xf32>
    %cst_107 = arith.constant dense<0.000000e+00> : vector<1x32xf32>
    %102 = tpu.matmul %101, %85, %cst_107 {dimension_numbers = #tpu.dot_dimension_numbers<[1], [0], [0], [1], [0, 0, 1, 1], [], []>} : vector<1x56xf32>, vector<56x32xf32>, vector<1x32xf32> -> vector<1x32xf32>
    %103 = arith.addf %100, %102 : vector<1x32xf32>
    %104 = vector.extract_strided_slice %95 {offsets = [3, 0], sizes = [1, 56], strides = [1, 1]} : vector<7x56xf32> to vector<1x56xf32>
    %cst_108 = arith.constant dense<0.000000e+00> : vector<1x32xf32>
    %105 = tpu.matmul %104, %87, %cst_108 {dimension_numbers = #tpu.dot_dimension_numbers<[1], [0], [0], [1], [0, 0, 1, 1], [], []>} : vector<1x56xf32>, vector<56x32xf32>, vector<1x32xf32> -> vector<1x32xf32>
    %106 = arith.addf %103, %105 : vector<1x32xf32>
    %107 = vector.extract_strided_slice %95 {offsets = [4, 0], sizes = [1, 56], strides = [1, 1]} : vector<7x56xf32> to vector<1x56xf32>
    %cst_109 = arith.constant dense<0.000000e+00> : vector<1x32xf32>
    %108 = tpu.matmul %107, %89, %cst_109 {dimension_numbers = #tpu.dot_dimension_numbers<[1], [0], [0], [1], [0, 0, 1, 1], [], []>} : vector<1x56xf32>, vector<56x32xf32>, vector<1x32xf32> -> vector<1x32xf32>
    %109 = arith.addf %106, %108 : vector<1x32xf32>
    %110 = vector.extract_strided_slice %95 {offsets = [5, 0], sizes = [1, 56], strides = [1, 1]} : vector<7x56xf32> to vector<1x56xf32>
    %cst_110 = arith.constant dense<0.000000e+00> : vector<1x32xf32>
    %111 = tpu.matmul %110, %91, %cst_110 {dimension_numbers = #tpu.dot_dimension_numbers<[1], [0], [0], [1], [0, 0, 1, 1], [], []>} : vector<1x56xf32>, vector<56x32xf32>, vector<1x32xf32> -> vector<1x32xf32>
    %112 = arith.addf %109, %111 : vector<1x32xf32>
    %113 = vector.extract_strided_slice %95 {offsets = [6, 0], sizes = [1, 56], strides = [1, 1]} : vector<7x56xf32> to vector<1x56xf32>
    %cst_111 = arith.constant dense<0.000000e+00> : vector<1x32xf32>
    %114 = tpu.matmul %113, %93, %cst_111 {dimension_numbers = #tpu.dot_dimension_numbers<[1], [0], [0], [1], [0, 0, 1, 1], [], []>} : vector<1x56xf32>, vector<56x32xf32>, vector<1x32xf32> -> vector<1x32xf32>
    %115 = arith.addf %112, %114 : vector<1x32xf32>
    %cst_112 = arith.constant 0.000000e+00 : f32
    %116 = vector.broadcast %cst_112 : f32 to vector<1x32xf32>
    %117 = arith.maximumf %115, %116 : vector<1x32xf32>
    %cst_113 = arith.constant dense<0.000000e+00> : vector<1x10xf32>
    %118 = tpu.matmul %117, %94, %cst_113 {dimension_numbers = #tpu.dot_dimension_numbers<[1], [0], [0], [1], [0, 0, 1, 1], [], []>} : vector<1x32xf32>, vector<32x10xf32>, vector<1x10xf32> -> vector<1x10xf32>
    %c0_114 = arith.constant 0 : index
    %c0_115 = arith.constant 0 : index
    %119 = vector.load %arg13[%c0_114, %c0_115] : memref<2x10xf32, #tpu.memory_space<vmem>>, vector<1x10xf32>
    tpu.vector_store %arg13[%c0_114, %c0_115], %118 {strides = array<i32>} : memref<2x10xf32, #tpu.memory_space<vmem>>, vector<1x10xf32>,
    %120 = vector.extract_strided_slice %79 {offsets = [7, 0], sizes = [7, 56], strides = [1, 1]} : vector<14x56xf32> to vector<7x56xf32>
    %121 = vector.extract_strided_slice %120 {offsets = [0, 0], sizes = [1, 56], strides = [1, 1]} : vector<7x56xf32> to vector<1x56xf32>
    %cst_116 = arith.constant dense<0.000000e+00> : vector<1x32xf32>
    %122 = tpu.matmul %121, %81, %cst_116 {dimension_numbers = #tpu.dot_dimension_numbers<[1], [0], [0], [1], [0, 0, 1, 1], [], []>} : vector<1x56xf32>, vector<56x32xf32>, vector<1x32xf32> -> vector<1x32xf32>
    %123 = vector.extract_strided_slice %120 {offsets = [1, 0], sizes = [1, 56], strides = [1, 1]} : vector<7x56xf32> to vector<1x56xf32>
    %cst_117 = arith.constant dense<0.000000e+00> : vector<1x32xf32>
    %124 = tpu.matmul %123, %83, %cst_117 {dimension_numbers = #tpu.dot_dimension_numbers<[1], [0], [0], [1], [0, 0, 1, 1], [], []>} : vector<1x56xf32>, vector<56x32xf32>, vector<1x32xf32> -> vector<1x32xf32>
    %125 = arith.addf %122, %124 : vector<1x32xf32>
    %126 = vector.extract_strided_slice %120 {offsets = [2, 0], sizes = [1, 56], strides = [1, 1]} : vector<7x56xf32> to vector<1x56xf32>
    %cst_118 = arith.constant dense<0.000000e+00> : vector<1x32xf32>
    %127 = tpu.matmul %126, %85, %cst_118 {dimension_numbers = #tpu.dot_dimension_numbers<[1], [0], [0], [1], [0, 0, 1, 1], [], []>} : vector<1x56xf32>, vector<56x32xf32>, vector<1x32xf32> -> vector<1x32xf32>
    %128 = arith.addf %125, %127 : vector<1x32xf32>
    %129 = vector.extract_strided_slice %120 {offsets = [3, 0], sizes = [1, 56], strides = [1, 1]} : vector<7x56xf32> to vector<1x56xf32>
    %cst_119 = arith.constant dense<0.000000e+00> : vector<1x32xf32>
    %130 = tpu.matmul %129, %87, %cst_119 {dimension_numbers = #tpu.dot_dimension_numbers<[1], [0], [0], [1], [0, 0, 1, 1], [], []>} : vector<1x56xf32>, vector<56x32xf32>, vector<1x32xf32> -> vector<1x32xf32>
    %131 = arith.addf %128, %130 : vector<1x32xf32>
    %132 = vector.extract_strided_slice %120 {offsets = [4, 0], sizes = [1, 56], strides = [1, 1]} : vector<7x56xf32> to vector<1x56xf32>
    %cst_120 = arith.constant dense<0.000000e+00> : vector<1x32xf32>
    %133 = tpu.matmul %132, %89, %cst_120 {dimension_numbers = #tpu.dot_dimension_numbers<[1], [0], [0], [1], [0, 0, 1, 1], [], []>} : vector<1x56xf32>, vector<56x32xf32>, vector<1x32xf32> -> vector<1x32xf32>
    %134 = arith.addf %131, %133 : vector<1x32xf32>
    %135 = vector.extract_strided_slice %120 {offsets = [5, 0], sizes = [1, 56], strides = [1, 1]} : vector<7x56xf32> to vector<1x56xf32>
    %cst_121 = arith.constant dense<0.000000e+00> : vector<1x32xf32>
    %136 = tpu.matmul %135, %91, %cst_121 {dimension_numbers = #tpu.dot_dimension_numbers<[1], [0], [0], [1], [0, 0, 1, 1], [], []>} : vector<1x56xf32>, vector<56x32xf32>, vector<1x32xf32> -> vector<1x32xf32>
    %137 = arith.addf %134, %136 : vector<1x32xf32>
    %138 = vector.extract_strided_slice %120 {offsets = [6, 0], sizes = [1, 56], strides = [1, 1]} : vector<7x56xf32> to vector<1x56xf32>
    %cst_122 = arith.constant dense<0.000000e+00> : vector<1x32xf32>
    %139 = tpu.matmul %138, %93, %cst_122 {dimension_numbers = #tpu.dot_dimension_numbers<[1], [0], [0], [1], [0, 0, 1, 1], [], []>} : vector<1x56xf32>, vector<56x32xf32>, vector<1x32xf32> -> vector<1x32xf32>
    %140 = arith.addf %137, %139 : vector<1x32xf32>
    %cst_123 = arith.constant 0.000000e+00 : f32
    %141 = vector.broadcast %cst_123 : f32 to vector<1x32xf32>
    %142 = arith.maximumf %140, %141 : vector<1x32xf32>
    %cst_124 = arith.constant dense<0.000000e+00> : vector<1x10xf32>
    %143 = tpu.matmul %142, %94, %cst_124 {dimension_numbers = #tpu.dot_dimension_numbers<[1], [0], [0], [1], [0, 0, 1, 1], [], []>} : vector<1x32xf32>, vector<32x10xf32>, vector<1x10xf32> -> vector<1x10xf32>
    %c1_125 = arith.constant 1 : index
    %c0_126 = arith.constant 0 : index
    %144 = vector.load %arg13[%c1_125, %c0_126] : memref<2x10xf32, #tpu.memory_space<vmem>>, vector<1x10xf32>
    tpu.vector_store %arg13[%c1_125, %c0_126], %143 {strides = array<i32>} : memref<2x10xf32, #tpu.memory_space<vmem>>, vector<1x10xf32>,
    return
  }
}

</mosaic_0001>

<llo_original>
// kernel: cnn_forward.1
$region0: #{cnn_forward.1}
  #allocation0 [shape = 'u32[]', space=smem, size = 0x4, offset = 0x4, fixed_abs, tag = 'smem constant byte address 0x4 - core index']
  #allocation1 [shape = 'u32[144,128]{1,0:T(1,128)}', space=vmem, size = 0x12000, scoped, tag = 'internal scratch']
  #allocation2 [shape = 'f32[60,28]{1,0:T(8,128)}', space=vmem, size = 0x8000, scoped, tag = 'scratch operand']
  %s0 = inlined_call_operand.vmem [shape: f32[2,1,28,28], index: 0, kind: input, shape index: {}]
  %s1 = inlined_call_operand.vmem [shape: f32[5,28,104], index: 1, kind: input, shape index: {}]
  %s2 = inlined_call_operand.vmem [shape: f32[32,56], index: 2, kind: input, shape index: {}]
  %s3 = inlined_call_operand.vmem [shape: f32[32,56], index: 3, kind: input, shape index: {}]
  %s4 = inlined_call_operand.vmem [shape: f32[104,64], index: 4, kind: input, shape index: {}]
  %s5 = inlined_call_operand.vmem [shape: f32[104,64], index: 5, kind: input, shape index: {}]
  %s6 = inlined_call_operand.vmem [shape: f32[5,64,96], index: 6, kind: input, shape index: {}]
  %s7 = inlined_call_operand.vmem [shape: f32[14,28], index: 7, kind: input, shape index: {}]
  %s8 = inlined_call_operand.vmem [shape: f32[14,28], index: 8, kind: input, shape index: {}]
  %s9 = inlined_call_operand.vmem [shape: f32[96,56], index: 9, kind: input, shape index: {}]
  %s10 = inlined_call_operand.vmem [shape: f32[96,56], index: 10, kind: input, shape index: {}]
  %s11 = inlined_call_operand.vmem [shape: f32[7,56,32], index: 11, kind: input, shape index: {}]
  %s12 = inlined_call_operand.vmem [shape: f32[32,10], index: 12, kind: input, shape index: {}]
  %s13 = inlined_call_operand.hbm [shape: f32[2,10], index: 13, kind: output, shape index: {}]
  %s14 = sld [smem:[#allocation0]]
  $region62: #{cnn_forward.1} parent=0
    _
  %s16 = ssub.s32 1, %s14
  %s17 = scalar_select 0, %s16, %s14
  $region1: #{cnn_forward.1} parent=0
    #allocation3 [shape = 'u8[1024]{0}', space=vmem, size = 0x400, scoped, tag = 'output window, operand 0, single buffered']
    #allocation4 [shape = 's32[1]{0}', space=sflag, size = 0x4, scoped, tag = 'scoped memory for cnn_forward.1']
    %18 = vsyncpa [#allocation4], 0
    // Predicated region
    $region2: #{cnn_forward.1} parent=1 // pred_check
      _
    $region3: #{cnn_forward.1} parent=1 // pred_check_branch
      %20 = sbr.rel (0) target = $region5
    $region4: #{cnn_forward.1} parent=1 // pred_region
      _
    $region5: #{cnn_forward.1} parent=1 // pred_fallthru
      _
    // Predicated region
    $region6: #{cnn_forward.1} parent=1 // pred_check
      _
    $region7: #{cnn_forward.1} parent=1 // pred_check_branch
      %22 = sbr.rel (0) target = $region9
    $region8: #{cnn_forward.1} parent=1 // pred_region
      _
    $region9: #{cnn_forward.1} parent=1 // pred_fallthru
      _
    // Predicated region
    $region10: #{cnn_forward.1} parent=1 // pred_check
      _
    $region11: #{cnn_forward.1} parent=1 // pred_check_branch
      %24 = sbr.rel (0) target = $region13
    $region12: #{cnn_forward.1} parent=1 // pred_region
      _
    $region13: #{cnn_forward.1} parent=1 // pred_fallthru
      _
    // Predicated region
    $region14: #{cnn_forward.1} parent=1 // pred_check
      _
    $region15: #{cnn_forward.1} parent=1 // pred_check_branch
      %26 = sbr.rel (0) target = $region17
    $region16: #{cnn_forward.1} parent=1 // pred_region
      _
    $region17: #{cnn_forward.1} parent=1 // pred_fallthru
      _
    // Predicated region
    $region18: #{cnn_forward.1} parent=1 // pred_check
      _
    $region19: #{cnn_forward.1} parent=1 // pred_check_branch
      %28 = sbr.rel (0) target = $region21
    $region20: #{cnn_forward.1} parent=1 // pred_region
      _
    $region21: #{cnn_forward.1} parent=1 // pred_fallthru
      _
    // Predicated region
    $region22: #{cnn_forward.1} parent=1 // pred_check
      _
    $region23: #{cnn_forward.1} parent=1 // pred_check_branch
      %30 = sbr.rel (0) target = $region25
    $region24: #{cnn_forward.1} parent=1 // pred_region
      _
    $region25: #{cnn_forward.1} parent=1 // pred_fallthru
      _
    // Predicated region
    $region26: #{cnn_forward.1} parent=1 // pred_check
      _
    $region27: #{cnn_forward.1} parent=1 // pred_check_branch
      %32 = sbr.rel (0) target = $region29
    $region28: #{cnn_forward.1} parent=1 // pred_region
      _
    $region29: #{cnn_forward.1} parent=1 // pred_fallthru
      _
    // Predicated region
    $region30: #{cnn_forward.1} parent=1 // pred_check
      _
    $region31: #{cnn_forward.1} parent=1 // pred_check_branch
      %34 = sbr.rel (0) target = $region33
    $region32: #{cnn_forward.1} parent=1 // pred_region
      _
    $region33: #{cnn_forward.1} parent=1 // pred_fallthru
      _
    // Predicated region
    $region34: #{cnn_forward.1} parent=1 // pred_check
      _
    $region35: #{cnn_forward.1} parent=1 // pred_check_branch
      %36 = sbr.rel (0) target = $region37
    $region36: #{cnn_forward.1} parent=1 // pred_region
      _
    $region37: #{cnn_forward.1} parent=1 // pred_fallthru
      _
    // Predicated region
    $region38: #{cnn_forward.1} parent=1 // pred_check
      _
    $region39: #{cnn_forward.1} parent=1 // pred_check_branch
      %38 = sbr.rel (0) target = $region41
    $region40: #{cnn_forward.1} parent=1 // pred_region
      _
    $region41: #{cnn_forward.1} parent=1 // pred_fallthru
      _
    // Predicated region
    $region42: #{cnn_forward.1} parent=1 // pred_check
      _
    $region43: #{cnn_forward.1} parent=1 // pred_check_branch
      %40 = sbr.rel (0) target = $region45
    $region44: #{cnn_forward.1} parent=1 // pred_region
      _
    $region45: #{cnn_forward.1} parent=1 // pred_fallthru
      _
    // Predicated region
    $region46: #{cnn_forward.1} parent=1 // pred_check
      _
    $region47: #{cnn_forward.1} parent=1 // pred_check_branch
      %42 = sbr.rel (0) target = $region49
    $region48: #{cnn_forward.1} parent=1 // pred_region
      _
    $region49: #{cnn_forward.1} parent=1 // pred_fallthru
      _
    // Predicated region
    $region50: #{cnn_forward.1} parent=1 // pred_check
      _
    $region51: #{cnn_forward.1} parent=1 // pred_check_branch
      %44 = sbr.rel (0) target = $region53
    $region52: #{cnn_forward.1} parent=1 // pred_region
      _
    $region53: #{cnn_forward.1} parent=1 // pred_fallthru
      _
    %vm45 = vcmask 228352
    %46 = vst.msk [vmem:[#allocation2] sm:$0xff] %vm45, 0.0
    %47 = vst.msk [vmem:[#allocation2 + $0x8] sm:$0xff] %vm45, 0.0
    %48 = vst.msk [vmem:[#allocation2 + $0x10] sm:$0xff] %vm45, 0.0
    %49 = vst.msk [vmem:[#allocation2 + $0x18] sm:$0xff] %vm45, 0.0
    %50 = vst.msk [vmem:[#allocation2 + $0x20] sm:$0xff] %vm45, 0.0
    %51 = vst.msk [vmem:[#allocation2 + $0x28] sm:$0xff] %vm45, 0.0
    %52 = vst.msk [vmem:[#allocation2 + $0x30] sm:$0xff] %vm45, 0.0
    %vm53 = vcmask 224256
    %54 = vst.msk [vmem:[#allocation2 + $0x38] sm:$0xf] %vm53, 0.0
    %v55 = vld [vmem:[%s0] sm:$0xff]
    %v56 = vld [vmem:[%s0 + $0x8] sm:$0xff]
    %v57 = vld [vmem:[%s0 + $0x10] sm:$0xff]
    %v58 = vld [vmem:[%s0 + $0x18] sm:$0xf]
    %59 = vst.msk [vmem:[#allocation2 + $0x1] sm:$0xff] %vm45, %v55
    %60 = vst.msk [vmem:[#allocation2 + $0x9] sm:$0xff] %vm45, %v56
    %61 = vst.msk [vmem:[#allocation2 + $0x11] sm:$0xff] %vm45, %v57
    %62 = vst.msk [vmem:[#allocation2 + $0x19] sm:$0xf] %vm53, %v58
    %s63 = scalar_lea.vmem %s0, 32
    %v64 = vld [vmem:[%s63] sm:$0xff]
    %v65 = vld [vmem:[%s63 + $0x8] sm:$0xff]
    %v66 = vld [vmem:[%s63 + $0x10] sm:$0xff]
    %v67 = vld [vmem:[%s63 + $0x18] sm:$0xf]
    %68 = vst.msk [vmem:[#allocation2 + $0x1f] sm:$0xff] %vm45, %v64
    %69 = vst.msk [vmem:[#allocation2 + $0x27] sm:$0xff] %vm45, %v65
    %70 = vst.msk [vmem:[#allocation2 + $0x2f] sm:$0xff] %vm45, %v66
    %71 = vst.msk [vmem:[#allocation2 + $0x37] sm:$0xf] %vm53, %v67
    %v72 = vld [vmem:[#allocation2] sm:$0xff]
    %v73 = vld [vmem:[#allocation2 + $0x8] sm:$0xff]
    %v74 = vld [vmem:[#allocation2 + $0x10] sm:$0xff]
    %v75 = vld [vmem:[#allocation2 + $0x18] sm:$0xff]
    %v76 = vld [vmem:[#allocation2 + $0x20] sm:$0xff]
    %v77 = vld [vmem:[#allocation2 + $0x28] sm:$0xff]
    %v78 = vld [vmem:[#allocation2 + $0x30] sm:$0xff]
    %v79 = vld [vmem:[%s1] sm:$0xff]
    %v80 = vld [vmem:[%s1 + $0x8] sm:$0xff]
    %v81 = vld [vmem:[%s1 + $0x10] sm:$0xff]
    %v82 = vld [vmem:[%s1 + $0x18] sm:$0xf]
    %v83 = vld [vmem:[#allocation2 + $0x1] sm:$0xff]
    %v84 = vld [vmem:[#allocation2 + $0x9] sm:$0xff]
    %v85 = vld [vmem:[#allocation2 + $0x11] sm:$0xff]
    %v86 = vld [vmem:[#allocation2 + $0x19] sm:$0xff]
    %v87 = vld [vmem:[#allocation2 + $0x21] sm:$0xff]
    %v88 = vld [vmem:[#allocation2 + $0x29] sm:$0xff]
    %v89 = vld [vmem:[#allocation2 + $0x31] sm:$0xff]
    %s90 = scalar_lea.vmem %s1, 32
    %v91 = vld [vmem:[%s90] sm:$0xff]
    %v92 = vld [vmem:[%s90 + $0x8] sm:$0xff]
    %v93 = vld [vmem:[%s90 + $0x10] sm:$0xff]
    %v94 = vld [vmem:[%s90 + $0x18] sm:$0xf]
    %v96 = vsel %vm45, %v83, 0
    %v99 = vsel %vm45, %v84, 0
    %v102 = vsel %vm45, %v85, 0
    %v105 = vsel %vm45, %v86, 0
    %v108 = vsel %vm45, %v87, 0
    %v111 = vsel %vm45, %v88, 0
    %v114 = vsel %vm45, %v89, 0
    %vm116 = vcmask 1043456
    %v118 = vsel %vm116, %v94, 0
    %120 = vmatprep.subr.mxu0 0.0
    %121 = vmatpush1.msra.mxu0 0.0
    %122 = vmatprep.subr.mxu0 0.0
    %123 = vmatpush1.msra.mxu0 0.0
    %124 = vmatprep.subr.mxu0 0.0
    %125 = vmatpush1.msra.mxu0 0.0
    %126 = vmatprep.subr.mxu0 0.0
    %127 = vmatpush1.msra.mxu0 0.0
    %128 = vmatprep.subr.mxu0 0.0
    %129 = vmatpush1.msra.mxu0 0.0
    %130 = vmatprep.subr.mxu0 0.0
    %131 = vmatpush1.msra.mxu0 0.0
    %132 = vmatprep.subr.mxu0 0.0
    %133 = vmatpush1.msra.mxu0 0.0
    %134 = vmatprep.subr.mxu0 0.0
    %135 = vmatpush1.msra.mxu0 0.0
    %136 = vmatprep.subr.mxu0 0.0
    %137 = vmatpush1.msra.mxu0 0.0
    %138 = vmatprep.subr.mxu0 0.0
    %139 = vmatpush1.msra.mxu0 0.0
    %140 = vmatprep.subr.mxu0 0.0
    %141 = vmatpush1.msra.mxu0 0.0
    %142 = vmatprep.subr.mxu0 0.0
    %143 = vmatpush1.msra.mxu0 0.0
    %144 = vmatprep.subr.mxu0 0.0
    %145 = vmatpush1.msra.mxu0 %v118
    %146 = vmatprep.subr.mxu0 0.0
    %147 = vmatpush1.msra.mxu0 %v93
    %148 = vmatprep.subr.mxu0 0.0
    %149 = vmatpush1.msra.mxu0 %v92
    %150 = vmatprep.subr.mxu0 0.0
    %151 = vmatpush1.msra.mxu0 %v91
    %152 = vmatprep.subr.mxu0 0.0
    %153 = vmatpush2.msra.mxu0 0.0
    %154 = vmatprep.subr.mxu0 0.0
    %155 = vmatpush2.msra.mxu0 0.0
    %156 = vmatprep.subr.mxu0 0.0
    %157 = vmatpush2.msra.mxu0 0.0
    %158 = vmatprep.subr.mxu0 0.0
    %159 = vmatpush2.msra.mxu0 0.0
    %160 = vmatprep.subr.mxu0 0.0
    %161 = vmatpush2.msra.mxu0 0.0
    %162 = vmatprep.subr.mxu0 0.0
    %163 = vmatpush2.msra.mxu0 0.0
    %164 = vmatprep.subr.mxu0 0.0
    %165 = vmatpush2.msra.mxu0 0.0
    %166 = vmatprep.subr.mxu0 0.0
    %167 = vmatpush2.msra.mxu0 0.0
    %168 = vmatprep.subr.mxu0 0.0
    %169 = vmatpush2.msra.mxu0 0.0
    %170 = vmatprep.subr.mxu0 0.0
    %171 = vmatpush2.msra.mxu0 0.0
    %172 = vmatprep.subr.mxu0 0.0
    %173 = vmatpush2.msra.mxu0 0.0
    %174 = vmatprep.subr.mxu0 0.0
    %175 = vmatpush2.msra.mxu0 0.0
    %176 = vmatprep.subr.mxu0 0.0
    %177 = vmatpush2.msra.mxu0 0.0
    %178 = vmatprep.subr.mxu0 0.0
    %179 = vmatpush2.msra.mxu0 0.0
    %180 = vmatprep.subr.mxu0 0.0
    %181 = vmatpush2.msra.mxu0 0.0
    %182 = vmatprep.subr.mxu0 0.0
    %183 = vmatpush2.msra.mxu0 0.0
    %184 = vmatprep.mubr.f32.mxu0 0.0
    %185 = vmatmul.mubr.f32.gmra.mxu0 %v96
    %v186 = vpop.f32.mrf.mxu0
    %v187 = vadd.f32 0.0, %v186
    %v188 = vpop.f32.mrf.mxu0
    %189 = vmatprep.mubr.f32.mxu0 0.0
    %190 = vmatmul.mubr.f32.gmra.mxu0 %v99
    %v191 = vpop.f32.mrf.mxu0
    %v192 = vadd.f32 0.0, %v191
    %v193 = vpop.f32.mrf.mxu0
    %194 = vmatprep.mubr.f32.mxu0 0.0
    %195 = vmatmul.mubr.f32.gmra.mxu0 %v102
    %v196 = vpop.f32.mrf.mxu0
    %v197 = vadd.f32 0.0, %v196
    %v198 = vpop.f32.mrf.mxu0
    %199 = vmatprep.mubr.f32.mxu0 0.0
    %200 = vmatmul.mubr.f32.gmra.mxu0 %v105
    %v201 = vpop.f32.mrf.mxu0
    %v202 = vadd.f32 0.0, %v201
    %v203 = vpop.f32.mrf.mxu0
    %204 = vmatprep.mubr.f32.mxu0 0.0
    %205 = vmatmul.mubr.f32.gmra.mxu0 %v108
    %v206 = vpop.f32.mrf.mxu0
    %v207 = vadd.f32 0.0, %v206
    %v208 = vpop.f32.mrf.mxu0
    %209 = vmatprep.mubr.f32.mxu0 0.0
    %210 = vmatmul.mubr.f32.gmra.mxu0 %v111
    %v211 = vpop.f32.mrf.mxu0
    %v212 = vadd.f32 0.0, %v211
    %v213 = vpop.f32.mrf.mxu0
    %214 = vmatprep.mubr.f32.mxu0 0.0
    %215 = vmatmul.mubr.f32.gmra.mxu0 %v114
    %v216 = vpop.f32.mrf.mxu0
    %v217 = vadd.f32 0.0, %v216
    %v218 = vpop.f32.mrf.mxu0
    %219 = vdwg.mxu0
    %v221 = vsel %vm45, %v72, 0
    %v224 = vsel %vm45, %v73, 0
    %v227 = vsel %vm45, %v74, 0
    %v230 = vsel %vm45, %v75, 0
    %v233 = vsel %vm45, %v76, 0
    %v236 = vsel %vm45, %v77, 0
    %v239 = vsel %vm45, %v78, 0
    %v242 = vsel %vm116, %v82, 0
    %244 = vmatprep.subr.mxu0 0.0
    %245 = vmatpush1.msra.mxu0 0.0
    %246 = vmatprep.subr.mxu0 0.0
    %247 = vmatpush1.msra.mxu0 0.0
    %248 = vmatprep.subr.mxu0 0.0
    %249 = vmatpush1.msra.mxu0 0.0
    %250 = vmatprep.subr.mxu0 0.0
    %251 = vmatpush1.msra.mxu0 0.0
    %252 = vmatprep.subr.mxu0 0.0
    %253 = vmatpush1.msra.mxu0 0.0
    %254 = vmatprep.subr.mxu0 0.0
    %255 = vmatpush1.msra.mxu0 0.0
    %256 = vmatprep.subr.mxu0 0.0
    %257 = vmatpush1.msra.mxu0 0.0
    %258 = vmatprep.subr.mxu0 0.0
    %259 = vmatpush1.msra.mxu0 0.0
    %260 = vmatprep.subr.mxu0 0.0
    %261 = vmatpush1.msra.mxu0 0.0
    %262 = vmatprep.subr.mxu0 0.0
    %263 = vmatpush1.msra.mxu0 0.0
    %264 = vmatprep.subr.mxu0 0.0
    %265 = vmatpush1.msra.mxu0 0.0
    %266 = vmatprep.subr.mxu0 0.0
    %267 = vmatpush1.msra.mxu0 0.0
    %268 = vmatprep.subr.mxu0 0.0
    %269 = vmatpush1.msra.mxu0 %v242
    %270 = vmatprep.subr.mxu0 0.0
    %271 = vmatpush1.msra.mxu0 %v81
    %272 = vmatprep.subr.mxu0 0.0
    %273 = vmatpush1.msra.mxu0 %v80
    %274 = vmatprep.subr.mxu0 0.0
    %275 = vmatpush1.msra.mxu0 %v79
    %276 = vmatprep.subr.mxu0 0.0
    %277 = vmatpush2.msra.mxu0 0.0
    %278 = vmatprep.subr.mxu0 0.0
    %279 = vmatpush2.msra.mxu0 0.0
    %280 = vmatprep.subr.mxu0 0.0
    %281 = vmatpush2.msra.mxu0 0.0
    %282 = vmatprep.subr.mxu0 0.0
    %283 = vmatpush2.msra.mxu0 0.0
    %284 = vmatprep.subr.mxu0 0.0
    %285 = vmatpush2.msra.mxu0 0.0
    %286 = vmatprep.subr.mxu0 0.0
    %287 = vmatpush2.msra.mxu0 0.0
    %288 = vmatprep.subr.mxu0 0.0
    %289 = vmatpush2.msra.mxu0 0.0
    %290 = vmatprep.subr.mxu0 0.0
    %291 = vmatpush2.msra.mxu0 0.0
    %292 = vmatprep.subr.mxu0 0.0
    %293 = vmatpush2.msra.mxu0 0.0
    %294 = vmatprep.subr.mxu0 0.0
    %295 = vmatpush2.msra.mxu0 0.0
    %296 = vmatprep.subr.mxu0 0.0
    %297 = vmatpush2.msra.mxu0 0.0
    %298 = vmatprep.subr.mxu0 0.0
    %299 = vmatpush2.msra.mxu0 0.0
    %300 = vmatprep.subr.mxu0 0.0
    %301 = vmatpush2.msra.mxu0 0.0
    %302 = vmatprep.subr.mxu0 0.0
    %303 = vmatpush2.msra.mxu0 0.0
    %304 = vmatprep.subr.mxu0 0.0
    %305 = vmatpush2.msra.mxu0 0.0
    %306 = vmatprep.subr.mxu0 0.0
    %307 = vmatpush2.msra.mxu0 0.0
    %308 = vmatprep.mubr.f32.mxu0 0.0
    %309 = vmatmul.mubr.f32.gmra.mxu0 %v221
    %v310 = vpop.f32.mrf.mxu0
    %v311 = vadd.f32 %v187, %v310
    %v312 = vpop.f32.mrf.mxu0
    %313 = vmatprep.mubr.f32.mxu0 0.0
    %314 = vmatmul.mubr.f32.gmra.mxu0 %v224
    %v315 = vpop.f32.mrf.mxu0
    %v316 = vadd.f32 %v192, %v315
    %v317 = vpop.f32.mrf.mxu0
    %318 = vmatprep.mubr.f32.mxu0 0.0
    %319 = vmatmul.mubr.f32.gmra.mxu0 %v227
    %v320 = vpop.f32.mrf.mxu0
    %v321 = vadd.f32 %v197, %v320
    %v322 = vpop.f32.mrf.mxu0
    %323 = vmatprep.mubr.f32.mxu0 0.0
    %324 = vmatmul.mubr.f32.gmra.mxu0 %v230
    %v325 = vpop.f32.mrf.mxu0
    %v326 = vadd.f32 %v202, %v325
    %v327 = vpop.f32.mrf.mxu0
    %328 = vmatprep.mubr.f32.mxu0 0.0
    %329 = vmatmul.mubr.f32.gmra.mxu0 %v233
    %v330 = vpop.f32.mrf.mxu0
    %v331 = vadd.f32 %v207, %v330
    %v332 = vpop.f32.mrf.mxu0
    %333 = vmatprep.mubr.f32.mxu0 0.0
    %334 = vmatmul.mubr.f32.gmra.mxu0 %v236
    %v335 = vpop.f32.mrf.mxu0
    %v336 = vadd.f32 %v212, %v335
    %v337 = vpop.f32.mrf.mxu0
    %338 = vmatprep.mubr.f32.mxu0 0.0
    %339 = vmatmul.mubr.f32.gmra.mxu0 %v239
    %v340 = vpop.f32.mrf.mxu0
    %v341 = vadd.f32 %v217, %v340
    %v342 = vpop.f32.mrf.mxu0
    %343 = vdwg.mxu0
    %v344 = vld [vmem:[#allocation2 + $0x2] sm:$0xff]
    %v345 = vld [vmem:[#allocation2 + $0xa] sm:$0xff]
    %v346 = vld [vmem:[#allocation2 + $0x12] sm:$0xff]
    %v347 = vld [vmem:[#allocation2 + $0x1a] sm:$0xff]
    %v348 = vld [vmem:[#allocation2 + $0x22] sm:$0xff]
    %v349 = vld [vmem:[#allocation2 + $0x2a] sm:$0xff]
    %v350 = vld [vmem:[#allocation2 + $0x32] sm:$0xff]
    %s351 = scalar_lea.vmem %s1, 64
    %v352 = vld [vmem:[%s351] sm:$0xff]
    %v353 = vld [vmem:[%s351 + $0x8] sm:$0xff]
    %v354 = vld [vmem:[%s351 + $0x10] sm:$0xff]
    %v355 = vld [vmem:[%s351 + $0x18] sm:$0xf]
    %v357 = vsel %vm45, %v344, 0
    %v360 = vsel %vm45, %v345, 0
    %v363 = vsel %vm45, %v346, 0
    %v366 = vsel %vm45, %v347, 0
    %v369 = vsel %vm45, %v348, 0
    %v372 = vsel %vm45, %v349, 0
    %v375 = vsel %vm45, %v350, 0
    %v378 = vsel %vm116, %v355, 0
    %380 = vmatprep.subr.mxu0 0.0
    %381 = vmatpush1.msra.mxu0 0.0
    %382 = vmatprep.subr.mxu0 0.0
    %383 = vmatpush1.msra.mxu0 0.0
    %384 = vmatprep.subr.mxu0 0.0
    %385 = vmatpush1.msra.mxu0 0.0
    %386 = vmatprep.subr.mxu0 0.0
    %387 = vmatpush1.msra.mxu0 0.0
    %388 = vmatprep.subr.mxu0 0.0
    %389 = vmatpush1.msra.mxu0 0.0
    %390 = vmatprep.subr.mxu0 0.0
    %391 = vmatpush1.msra.mxu0 0.0
    %392 = vmatprep.subr.mxu0 0.0
    %393 = vmatpush1.msra.mxu0 0.0
    %394 = vmatprep.subr.mxu0 0.0
    %395 = vmatpush1.msra.mxu0 0.0
    %396 = vmatprep.subr.mxu0 0.0
    %397 = vmatpush1.msra.mxu0 0.0
    %398 = vmatprep.subr.mxu0 0.0
    %399 = vmatpush1.msra.mxu0 0.0
    %400 = vmatprep.subr.mxu0 0.0
    %401 = vmatpush1.msra.mxu0 0.0
    %402 = vmatprep.subr.mxu0 0.0
    %403 = vmatpush1.msra.mxu0 0.0
    %404 = vmatprep.subr.mxu0 0.0
    %405 = vmatpush1.msra.mxu0 %v378
    %406 = vmatprep.subr.mxu0 0.0
    %407 = vmatpush1.msra.mxu0 %v354
    %408 = vmatprep.subr.mxu0 0.0
    %409 = vmatpush1.msra.mxu0 %v353
    %410 = vmatprep.subr.mxu0 0.0
    %411 = vmatpush1.msra.mxu0 %v352
    %412 = vmatprep.subr.mxu0 0.0
    %413 = vmatpush2.msra.mxu0 0.0
    %414 = vmatprep.subr.mxu0 0.0
    %415 = vmatpush2.msra.mxu0 0.0
    %416 = vmatprep.subr.mxu0 0.0
    %417 = vmatpush2.msra.mxu0 0.0
    %418 = vmatprep.subr.mxu0 0.0
    %419 = vmatpush2.msra.mxu0 0.0
    %420 = vmatprep.subr.mxu0 0.0
    %421 = vmatpush2.msra.mxu0 0.0
    %422 = vmatprep.subr.mxu0 0.0
    %423 = vmatpush2.msra.mxu0 0.0
    %424 = vmatprep.subr.mxu0 0.0
    %425 = vmatpush2.msra.mxu0 0.0
    %426 = vmatprep.subr.mxu0 0.0
    %427 = vmatpush2.msra.mxu0 0.0
    %428 = vmatprep.subr.mxu0 0.0
    %429 = vmatpush2.msra.mxu0 0.0
    %430 = vmatprep.subr.mxu0 0.0
    %431 = vmatpush2.msra.mxu0 0.0
    %432 = vmatprep.subr.mxu0 0.0
    %433 = vmatpush2.msra.mxu0 0.0
    %434 = vmatprep.subr.mxu0 0.0
    %435 = vmatpush2.msra.mxu0 0.0
    %436 = vmatprep.subr.mxu0 0.0
    %437 = vmatpush2.msra.mxu0 0.0
    %438 = vmatprep.subr.mxu0 0.0
    %439 = vmatpush2.msra.mxu0 0.0
    %440 = vmatprep.subr.mxu0 0.0
    %441 = vmatpush2.msra.mxu0 0.0
    %442 = vmatprep.subr.mxu0 0.0
    %443 = vmatpush2.msra.mxu0 0.0
    %444 = vmatprep.mubr.f32.mxu0 0.0
    %445 = vmatmul.mubr.f32.gmra.mxu0 %v357
    %v446 = vpop.f32.mrf.mxu0
    %v447 = vadd.f32 0.0, %v446
    %v448 = vpop.f32.mrf.mxu0
    %449 = vmatprep.mubr.f32.mxu0 0.0
    %450 = vmatmul.mubr.f32.gmra.mxu0 %v360
    %v451 = vpop.f32.mrf.mxu0
    %v452 = vadd.f32 0.0, %v451
    %v453 = vpop.f32.mrf.mxu0
    %454 = vmatprep.mubr.f32.mxu0 0.0
    %455 = vmatmul.mubr.f32.gmra.mxu0 %v363
    %v456 = vpop.f32.mrf.mxu0
    %v457 = vadd.f32 0.0, %v456
    %v458 = vpop.f32.mrf.mxu0
    %459 = vmatprep.mubr.f32.mxu0 0.0
    %460 = vmatmul.mubr.f32.gmra.mxu0 %v366
    %v461 = vpop.f32.mrf.mxu0
    %v462 = vadd.f32 0.0, %v461
    %v463 = vpop.f32.mrf.mxu0
    %464 = vmatprep.mubr.f32.mxu0 0.0
    %465 = vmatmul.mubr.f32.gmra.mxu0 %v369
    %v466 = vpop.f32.mrf.mxu0
    %v467 = vadd.f32 0.0, %v466
    %v468 = vpop.f32.mrf.mxu0
    %469 = vmatprep.mubr.f32.mxu0 0.0
    %470 = vmatmul.mubr.f32.gmra.mxu0 %v372
    %v471 = vpop.f32.mrf.mxu0
    %v472 = vadd.f32 0.0, %v471
    %v473 = vpop.f32.mrf.mxu0
    %474 = vmatprep.mubr.f32.mxu0 0.0
    %475 = vmatmul.mubr.f32.gmra.mxu0 %v375
    %v476 = vpop.f32.mrf.mxu0
    %v477 = vadd.f32 0.0, %v476
    %v478 = vpop.f32.mrf.mxu0
    %479 = vdwg.mxu0
    %v480 = vadd.f32 %v311, %v447
    %v481 = vadd.f32 %v316, %v452
    %v482 = vadd.f32 %v321, %v457
    %v483 = vadd.f32 %v326, %v462
    %v484 = vadd.f32 %v331, %v467
    %v485 = vadd.f32 %v336, %v472
    %v486 = vadd.f32 %v341, %v477
    %v487 = vld [vmem:[#allocation2 + $0x3] sm:$0xff]
    %v488 = vld [vmem:[#allocation2 + $0xb] sm:$0xff]
    %v489 = vld [vmem:[#allocation2 + $0x13] sm:$0xff]
    %v490 = vld [vmem:[#allocation2 + $0x1b] sm:$0xff]
    %v491 = vld [vmem:[#allocation2 + $0x23] sm:$0xff]
    %v492 = vld [vmem:[#allocation2 + $0x2b] sm:$0xff]
    %v493 = vld [vmem:[#allocation2 + $0x33] sm:$0xff]
    %s494 = scalar_lea.vmem %s1, 96
    %v495 = vld [vmem:[%s494] sm:$0xff]
    %v496 = vld [vmem:[%s494 + $0x8] sm:$0xff]
    %v497 = vld [vmem:[%s494 + $0x10] sm:$0xff]
    %v498 = vld [vmem:[%s494 + $0x18] sm:$0xf]
    %v500 = vsel %vm45, %v487, 0
    %v503 = vsel %vm45, %v488, 0
    %v506 = vsel %vm45, %v489, 0
    %v509 = vsel %vm45, %v490, 0
    %v512 = vsel %vm45, %v491, 0
    %v515 = vsel %vm45, %v492, 0
    %v518 = vsel %vm45, %v493, 0
    %v521 = vsel %vm116, %v498, 0
    %523 = vmatprep.subr.mxu0 0.0
    %524 = vmatpush1.msra.mxu0 0.0
    %525 = vmatprep.subr.mxu0 0.0
    %526 = vmatpush1.msra.mxu0 0.0
    %527 = vmatprep.subr.mxu0 0.0
    %528 = vmatpush1.msra.mxu0 0.0
    %529 = vmatprep.subr.mxu0 0.0
    %530 = vmatpush1.msra.mxu0 0.0
    %531 = vmatprep.subr.mxu0 0.0
    %532 = vmatpush1.msra.mxu0 0.0
    %533 = vmatprep.subr.mxu0 0.0
    %534 = vmatpush1.msra.mxu0 0.0
    %535 = vmatprep.subr.mxu0 0.0
    %536 = vmatpush1.msra.mxu0 0.0
    %537 = vmatprep.subr.mxu0 0.0
    %538 = vmatpush1.msra.mxu0 0.0
    %539 = vmatprep.subr.mxu0 0.0
    %540 = vmatpush1.msra.mxu0 0.0
    %541 = vmatprep.subr.mxu0 0.0
    %542 = vmatpush1.msra.mxu0 0.0
    %543 = vmatprep.subr.mxu0 0.0
    %544 = vmatpush1.msra.mxu0 0.0
    %545 = vmatprep.subr.mxu0 0.0
    %546 = vmatpush1.msra.mxu0 0.0
    %547 = vmatprep.subr.mxu0 0.0
    %548 = vmatpush1.msra.mxu0 %v521
    %549 = vmatprep.subr.mxu0 0.0
    %550 = vmatpush1.msra.mxu0 %v497
    %551 = vmatprep.subr.mxu0 0.0
    %552 = vmatpush1.msra.mxu0 %v496
    %553 = vmatprep.subr.mxu0 0.0
    %554 = vmatpush1.msra.mxu0 %v495
    %555 = vmatprep.subr.mxu0 0.0
    %556 = vmatpush2.msra.mxu0 0.0
    %557 = vmatprep.subr.mxu0 0.0
    %558 = vmatpush2.msra.mxu0 0.0
    %559 = vmatprep.subr.mxu0 0.0
    %560 = vmatpush2.msra.mxu0 0.0
    %561 = vmatprep.subr.mxu0 0.0
    %562 = vmatpush2.msra.mxu0 0.0
    %563 = vmatprep.subr.mxu0 0.0
    %564 = vmatpush2.msra.mxu0 0.0
    %565 = vmatprep.subr.mxu0 0.0
    %566 = vmatpush2.msra.mxu0 0.0
    %567 = vmatprep.subr.mxu0 0.0
    %568 = vmatpush2.msra.mxu0 0.0
    %569 = vmatprep.subr.mxu0 0.0
    %570 = vmatpush2.msra.mxu0 0.0
    %571 = vmatprep.subr.mxu0 0.0
    %572 = vmatpush2.msra.mxu0 0.0
    %573 = vmatprep.subr.mxu0 0.0
    %574 = vmatpush2.msra.mxu0 0.0
    %575 = vmatprep.subr.mxu0 0.0
    %576 = vmatpush2.msra.mxu0 0.0
    %577 = vmatprep.subr.mxu0 0.0
    %578 = vmatpush2.msra.mxu0 0.0
    %579 = vmatprep.subr.mxu0 0.0
    %580 = vmatpush2.msra.mxu0 0.0
    %581 = vmatprep.subr.mxu0 0.0
    %582 = vmatpush2.msra.mxu0 0.0
    %583 = vmatprep.subr.mxu0 0.0
    %584 = vmatpush2.msra.mxu0 0.0
    %585 = vmatprep.subr.mxu0 0.0
    %586 = vmatpush2.msra.mxu0 0.0
    %587 = vmatprep.mubr.f32.mxu0 0.0
    %588 = vmatmul.mubr.f32.gmra.mxu0 %v500
    %v589 = vpop.f32.mrf.mxu0
    %v590 = vadd.f32 0.0, %v589
    %v591 = vpop.f32.mrf.mxu0
    %592 = vmatprep.mubr.f32.mxu0 0.0
    %593 = vmatmul.mubr.f32.gmra.mxu0 %v503
    %v594 = vpop.f32.mrf.mxu0
    %v595 = vadd.f32 0.0, %v594
    %v596 = vpop.f32.mrf.mxu0
    %597 = vmatprep.mubr.f32.mxu0 0.0
    %598 = vmatmul.mubr.f32.gmra.mxu0 %v506
    %v599 = vpop.f32.mrf.mxu0
    %v600 = vadd.f32 0.0, %v599
    %v601 = vpop.f32.mrf.mxu0
    %602 = vmatprep.mubr.f32.mxu0 0.0
    %603 = vmatmul.mubr.f32.gmra.mxu0 %v509
    %v604 = vpop.f32.mrf.mxu0
    %v605 = vadd.f32 0.0, %v604
    %v606 = vpop.f32.mrf.mxu0
    %607 = vmatprep.mubr.f32.mxu0 0.0
    %608 = vmatmul.mubr.f32.gmra.mxu0 %v512
    %v609 = vpop.f32.mrf.mxu0
    %v610 = vadd.f32 0.0, %v609
    %v611 = vpop.f32.mrf.mxu0
    %612 = vmatprep.mubr.f32.mxu0 0.0
    %613 = vmatmul.mubr.f32.gmra.mxu0 %v515
    %v614 = vpop.f32.mrf.mxu0
    %v615 = vadd.f32 0.0, %v614
    %v616 = vpop.f32.mrf.mxu0
    %617 = vmatprep.mubr.f32.mxu0 0.0
    %618 = vmatmul.mubr.f32.gmra.mxu0 %v518
    %v619 = vpop.f32.mrf.mxu0
    %v620 = vadd.f32 0.0, %v619
    %v621 = vpop.f32.mrf.mxu0
    %622 = vdwg.mxu0
    %v623 = vadd.f32 %v480, %v590
    %v624 = vadd.f32 %v481, %v595
    %v625 = vadd.f32 %v482, %v600
    %v626 = vadd.f32 %v483, %v605
    %v627 = vadd.f32 %v484, %v610
    %v628 = vadd.f32 %v485, %v615
    %v629 = vadd.f32 %v486, %v620
    %v630 = vld [vmem:[#allocation2 + $0x4] sm:$0xff]
    %v631 = vld [vmem:[#allocation2 + $0xc] sm:$0xff]
    %v632 = vld [vmem:[#allocation2 + $0x14] sm:$0xff]
    %v633 = vld [vmem:[#allocation2 + $0x1c] sm:$0xff]
    %v634 = vld [vmem:[#allocation2 + $0x24] sm:$0xff]
    %v635 = vld [vmem:[#allocation2 + $0x2c] sm:$0xff]
    %v636 = vld [vmem:[#allocation2 + $0x34] sm:$0xff]
    %s637 = scalar_lea.vmem %s1, 128
    %v638 = vld [vmem:[%s637] sm:$0xff]
    %v639 = vld [vmem:[%s637 + $0x8] sm:$0xff]
    %v640 = vld [vmem:[%s637 + $0x10] sm:$0xff]
    %v641 = vld [vmem:[%s637 + $0x18] sm:$0xf]
    %v643 = vsel %vm45, %v630, 0
    %v646 = vsel %vm45, %v631, 0
    %v649 = vsel %vm45, %v632, 0
    %v652 = vsel %vm45, %v633, 0
    %v655 = vsel %vm45, %v634, 0
    %v658 = vsel %vm45, %v635, 0
    %v661 = vsel %vm45, %v636, 0
    %v664 = vsel %vm116, %v641, 0
    %666 = vmatprep.subr.mxu0 0.0
    %667 = vmatpush1.msra.mxu0 0.0
    %668 = vmatprep.subr.mxu0 0.0
    %669 = vmatpush1.msra.mxu0 0.0
    %670 = vmatprep.subr.mxu0 0.0
    %671 = vmatpush1.msra.mxu0 0.0
    %672 = vmatprep.subr.mxu0 0.0
    %673 = vmatpush1.msra.mxu0 0.0
    %674 = vmatprep.subr.mxu0 0.0
    %675 = vmatpush1.msra.mxu0 0.0
    %676 = vmatprep.subr.mxu0 0.0
    %677 = vmatpush1.msra.mxu0 0.0
    %678 = vmatprep.subr.mxu0 0.0
    %679 = vmatpush1.msra.mxu0 0.0
    %680 = vmatprep.subr.mxu0 0.0
    %681 = vmatpush1.msra.mxu0 0.0
    %682 = vmatprep.subr.mxu0 0.0
    %683 = vmatpush1.msra.mxu0 0.0
    %684 = vmatprep.subr.mxu0 0.0
    %685 = vmatpush1.msra.mxu0 0.0
    %686 = vmatprep.subr.mxu0 0.0
    %687 = vmatpush1.msra.mxu0 0.0
    %688 = vmatprep.subr.mxu0 0.0
    %689 = vmatpush1.msra.mxu0 0.0
    %690 = vmatprep.subr.mxu0 0.0
    %691 = vmatpush1.msra.mxu0 %v664
    %692 = vmatprep.subr.mxu0 0.0
    %693 = vmatpush1.msra.mxu0 %v640
    %694 = vmatprep.subr.mxu0 0.0
    %695 = vmatpush1.msra.mxu0 %v639
    %696 = vmatprep.subr.mxu0 0.0
    %697 = vmatpush1.msra.mxu0 %v638
    %698 = vmatprep.subr.mxu0 0.0
    %699 = vmatpush2.msra.mxu0 0.0
    %700 = vmatprep.subr.mxu0 0.0
    %701 = vmatpush2.msra.mxu0 0.0
    %702 = vmatprep.subr.mxu0 0.0
    %703 = vmatpush2.msra.mxu0 0.0
    %704 = vmatprep.subr.mxu0 0.0
    %705 = vmatpush2.msra.mxu0 0.0
    %706 = vmatprep.subr.mxu0 0.0
    %707 = vmatpush2.msra.mxu0 0.0
    %708 = vmatprep.subr.mxu0 0.0
    %709 = vmatpush2.msra.mxu0 0.0
    %710 = vmatprep.subr.mxu0 0.0
    %711 = vmatpush2.msra.mxu0 0.0
    %712 = vmatprep.subr.mxu0 0.0
    %713 = vmatpush2.msra.mxu0 0.0
    %714 = vmatprep.subr.mxu0 0.0
    %715 = vmatpush2.msra.mxu0 0.0
    %716 = vmatprep.subr.mxu0 0.0
    %717 = vmatpush2.msra.mxu0 0.0
    %718 = vmatprep.subr.mxu0 0.0
    %719 = vmatpush2.msra.mxu0 0.0
    %720 = vmatprep.subr.mxu0 0.0
    %721 = vmatpush2.msra.mxu0 0.0
    %722 = vmatprep.subr.mxu0 0.0
    %723 = vmatpush2.msra.mxu0 0.0
    %724 = vmatprep.subr.mxu0 0.0
    %725 = vmatpush2.msra.mxu0 0.0
    %726 = vmatprep.subr.mxu0 0.0
    %727 = vmatpush2.msra.mxu0 0.0
    %728 = vmatprep.subr.mxu0 0.0
    %729 = vmatpush2.msra.mxu0 0.0
    %730 = vmatprep.mubr.f32.mxu0 0.0
    %731 = vmatmul.mubr.f32.gmra.mxu0 %v643
    %v732 = vpop.f32.mrf.mxu0
    %v733 = vadd.f32 0.0, %v732
    %v734 = vpop.f32.mrf.mxu0
    %735 = vmatprep.mubr.f32.mxu0 0.0
    %736 = vmatmul.mubr.f32.gmra.mxu0 %v646
    %v737 = vpop.f32.mrf.mxu0
    %v738 = vadd.f32 0.0, %v737
    %v739 = vpop.f32.mrf.mxu0
    %740 = vmatprep.mubr.f32.mxu0 0.0
    %741 = vmatmul.mubr.f32.gmra.mxu0 %v649
    %v742 = vpop.f32.mrf.mxu0
    %v743 = vadd.f32 0.0, %v742
    %v744 = vpop.f32.mrf.mxu0
    %745 = vmatprep.mubr.f32.mxu0 0.0
    %746 = vmatmul.mubr.f32.gmra.mxu0 %v652
    %v747 = vpop.f32.mrf.mxu0
    %v748 = vadd.f32 0.0, %v747
    %v749 = vpop.f32.mrf.mxu0
    %750 = vmatprep.mubr.f32.mxu0 0.0
    %751 = vmatmul.mubr.f32.gmra.mxu0 %v655
    %v752 = vpop.f32.mrf.mxu0
    %v753 = vadd.f32 0.0, %v752
    %v754 = vpop.f32.mrf.mxu0
    %755 = vmatprep.mubr.f32.mxu0 0.0
    %756 = vmatmul.mubr.f32.gmra.mxu0 %v658
    %v757 = vpop.f32.mrf.mxu0
    %v758 = vadd.f32 0.0, %v757
    %v759 = vpop.f32.mrf.mxu0
    %760 = vmatprep.mubr.f32.mxu0 0.0
    %761 = vmatmul.mubr.f32.gmra.mxu0 %v661
    %v762 = vpop.f32.mrf.mxu0
    %v763 = vadd.f32 0.0, %v762
    %v764 = vpop.f32.mrf.mxu0
    %765 = vdwg.mxu0
    %v766 = vadd.f32 %v623, %v733
    %v767 = vadd.f32 %v624, %v738
    %v768 = vadd.f32 %v625, %v743
    %v769 = vadd.f32 %v626, %v748
    %v770 = vadd.f32 %v627, %v753
    %v771 = vadd.f32 %v628, %v758
    %v772 = vadd.f32 %v629, %v763
    %v773 = vmax.f32 %v766, 0.0
    %v774 = vmax.f32 %v767, 0.0
    %v775 = vmax.f32 %v768, 0.0
    %v776 = vmax.f32 %v769, 0.0
    %v777 = vmax.f32 %v770, 0.0
    %v778 = vmax.f32 %v771, 0.0
    %v779 = vmax.f32 %v772, 0.0
    %v780 = vld [vmem:[%s2] sm:$0xff]
    %v781 = vld [vmem:[%s2 + $0x8] sm:$0xff]
    %v782 = vld [vmem:[%s2 + $0x10] sm:$0xff]
    %v783 = vld [vmem:[%s2 + $0x18] sm:$0xff]
    %vm784 = vcmask 457728
    %v786 = vsel %vm784, %v780, 0
    %v789 = vsel %vm784, %v781, 0
    %v792 = vsel %vm784, %v782, 0
    %v795 = vsel %vm784, %v783, 0
    %797 = vmatprep.subr.mxu0 0.0
    %798 = vmatpush1.msra.mxu0 0.0
    %799 = vmatprep.subr.mxu0 0.0
    %800 = vmatpush1.msra.mxu0 0.0
    %801 = vmatprep.subr.mxu0 0.0
    %802 = vmatpush1.msra.mxu0 0.0
    %803 = vmatprep.subr.mxu0 0.0
    %804 = vmatpush1.msra.mxu0 0.0
    %805 = vmatprep.subr.mxu0 0.0
    %806 = vmatpush1.msra.mxu0 0.0
    %807 = vmatprep.subr.mxu0 0.0
    %808 = vmatpush1.msra.mxu0 0.0
    %809 = vmatprep.subr.mxu0 0.0
    %810 = vmatpush1.msra.mxu0 0.0
    %811 = vmatprep.subr.mxu0 0.0
    %812 = vmatpush1.msra.mxu0 0.0
    %813 = vmatprep.subr.mxu0 0.0
    %814 = vmatpush1.msra.mxu0 0.0
    %815 = vmatprep.subr.mxu0 0.0
    %816 = vmatpush1.msra.mxu0 %v779
    %817 = vmatprep.subr.mxu0 0.0
    %818 = vmatpush1.msra.mxu0 %v778
    %819 = vmatprep.subr.mxu0 0.0
    %820 = vmatpush1.msra.mxu0 %v777
    %821 = vmatprep.subr.mxu0 0.0
    %822 = vmatpush1.msra.mxu0 %v776
    %823 = vmatprep.subr.mxu0 0.0
    %824 = vmatpush1.msra.mxu0 %v775
    %825 = vmatprep.subr.mxu0 0.0
    %826 = vmatpush1.msra.mxu0 %v774
    %827 = vmatprep.subr.mxu0 0.0
    %828 = vmatpush1.msra.mxu0 %v773
    %829 = vmatprep.subr.mxu0 0.0
    %830 = vmatpush2.msra.mxu0 0.0
    %831 = vmatprep.subr.mxu0 0.0
    %832 = vmatpush2.msra.mxu0 0.0
    %833 = vmatprep.subr.mxu0 0.0
    %834 = vmatpush2.msra.mxu0 0.0
    %835 = vmatprep.subr.mxu0 0.0
    %836 = vmatpush2.msra.mxu0 0.0
    %837 = vmatprep.subr.mxu0 0.0
    %838 = vmatpush2.msra.mxu0 0.0
    %839 = vmatprep.subr.mxu0 0.0
    %840 = vmatpush2.msra.mxu0 0.0
    %841 = vmatprep.subr.mxu0 0.0
    %842 = vmatpush2.msra.mxu0 0.0
    %843 = vmatprep.subr.mxu0 0.0
    %844 = vmatpush2.msra.mxu0 0.0
    %845 = vmatprep.subr.mxu0 0.0
    %846 = vmatpush2.msra.mxu0 0.0
    %847 = vmatprep.subr.mxu0 0.0
    %848 = vmatpush2.msra.mxu0 0.0
    %849 = vmatprep.subr.mxu0 0.0
    %850 = vmatpush2.msra.mxu0 0.0
    %851 = vmatprep.subr.mxu0 0.0
    %852 = vmatpush2.msra.mxu0 0.0
    %853 = vmatprep.subr.mxu0 0.0
    %854 = vmatpush2.msra.mxu0 0.0
    %855 = vmatprep.subr.mxu0 0.0
    %856 = vmatpush2.msra.mxu0 0.0
    %857 = vmatprep.subr.mxu0 0.0
    %858 = vmatpush2.msra.mxu0 0.0
    %859 = vmatprep.subr.mxu0 0.0
    %860 = vmatpush2.msra.mxu0 0.0
    %861 = vmatprep.mubr.f32.mxu0 0.0
    %862 = vmatmul.mubr.f32.gmra.mxu0 %v786
    %v863 = vpop.f32.mrf.mxu0
    %v864 = vadd.f32 0.0, %v863
    %v865 = vpop.f32.mrf.mxu0
    %866 = vmatprep.mubr.f32.mxu0 0.0
    %867 = vmatmul.mubr.f32.gmra.mxu0 %v789
    %v868 = vpop.f32.mrf.mxu0
    %v869 = vadd.f32 0.0, %v868
    %v870 = vpop.f32.mrf.mxu0
    %871 = vmatprep.mubr.f32.mxu0 0.0
    %872 = vmatmul.mubr.f32.gmra.mxu0 %v792
    %v873 = vpop.f32.mrf.mxu0
    %v874 = vadd.f32 0.0, %v873
    %v875 = vpop.f32.mrf.mxu0
    %876 = vmatprep.mubr.f32.mxu0 0.0
    %877 = vmatmul.mubr.f32.gmra.mxu0 %v795
    %v878 = vpop.f32.mrf.mxu0
    %v879 = vadd.f32 0.0, %v878
    %v880 = vpop.f32.mrf.mxu0
    %881 = vdwg.mxu0
    %v882 = vld [vmem:[%s3] sm:$0xff]
    %v883 = vld [vmem:[%s3 + $0x8] sm:$0xff]
    %v884 = vld [vmem:[%s3 + $0x10] sm:$0xff]
    %v885 = vld [vmem:[%s3 + $0x18] sm:$0xff]
    %v887 = vsel %vm784, %v882, 0
    %v890 = vsel %vm784, %v883, 0
    %v893 = vsel %vm784, %v884, 0
    %v896 = vsel %vm784, %v885, 0
    %898 = vmatprep.subr.mxu0 0.0
    %899 = vmatpush1.msra.mxu0 0.0
    %900 = vmatprep.subr.mxu0 0.0
    %901 = vmatpush1.msra.mxu0 0.0
    %902 = vmatprep.subr.mxu0 0.0
    %903 = vmatpush1.msra.mxu0 0.0
    %904 = vmatprep.subr.mxu0 0.0
    %905 = vmatpush1.msra.mxu0 0.0
    %906 = vmatprep.subr.mxu0 0.0
    %907 = vmatpush1.msra.mxu0 0.0
    %908 = vmatprep.subr.mxu0 0.0
    %909 = vmatpush1.msra.mxu0 0.0
    %910 = vmatprep.subr.mxu0 0.0
    %911 = vmatpush1.msra.mxu0 0.0
    %912 = vmatprep.subr.mxu0 0.0
    %913 = vmatpush1.msra.mxu0 0.0
    %914 = vmatprep.subr.mxu0 0.0
    %915 = vmatpush1.msra.mxu0 0.0
    %916 = vmatprep.subr.mxu0 0.0
    %917 = vmatpush1.msra.mxu0 %v779
    %918 = vmatprep.subr.mxu0 0.0
    %919 = vmatpush1.msra.mxu0 %v778
    %920 = vmatprep.subr.mxu0 0.0
    %921 = vmatpush1.msra.mxu0 %v777
    %922 = vmatprep.subr.mxu0 0.0
    %923 = vmatpush1.msra.mxu0 %v776
    %924 = vmatprep.subr.mxu0 0.0
    %925 = vmatpush1.msra.mxu0 %v775
    %926 = vmatprep.subr.mxu0 0.0
    %927 = vmatpush1.msra.mxu0 %v774
    %928 = vmatprep.subr.mxu0 0.0
    %929 = vmatpush1.msra.mxu0 %v773
    %930 = vmatprep.subr.mxu0 0.0
    %931 = vmatpush2.msra.mxu0 0.0
    %932 = vmatprep.subr.mxu0 0.0
    %933 = vmatpush2.msra.mxu0 0.0
    %934 = vmatprep.subr.mxu0 0.0
    %935 = vmatpush2.msra.mxu0 0.0
    %936 = vmatprep.subr.mxu0 0.0
    %937 = vmatpush2.msra.mxu0 0.0
    %938 = vmatprep.subr.mxu0 0.0
    %939 = vmatpush2.msra.mxu0 0.0
    %940 = vmatprep.subr.mxu0 0.0
    %941 = vmatpush2.msra.mxu0 0.0
    %942 = vmatprep.subr.mxu0 0.0
    %943 = vmatpush2.msra.mxu0 0.0
    %944 = vmatprep.subr.mxu0 0.0
    %945 = vmatpush2.msra.mxu0 0.0
    %946 = vmatprep.subr.mxu0 0.0
    %947 = vmatpush2.msra.mxu0 0.0
    %948 = vmatprep.subr.mxu0 0.0
    %949 = vmatpush2.msra.mxu0 0.0
    %950 = vmatprep.subr.mxu0 0.0
    %951 = vmatpush2.msra.mxu0 0.0
    %952 = vmatprep.subr.mxu0 0.0
    %953 = vmatpush2.msra.mxu0 0.0
    %954 = vmatprep.subr.mxu0 0.0
    %955 = vmatpush2.msra.mxu0 0.0
    %956 = vmatprep.subr.mxu0 0.0
    %957 = vmatpush2.msra.mxu0 0.0
    %958 = vmatprep.subr.mxu0 0.0
    %959 = vmatpush2.msra.mxu0 0.0
    %960 = vmatprep.subr.mxu0 0.0
    %961 = vmatpush2.msra.mxu0 0.0
    %962 = vmatprep.mubr.f32.mxu0 0.0
    %963 = vmatmul.mubr.f32.gmra.mxu0 %v887
    %v964 = vpop.f32.mrf.mxu0
    %v965 = vadd.f32 0.0, %v964
    %v966 = vpop.f32.mrf.mxu0
    %967 = vmatprep.mubr.f32.mxu0 0.0
    %968 = vmatmul.mubr.f32.gmra.mxu0 %v890
    %v969 = vpop.f32.mrf.mxu0
    %v970 = vadd.f32 0.0, %v969
    %v971 = vpop.f32.mrf.mxu0
    %972 = vmatprep.mubr.f32.mxu0 0.0
    %973 = vmatmul.mubr.f32.gmra.mxu0 %v893
    %v974 = vpop.f32.mrf.mxu0
    %v975 = vadd.f32 0.0, %v974
    %v976 = vpop.f32.mrf.mxu0
    %977 = vmatprep.mubr.f32.mxu0 0.0
    %978 = vmatmul.mubr.f32.gmra.mxu0 %v896
    %v979 = vpop.f32.mrf.mxu0
    %v980 = vadd.f32 0.0, %v979
    %v981 = vpop.f32.mrf.mxu0
    %982 = vdwg.mxu0
    %v983 = vmax.f32 %v864, %v965
    %v984 = vmax.f32 %v869, %v970
    %v985 = vmax.f32 %v874, %v975
    %v986 = vmax.f32 %v879, %v980
    %v987 = vld [vmem:[%s4] sm:$0xff]
    %v988 = vld [vmem:[%s4 + $0x8] sm:$0xff]
    %v989 = vld [vmem:[%s4 + $0x10] sm:$0xff]
    %v990 = vld [vmem:[%s4 + $0x18] sm:$0xff]
    %v991 = vld [vmem:[%s4 + $0x20] sm:$0xff]
    %v992 = vld [vmem:[%s4 + $0x28] sm:$0xff]
    %v993 = vld [vmem:[%s4 + $0x30] sm:$0xff]
    %v994 = vld [vmem:[%s4 + $0x38] sm:$0xff]
    %v995 = vld [vmem:[%s4 + $0x40] sm:$0xff]
    %v996 = vld [vmem:[%s4 + $0x48] sm:$0xff]
    %v997 = vld [vmem:[%s4 + $0x50] sm:$0xff]
    %v998 = vld [vmem:[%s4 + $0x58] sm:$0xff]
    %v999 = vld [vmem:[%s4 + $0x60] sm:$0xff]
    %vm1000 = vcmask 850944
    %v1002 = vsel %vm1000, %v983, 0
    %v1005 = vsel %vm1000, %v984, 0
    %v1008 = vsel %vm1000, %v985, 0
    %v1011 = vsel %vm1000, %v986, 0
    %1013 = vmatprep.subr.mxu0 0.0
    %1014 = vmatpush1.msra.mxu0 0.0
    %1015 = vmatprep.subr.mxu0 0.0
    %1016 = vmatpush1.msra.mxu0 0.0
    %1017 = vmatprep.subr.mxu0 0.0
    %1018 = vmatpush1.msra.mxu0 0.0
    %1019 = vmatprep.subr.mxu0 0.0
    %1020 = vmatpush1.msra.mxu0 %v999
    %1021 = vmatprep.subr.mxu0 0.0
    %1022 = vmatpush1.msra.mxu0 %v998
    %1023 = vmatprep.subr.mxu0 0.0
    %1024 = vmatpush1.msra.mxu0 %v997
    %1025 = vmatprep.subr.mxu0 0.0
    %1026 = vmatpush1.msra.mxu0 %v996
    %1027 = vmatprep.subr.mxu0 0.0
    %1028 = vmatpush1.msra.mxu0 %v995
    %1029 = vmatprep.subr.mxu0 0.0
    %1030 = vmatpush1.msra.mxu0 %v994
    %1031 = vmatprep.subr.mxu0 0.0
    %1032 = vmatpush1.msra.mxu0 %v993
    %1033 = vmatprep.subr.mxu0 0.0
    %1034 = vmatpush1.msra.mxu0 %v992
    %1035 = vmatprep.subr.mxu0 0.0
    %1036 = vmatpush1.msra.mxu0 %v991
    %1037 = vmatprep.subr.mxu0 0.0
    %1038 = vmatpush1.msra.mxu0 %v990
    %1039 = vmatprep.subr.mxu0 0.0
    %1040 = vmatpush1.msra.mxu0 %v989
    %1041 = vmatprep.subr.mxu0 0.0
    %1042 = vmatpush1.msra.mxu0 %v988
    %1043 = vmatprep.subr.mxu0 0.0
    %1044 = vmatpush1.msra.mxu0 %v987
    %1045 = vmatprep.subr.mxu0 0.0
    %1046 = vmatpush2.msra.mxu0 0.0
    %1047 = vmatprep.subr.mxu0 0.0
    %1048 = vmatpush2.msra.mxu0 0.0
    %1049 = vmatprep.subr.mxu0 0.0
    %1050 = vmatpush2.msra.mxu0 0.0
    %1051 = vmatprep.subr.mxu0 0.0
    %1052 = vmatpush2.msra.mxu0 0.0
    %1053 = vmatprep.subr.mxu0 0.0
    %1054 = vmatpush2.msra.mxu0 0.0
    %1055 = vmatprep.subr.mxu0 0.0
    %1056 = vmatpush2.msra.mxu0 0.0
    %1057 = vmatprep.subr.mxu0 0.0
    %1058 = vmatpush2.msra.mxu0 0.0
    %1059 = vmatprep.subr.mxu0 0.0
    %1060 = vmatpush2.msra.mxu0 0.0
    %1061 = vmatprep.subr.mxu0 0.0
    %1062 = vmatpush2.msra.mxu0 0.0
    %1063 = vmatprep.subr.mxu0 0.0
    %1064 = vmatpush2.msra.mxu0 0.0
    %1065 = vmatprep.subr.mxu0 0.0
    %1066 = vmatpush2.msra.mxu0 0.0
    %1067 = vmatprep.subr.mxu0 0.0
    %1068 = vmatpush2.msra.mxu0 0.0
    %1069 = vmatprep.subr.mxu0 0.0
    %1070 = vmatpush2.msra.mxu0 0.0
    %1071 = vmatprep.subr.mxu0 0.0
    %1072 = vmatpush2.msra.mxu0 0.0
    %1073 = vmatprep.subr.mxu0 0.0
    %1074 = vmatpush2.msra.mxu0 0.0
    %1075 = vmatprep.subr.mxu0 0.0
    %1076 = vmatpush2.msra.mxu0 0.0
    %1077 = vmatprep.mubr.f32.mxu0 0.0
    %1078 = vmatmul.mubr.f32.gmra.mxu0 %v1002
    %v1079 = vpop.f32.mrf.mxu0
    %v1080 = vadd.f32 0.0, %v1079
    %v1081 = vpop.f32.mrf.mxu0
    %1082 = vmatprep.mubr.f32.mxu0 0.0
    %1083 = vmatmul.mubr.f32.gmra.mxu0 %v1005
    %v1084 = vpop.f32.mrf.mxu0
    %v1085 = vadd.f32 0.0, %v1084
    %v1086 = vpop.f32.mrf.mxu0
    %1087 = vmatprep.mubr.f32.mxu0 0.0
    %1088 = vmatmul.mubr.f32.gmra.mxu0 %v1008
    %v1089 = vpop.f32.mrf.mxu0
    %v1090 = vadd.f32 0.0, %v1089
    %v1091 = vpop.f32.mrf.mxu0
    %1092 = vmatprep.mubr.f32.mxu0 0.0
    %1093 = vmatmul.mubr.f32.gmra.mxu0 %v1011
    %v1094 = vpop.f32.mrf.mxu0
    %v1095 = vadd.f32 0.0, %v1094
    %v1096 = vpop.f32.mrf.mxu0
    %1097 = vdwg.mxu0
    %v1098 = vld [vmem:[%s5] sm:$0xff]
    %v1099 = vld [vmem:[%s5 + $0x8] sm:$0xff]
    %v1100 = vld [vmem:[%s5 + $0x10] sm:$0xff]
    %v1101 = vld [vmem:[%s5 + $0x18] sm:$0xff]
    %v1102 = vld [vmem:[%s5 + $0x20] sm:$0xff]
    %v1103 = vld [vmem:[%s5 + $0x28] sm:$0xff]
    %v1104 = vld [vmem:[%s5 + $0x30] sm:$0xff]
    %v1105 = vld [vmem:[%s5 + $0x38] sm:$0xff]
    %v1106 = vld [vmem:[%s5 + $0x40] sm:$0xff]
    %v1107 = vld [vmem:[%s5 + $0x48] sm:$0xff]
    %v1108 = vld [vmem:[%s5 + $0x50] sm:$0xff]
    %v1109 = vld [vmem:[%s5 + $0x58] sm:$0xff]
    %v1110 = vld [vmem:[%s5 + $0x60] sm:$0xff]
    %1111 = vmatprep.subr.mxu0 0.0
    %1112 = vmatpush1.msra.mxu0 0.0
    %1113 = vmatprep.subr.mxu0 0.0
    %1114 = vmatpush1.msra.mxu0 0.0
    %1115 = vmatprep.subr.mxu0 0.0
    %1116 = vmatpush1.msra.mxu0 0.0
    %1117 = vmatprep.subr.mxu0 0.0
    %1118 = vmatpush1.msra.mxu0 %v1110
    %1119 = vmatprep.subr.mxu0 0.0
    %1120 = vmatpush1.msra.mxu0 %v1109
    %1121 = vmatprep.subr.mxu0 0.0
    %1122 = vmatpush1.msra.mxu0 %v1108
    %1123 = vmatprep.subr.mxu0 0.0
    %1124 = vmatpush1.msra.mxu0 %v1107
    %1125 = vmatprep.subr.mxu0 0.0
    %1126 = vmatpush1.msra.mxu0 %v1106
    %1127 = vmatprep.subr.mxu0 0.0
    %1128 = vmatpush1.msra.mxu0 %v1105
    %1129 = vmatprep.subr.mxu0 0.0
    %1130 = vmatpush1.msra.mxu0 %v1104
    %1131 = vmatprep.subr.mxu0 0.0
    %1132 = vmatpush1.msra.mxu0 %v1103
    %1133 = vmatprep.subr.mxu0 0.0
    %1134 = vmatpush1.msra.mxu0 %v1102
    %1135 = vmatprep.subr.mxu0 0.0
    %1136 = vmatpush1.msra.mxu0 %v1101
    %1137 = vmatprep.subr.mxu0 0.0
    %1138 = vmatpush1.msra.mxu0 %v1100
    %1139 = vmatprep.subr.mxu0 0.0
    %1140 = vmatpush1.msra.mxu0 %v1099
    %1141 = vmatprep.subr.mxu0 0.0
    %1142 = vmatpush1.msra.mxu0 %v1098
    %1143 = vmatprep.subr.mxu0 0.0
    %1144 = vmatpush2.msra.mxu0 0.0
    %1145 = vmatprep.subr.mxu0 0.0
    %1146 = vmatpush2.msra.mxu0 0.0
    %1147 = vmatprep.subr.mxu0 0.0
    %1148 = vmatpush2.msra.mxu0 0.0
    %1149 = vmatprep.subr.mxu0 0.0
    %1150 = vmatpush2.msra.mxu0 0.0
    %1151 = vmatprep.subr.mxu0 0.0
    %1152 = vmatpush2.msra.mxu0 0.0
    %1153 = vmatprep.subr.mxu0 0.0
    %1154 = vmatpush2.msra.mxu0 0.0
    %1155 = vmatprep.subr.mxu0 0.0
    %1156 = vmatpush2.msra.mxu0 0.0
    %1157 = vmatprep.subr.mxu0 0.0
    %1158 = vmatpush2.msra.mxu0 0.0
    %1159 = vmatprep.subr.mxu0 0.0
    %1160 = vmatpush2.msra.mxu0 0.0
    %1161 = vmatprep.subr.mxu0 0.0
    %1162 = vmatpush2.msra.mxu0 0.0
    %1163 = vmatprep.subr.mxu0 0.0
    %1164 = vmatpush2.msra.mxu0 0.0
    %1165 = vmatprep.subr.mxu0 0.0
    %1166 = vmatpush2.msra.mxu0 0.0
    %1167 = vmatprep.subr.mxu0 0.0
    %1168 = vmatpush2.msra.mxu0 0.0
    %1169 = vmatprep.subr.mxu0 0.0
    %1170 = vmatpush2.msra.mxu0 0.0
    %1171 = vmatprep.subr.mxu0 0.0
    %1172 = vmatpush2.msra.mxu0 0.0
    %1173 = vmatprep.subr.mxu0 0.0
    %1174 = vmatpush2.msra.mxu0 0.0
    %1175 = vmatprep.mubr.f32.mxu0 0.0
    %1176 = vmatmul.mubr.f32.gmra.mxu0 %v1002
    %v1177 = vpop.f32.mrf.mxu0
    %v1178 = vadd.f32 0.0, %v1177
    %v1179 = vpop.f32.mrf.mxu0
    %1180 = vmatprep.mubr.f32.mxu0 0.0
    %1181 = vmatmul.mubr.f32.gmra.mxu0 %v1005
    %v1182 = vpop.f32.mrf.mxu0
    %v1183 = vadd.f32 0.0, %v1182
    %v1184 = vpop.f32.mrf.mxu0
    %1185 = vmatprep.mubr.f32.mxu0 0.0
    %1186 = vmatmul.mubr.f32.gmra.mxu0 %v1008
    %v1187 = vpop.f32.mrf.mxu0
    %v1188 = vadd.f32 0.0, %v1187
    %v1189 = vpop.f32.mrf.mxu0
    %1190 = vmatprep.mubr.f32.mxu0 0.0
    %1191 = vmatmul.mubr.f32.gmra.mxu0 %v1011
    %v1192 = vpop.f32.mrf.mxu0
    %v1193 = vadd.f32 0.0, %v1192
    %v1194 = vpop.f32.mrf.mxu0
    %1195 = vdwg.mxu0
    %v1196 = vmax.f32 %v1080, %v1178
    %v1197 = vmax.f32 %v1085, %v1183
    %v1198 = vmax.f32 %v1090, %v1188
    %v1199 = vmax.f32 %v1095, %v1193
    %v1200 = vld [vmem:[%s6] sm:$0xff]
    %v1201 = vld [vmem:[%s6 + $0x8] sm:$0xff]
    %v1202 = vld [vmem:[%s6 + $0x10] sm:$0xff]
    %v1203 = vld [vmem:[%s6 + $0x18] sm:$0xff]
    %v1204 = vld [vmem:[%s6 + $0x20] sm:$0xff]
    %v1205 = vld [vmem:[%s6 + $0x28] sm:$0xff]
    %v1206 = vld [vmem:[%s6 + $0x30] sm:$0xff]
    %v1207 = vld [vmem:[%s6 + $0x38] sm:$0xff]
    %s1208 = scalar_lea.vmem %s6, 64
    %v1209 = vld [vmem:[%s1208] sm:$0xff]
    %v1210 = vld [vmem:[%s1208 + $0x8] sm:$0xff]
    %v1211 = vld [vmem:[%s1208 + $0x10] sm:$0xff]
    %v1212 = vld [vmem:[%s1208 + $0x18] sm:$0xff]
    %v1213 = vld [vmem:[%s1208 + $0x20] sm:$0xff]
    %v1214 = vld [vmem:[%s1208 + $0x28] sm:$0xff]
    %v1215 = vld [vmem:[%s1208 + $0x30] sm:$0xff]
    %v1216 = vld [vmem:[%s1208 + $0x38] sm:$0xff]
    %vm1221 = vcmask 1046528
    %v1222 = vrot.slane %v1196, 1
    %v1223 = vrot.slane %v1197, 1
    %v1224 = vsel %vm1221, %v1222, %v1223
    %v1225 = vrot.slane %v1198, 1
    %v1226 = vsel %vm1221, %v1223, %v1225
    %v1227 = vrot.slane %v1199, 1
    %v1228 = vsel %vm1221, %v1225, %v1227
    %vm1229 = vcmask 523264
    %v1230 = vsel %vm1229, %v1224, 0
    %v1232 = vsel %vm1229, %v1226, 0
    %v1234 = vsel %vm1229, %v1228, 0
    %v1236 = vsel %vm1229, %v1227, 0
    %1238 = vmatprep.subr.mxu0 0.0
    %1239 = vmatpush1.msra.mxu0 0.0
    %1240 = vmatprep.subr.mxu0 0.0
    %1241 = vmatpush1.msra.mxu0 0.0
    %1242 = vmatprep.subr.mxu0 0.0
    %1243 = vmatpush1.msra.mxu0 0.0
    %1244 = vmatprep.subr.mxu0 0.0
    %1245 = vmatpush1.msra.mxu0 0.0
    %1246 = vmatprep.subr.mxu0 0.0
    %1247 = vmatpush1.msra.mxu0 0.0
    %1248 = vmatprep.subr.mxu0 0.0
    %1249 = vmatpush1.msra.mxu0 0.0
    %1250 = vmatprep.subr.mxu0 0.0
    %1251 = vmatpush1.msra.mxu0 0.0
    %1252 = vmatprep.subr.mxu0 0.0
    %1253 = vmatpush1.msra.mxu0 0.0
    %1254 = vmatprep.subr.mxu0 0.0
    %1255 = vmatpush1.msra.mxu0 %v1216
    %1256 = vmatprep.subr.mxu0 0.0
    %1257 = vmatpush1.msra.mxu0 %v1215
    %1258 = vmatprep.subr.mxu0 0.0
    %1259 = vmatpush1.msra.mxu0 %v1214
    %1260 = vmatprep.subr.mxu0 0.0
    %1261 = vmatpush1.msra.mxu0 %v1213
    %1262 = vmatprep.subr.mxu0 0.0
    %1263 = vmatpush1.msra.mxu0 %v1212
    %1264 = vmatprep.subr.mxu0 0.0
    %1265 = vmatpush1.msra.mxu0 %v1211
    %1266 = vmatprep.subr.mxu0 0.0
    %1267 = vmatpush1.msra.mxu0 %v1210
    %1268 = vmatprep.subr.mxu0 0.0
    %1269 = vmatpush1.msra.mxu0 %v1209
    %1270 = vmatprep.subr.mxu0 0.0
    %1271 = vmatpush2.msra.mxu0 0.0
    %1272 = vmatprep.subr.mxu0 0.0
    %1273 = vmatpush2.msra.mxu0 0.0
    %1274 = vmatprep.subr.mxu0 0.0
    %1275 = vmatpush2.msra.mxu0 0.0
    %1276 = vmatprep.subr.mxu0 0.0
    %1277 = vmatpush2.msra.mxu0 0.0
    %1278 = vmatprep.subr.mxu0 0.0
    %1279 = vmatpush2.msra.mxu0 0.0
    %1280 = vmatprep.subr.mxu0 0.0
    %1281 = vmatpush2.msra.mxu0 0.0
    %1282 = vmatprep.subr.mxu0 0.0
    %1283 = vmatpush2.msra.mxu0 0.0
    %1284 = vmatprep.subr.mxu0 0.0
    %1285 = vmatpush2.msra.mxu0 0.0
    %1286 = vmatprep.subr.mxu0 0.0
    %1287 = vmatpush2.msra.mxu0 0.0
    %1288 = vmatprep.subr.mxu0 0.0
    %1289 = vmatpush2.msra.mxu0 0.0
    %1290 = vmatprep.subr.mxu0 0.0
    %1291 = vmatpush2.msra.mxu0 0.0
    %1292 = vmatprep.subr.mxu0 0.0
    %1293 = vmatpush2.msra.mxu0 0.0
    %1294 = vmatprep.subr.mxu0 0.0
    %1295 = vmatpush2.msra.mxu0 0.0
    %1296 = vmatprep.subr.mxu0 0.0
    %1297 = vmatpush2.msra.mxu0 0.0
    %1298 = vmatprep.subr.mxu0 0.0
    %1299 = vmatpush2.msra.mxu0 0.0
    %1300 = vmatprep.subr.mxu0 0.0
    %1301 = vmatpush2.msra.mxu0 0.0
    %1302 = vmatprep.mubr.f32.mxu0 0.0
    %1303 = vmatmul.mubr.f32.gmra.mxu0 %v1230
    %v1304 = vpop.f32.mrf.mxu0
    %v1305 = vadd.f32 0.0, %v1304
    %v1306 = vpop.f32.mrf.mxu0
    %1307 = vmatprep.mubr.f32.mxu0 0.0
    %1308 = vmatmul.mubr.f32.gmra.mxu0 %v1232
    %v1309 = vpop.f32.mrf.mxu0
    %v1310 = vadd.f32 0.0, %v1309
    %v1311 = vpop.f32.mrf.mxu0
    %1312 = vmatprep.mubr.f32.mxu0 0.0
    %1313 = vmatmul.mubr.f32.gmra.mxu0 %v1234
    %v1314 = vpop.f32.mrf.mxu0
    %v1315 = vadd.f32 0.0, %v1314
    %v1316 = vpop.f32.mrf.mxu0
    %1317 = vmatprep.mubr.f32.mxu0 0.0
    %1318 = vmatmul.mubr.f32.gmra.mxu0 %v1236
    %v1319 = vpop.f32.mrf.mxu0
    %v1320 = vadd.f32 0.0, %v1319
    %v1321 = vpop.f32.mrf.mxu0
    %1322 = vdwg.mxu0
    %v1323 = vsel %vm1229, %v1196, 0
    %v1325 = vsel %vm1229, %v1197, 0
    %v1327 = vsel %vm1229, %v1198, 0
    %v1329 = vsel %vm1229, %v1199, 0
    %1331 = vmatprep.subr.mxu0 0.0
    %1332 = vmatpush1.msra.mxu0 0.0
    %1333 = vmatprep.subr.mxu0 0.0
    %1334 = vmatpush1.msra.mxu0 0.0
    %1335 = vmatprep.subr.mxu0 0.0
    %1336 = vmatpush1.msra.mxu0 0.0
    %1337 = vmatprep.subr.mxu0 0.0
    %1338 = vmatpush1.msra.mxu0 0.0
    %1339 = vmatprep.subr.mxu0 0.0
    %1340 = vmatpush1.msra.mxu0 0.0
    %1341 = vmatprep.subr.mxu0 0.0
    %1342 = vmatpush1.msra.mxu0 0.0
    %1343 = vmatprep.subr.mxu0 0.0
    %1344 = vmatpush1.msra.mxu0 0.0
    %1345 = vmatprep.subr.mxu0 0.0
    %1346 = vmatpush1.msra.mxu0 0.0
    %1347 = vmatprep.subr.mxu0 0.0
    %1348 = vmatpush1.msra.mxu0 %v1207
    %1349 = vmatprep.subr.mxu0 0.0
    %1350 = vmatpush1.msra.mxu0 %v1206
    %1351 = vmatprep.subr.mxu0 0.0
    %1352 = vmatpush1.msra.mxu0 %v1205
    %1353 = vmatprep.subr.mxu0 0.0
    %1354 = vmatpush1.msra.mxu0 %v1204
    %1355 = vmatprep.subr.mxu0 0.0
    %1356 = vmatpush1.msra.mxu0 %v1203
    %1357 = vmatprep.subr.mxu0 0.0
    %1358 = vmatpush1.msra.mxu0 %v1202
    %1359 = vmatprep.subr.mxu0 0.0
    %1360 = vmatpush1.msra.mxu0 %v1201
    %1361 = vmatprep.subr.mxu0 0.0
    %1362 = vmatpush1.msra.mxu0 %v1200
    %1363 = vmatprep.subr.mxu0 0.0
    %1364 = vmatpush2.msra.mxu0 0.0
    %1365 = vmatprep.subr.mxu0 0.0
    %1366 = vmatpush2.msra.mxu0 0.0
    %1367 = vmatprep.subr.mxu0 0.0
    %1368 = vmatpush2.msra.mxu0 0.0
    %1369 = vmatprep.subr.mxu0 0.0
    %1370 = vmatpush2.msra.mxu0 0.0
    %1371 = vmatprep.subr.mxu0 0.0
    %1372 = vmatpush2.msra.mxu0 0.0
    %1373 = vmatprep.subr.mxu0 0.0
    %1374 = vmatpush2.msra.mxu0 0.0
    %1375 = vmatprep.subr.mxu0 0.0
    %1376 = vmatpush2.msra.mxu0 0.0
    %1377 = vmatprep.subr.mxu0 0.0
    %1378 = vmatpush2.msra.mxu0 0.0
    %1379 = vmatprep.subr.mxu0 0.0
    %1380 = vmatpush2.msra.mxu0 0.0
    %1381 = vmatprep.subr.mxu0 0.0
    %1382 = vmatpush2.msra.mxu0 0.0
    %1383 = vmatprep.subr.mxu0 0.0
    %1384 = vmatpush2.msra.mxu0 0.0
    %1385 = vmatprep.subr.mxu0 0.0
    %1386 = vmatpush2.msra.mxu0 0.0
    %1387 = vmatprep.subr.mxu0 0.0
    %1388 = vmatpush2.msra.mxu0 0.0
    %1389 = vmatprep.subr.mxu0 0.0
    %1390 = vmatpush2.msra.mxu0 0.0
    %1391 = vmatprep.subr.mxu0 0.0
    %1392 = vmatpush2.msra.mxu0 0.0
    %1393 = vmatprep.subr.mxu0 0.0
    %1394 = vmatpush2.msra.mxu0 0.0
    %1395 = vmatprep.mubr.f32.mxu0 0.0
    %1396 = vmatmul.mubr.f32.gmra.mxu0 %v1323
    %v1397 = vpop.f32.mrf.mxu0
    %v1398 = vadd.f32 %v1305, %v1397
    %v1399 = vpop.f32.mrf.mxu0
    %1400 = vmatprep.mubr.f32.mxu0 0.0
    %1401 = vmatmul.mubr.f32.gmra.mxu0 %v1325
    %v1402 = vpop.f32.mrf.mxu0
    %v1403 = vadd.f32 %v1310, %v1402
    %v1404 = vpop.f32.mrf.mxu0
    %1405 = vmatprep.mubr.f32.mxu0 0.0
    %1406 = vmatmul.mubr.f32.gmra.mxu0 %v1327
    %v1407 = vpop.f32.mrf.mxu0
    %v1408 = vadd.f32 %v1315, %v1407
    %v1409 = vpop.f32.mrf.mxu0
    %1410 = vmatprep.mubr.f32.mxu0 0.0
    %1411 = vmatmul.mubr.f32.gmra.mxu0 %v1329
    %v1412 = vpop.f32.mrf.mxu0
    %v1413 = vadd.f32 %v1320, %v1412
    %v1414 = vpop.f32.mrf.mxu0
    %1415 = vdwg.mxu0
    %s1416 = scalar_lea.vmem %s6, 128
    %v1417 = vld [vmem:[%s1416] sm:$0xff]
    %v1418 = vld [vmem:[%s1416 + $0x8] sm:$0xff]
    %v1419 = vld [vmem:[%s1416 + $0x10] sm:$0xff]
    %v1420 = vld [vmem:[%s1416 + $0x18] sm:$0xff]
    %v1421 = vld [vmem:[%s1416 + $0x20] sm:$0xff]
    %v1422 = vld [vmem:[%s1416 + $0x28] sm:$0xff]
    %v1423 = vld [vmem:[%s1416 + $0x30] sm:$0xff]
    %v1424 = vld [vmem:[%s1416 + $0x38] sm:$0xff]
    %vm1425 = vcmask 1045504
    %v1426 = vrot.slane %v1196, 2
    %v1427 = vrot.slane %v1197, 2
    %v1428 = vsel %vm1425, %v1426, %v1427
    %v1429 = vrot.slane %v1198, 2
    %v1430 = vsel %vm1425, %v1427, %v1429
    %v1431 = vrot.slane %v1199, 2
    %v1432 = vsel %vm1425, %v1429, %v1431
    %v1433 = vsel %vm1229, %v1428, 0
    %v1435 = vsel %vm1229, %v1430, 0
    %v1437 = vsel %vm1229, %v1432, 0
    %v1439 = vsel %vm1229, %v1431, 0
    %1441 = vmatprep.subr.mxu0 0.0
    %1442 = vmatpush1.msra.mxu0 0.0
    %1443 = vmatprep.subr.mxu0 0.0
    %1444 = vmatpush1.msra.mxu0 0.0
    %1445 = vmatprep.subr.mxu0 0.0
    %1446 = vmatpush1.msra.mxu0 0.0
    %1447 = vmatprep.subr.mxu0 0.0
    %1448 = vmatpush1.msra.mxu0 0.0
    %1449 = vmatprep.subr.mxu0 0.0
    %1450 = vmatpush1.msra.mxu0 0.0
    %1451 = vmatprep.subr.mxu0 0.0
    %1452 = vmatpush1.msra.mxu0 0.0
    %1453 = vmatprep.subr.mxu0 0.0
    %1454 = vmatpush1.msra.mxu0 0.0
    %1455 = vmatprep.subr.mxu0 0.0
    %1456 = vmatpush1.msra.mxu0 0.0
    %1457 = vmatprep.subr.mxu0 0.0
    %1458 = vmatpush1.msra.mxu0 %v1424
    %1459 = vmatprep.subr.mxu0 0.0
    %1460 = vmatpush1.msra.mxu0 %v1423
    %1461 = vmatprep.subr.mxu0 0.0
    %1462 = vmatpush1.msra.mxu0 %v1422
    %1463 = vmatprep.subr.mxu0 0.0
    %1464 = vmatpush1.msra.mxu0 %v1421
    %1465 = vmatprep.subr.mxu0 0.0
    %1466 = vmatpush1.msra.mxu0 %v1420
    %1467 = vmatprep.subr.mxu0 0.0
    %1468 = vmatpush1.msra.mxu0 %v1419
    %1469 = vmatprep.subr.mxu0 0.0
    %1470 = vmatpush1.msra.mxu0 %v1418
    %1471 = vmatprep.subr.mxu0 0.0
    %1472 = vmatpush1.msra.mxu0 %v1417
    %1473 = vmatprep.subr.mxu0 0.0
    %1474 = vmatpush2.msra.mxu0 0.0
    %1475 = vmatprep.subr.mxu0 0.0
    %1476 = vmatpush2.msra.mxu0 0.0
    %1477 = vmatprep.subr.mxu0 0.0
    %1478 = vmatpush2.msra.mxu0 0.0
    %1479 = vmatprep.subr.mxu0 0.0
    %1480 = vmatpush2.msra.mxu0 0.0
    %1481 = vmatprep.subr.mxu0 0.0
    %1482 = vmatpush2.msra.mxu0 0.0
    %1483 = vmatprep.subr.mxu0 0.0
    %1484 = vmatpush2.msra.mxu0 0.0
    %1485 = vmatprep.subr.mxu0 0.0
    %1486 = vmatpush2.msra.mxu0 0.0
    %1487 = vmatprep.subr.mxu0 0.0
    %1488 = vmatpush2.msra.mxu0 0.0
    %1489 = vmatprep.subr.mxu0 0.0
    %1490 = vmatpush2.msra.mxu0 0.0
    %1491 = vmatprep.subr.mxu0 0.0
    %1492 = vmatpush2.msra.mxu0 0.0
    %1493 = vmatprep.subr.mxu0 0.0
    %1494 = vmatpush2.msra.mxu0 0.0
    %1495 = vmatprep.subr.mxu0 0.0
    %1496 = vmatpush2.msra.mxu0 0.0
    %1497 = vmatprep.subr.mxu0 0.0
    %1498 = vmatpush2.msra.mxu0 0.0
    %1499 = vmatprep.subr.mxu0 0.0
    %1500 = vmatpush2.msra.mxu0 0.0
    %1501 = vmatprep.subr.mxu0 0.0
    %1502 = vmatpush2.msra.mxu0 0.0
    %1503 = vmatprep.subr.mxu0 0.0
    %1504 = vmatpush2.msra.mxu0 0.0
    %1505 = vmatprep.mubr.f32.mxu0 0.0
    %1506 = vmatmul.mubr.f32.gmra.mxu0 %v1433
    %v1507 = vpop.f32.mrf.mxu0
    %v1508 = vadd.f32 0.0, %v1507
    %v1509 = vpop.f32.mrf.mxu0
    %1510 = vmatprep.mubr.f32.mxu0 0.0
    %1511 = vmatmul.mubr.f32.gmra.mxu0 %v1435
    %v1512 = vpop.f32.mrf.mxu0
    %v1513 = vadd.f32 0.0, %v1512
    %v1514 = vpop.f32.mrf.mxu0
    %1515 = vmatprep.mubr.f32.mxu0 0.0
    %1516 = vmatmul.mubr.f32.gmra.mxu0 %v1437
    %v1517 = vpop.f32.mrf.mxu0
    %v1518 = vadd.f32 0.0, %v1517
    %v1519 = vpop.f32.mrf.mxu0
    %1520 = vmatprep.mubr.f32.mxu0 0.0
    %1521 = vmatmul.mubr.f32.gmra.mxu0 %v1439
    %v1522 = vpop.f32.mrf.mxu0
    %v1523 = vadd.f32 0.0, %v1522
    %v1524 = vpop.f32.mrf.mxu0
    %1525 = vdwg.mxu0
    %v1526 = vadd.f32 %v1398, %v1508
    %v1527 = vadd.f32 %v1403, %v1513
    %v1528 = vadd.f32 %v1408, %v1518
    %v1529 = vadd.f32 %v1413, %v1523
    %s1530 = scalar_lea.vmem %s6, 192
    %v1531 = vld [vmem:[%s1530] sm:$0xff]
    %v1532 = vld [vmem:[%s1530 + $0x8] sm:$0xff]
    %v1533 = vld [vmem:[%s1530 + $0x10] sm:$0xff]
    %v1534 = vld [vmem:[%s1530 + $0x18] sm:$0xff]
    %v1535 = vld [vmem:[%s1530 + $0x20] sm:$0xff]
    %v1536 = vld [vmem:[%s1530 + $0x28] sm:$0xff]
    %v1537 = vld [vmem:[%s1530 + $0x30] sm:$0xff]
    %v1538 = vld [vmem:[%s1530 + $0x38] sm:$0xff]
    %vm1539 = vcmask 1044480
    %v1540 = vrot.slane %v1196, 3
    %v1541 = vrot.slane %v1197, 3
    %v1542 = vsel %vm1539, %v1540, %v1541
    %v1543 = vrot.slane %v1198, 3
    %v1544 = vsel %vm1539, %v1541, %v1543
    %v1545 = vrot.slane %v1199, 3
    %v1546 = vsel %vm1539, %v1543, %v1545
    %v1547 = vsel %vm1229, %v1542, 0
    %v1549 = vsel %vm1229, %v1544, 0
    %v1551 = vsel %vm1229, %v1546, 0
    %v1553 = vsel %vm1229, %v1545, 0
    %1555 = vmatprep.subr.mxu0 0.0
    %1556 = vmatpush1.msra.mxu0 0.0
    %1557 = vmatprep.subr.mxu0 0.0
    %1558 = vmatpush1.msra.mxu0 0.0
    %1559 = vmatprep.subr.mxu0 0.0
    %1560 = vmatpush1.msra.mxu0 0.0
    %1561 = vmatprep.subr.mxu0 0.0
    %1562 = vmatpush1.msra.mxu0 0.0
    %1563 = vmatprep.subr.mxu0 0.0
    %1564 = vmatpush1.msra.mxu0 0.0
    %1565 = vmatprep.subr.mxu0 0.0
    %1566 = vmatpush1.msra.mxu0 0.0
    %1567 = vmatprep.subr.mxu0 0.0
    %1568 = vmatpush1.msra.mxu0 0.0
    %1569 = vmatprep.subr.mxu0 0.0
    %1570 = vmatpush1.msra.mxu0 0.0
    %1571 = vmatprep.subr.mxu0 0.0
    %1572 = vmatpush1.msra.mxu0 %v1538
    %1573 = vmatprep.subr.mxu0 0.0
    %1574 = vmatpush1.msra.mxu0 %v1537
    %1575 = vmatprep.subr.mxu0 0.0
    %1576 = vmatpush1.msra.mxu0 %v1536
    %1577 = vmatprep.subr.mxu0 0.0
    %1578 = vmatpush1.msra.mxu0 %v1535
    %1579 = vmatprep.subr.mxu0 0.0
    %1580 = vmatpush1.msra.mxu0 %v1534
    %1581 = vmatprep.subr.mxu0 0.0
    %1582 = vmatpush1.msra.mxu0 %v1533
    %1583 = vmatprep.subr.mxu0 0.0
    %1584 = vmatpush1.msra.mxu0 %v1532
    %1585 = vmatprep.subr.mxu0 0.0
    %1586 = vmatpush1.msra.mxu0 %v1531
    %1587 = vmatprep.subr.mxu0 0.0
    %1588 = vmatpush2.msra.mxu0 0.0
    %1589 = vmatprep.subr.mxu0 0.0
    %1590 = vmatpush2.msra.mxu0 0.0
    %1591 = vmatprep.subr.mxu0 0.0
    %1592 = vmatpush2.msra.mxu0 0.0
    %1593 = vmatprep.subr.mxu0 0.0
    %1594 = vmatpush2.msra.mxu0 0.0
    %1595 = vmatprep.subr.mxu0 0.0
    %1596 = vmatpush2.msra.mxu0 0.0
    %1597 = vmatprep.subr.mxu0 0.0
    %1598 = vmatpush2.msra.mxu0 0.0
    %1599 = vmatprep.subr.mxu0 0.0
    %1600 = vmatpush2.msra.mxu0 0.0
    %1601 = vmatprep.subr.mxu0 0.0
    %1602 = vmatpush2.msra.mxu0 0.0
    %1603 = vmatprep.subr.mxu0 0.0
    %1604 = vmatpush2.msra.mxu0 0.0
    %1605 = vmatprep.subr.mxu0 0.0
    %1606 = vmatpush2.msra.mxu0 0.0
    %1607 = vmatprep.subr.mxu0 0.0
    %1608 = vmatpush2.msra.mxu0 0.0
    %1609 = vmatprep.subr.mxu0 0.0
    %1610 = vmatpush2.msra.mxu0 0.0
    %1611 = vmatprep.subr.mxu0 0.0
    %1612 = vmatpush2.msra.mxu0 0.0
    %1613 = vmatprep.subr.mxu0 0.0
    %1614 = vmatpush2.msra.mxu0 0.0
    %1615 = vmatprep.subr.mxu0 0.0
    %1616 = vmatpush2.msra.mxu0 0.0
    %1617 = vmatprep.subr.mxu0 0.0
    %1618 = vmatpush2.msra.mxu0 0.0
    %1619 = vmatprep.mubr.f32.mxu0 0.0
    %1620 = vmatmul.mubr.f32.gmra.mxu0 %v1547
    %v1621 = vpop.f32.mrf.mxu0
    %v1622 = vadd.f32 0.0, %v1621
    %v1623 = vpop.f32.mrf.mxu0
    %1624 = vmatprep.mubr.f32.mxu0 0.0
    %1625 = vmatmul.mubr.f32.gmra.mxu0 %v1549
    %v1626 = vpop.f32.mrf.mxu0
    %v1627 = vadd.f32 0.0, %v1626
    %v1628 = vpop.f32.mrf.mxu0
    %1629 = vmatprep.mubr.f32.mxu0 0.0
    %1630 = vmatmul.mubr.f32.gmra.mxu0 %v1551
    %v1631 = vpop.f32.mrf.mxu0
    %v1632 = vadd.f32 0.0, %v1631
    %v1633 = vpop.f32.mrf.mxu0
    %1634 = vmatprep.mubr.f32.mxu0 0.0
    %1635 = vmatmul.mubr.f32.gmra.mxu0 %v1553
    %v1636 = vpop.f32.mrf.mxu0
    %v1637 = vadd.f32 0.0, %v1636
    %v1638 = vpop.f32.mrf.mxu0
    %1639 = vdwg.mxu0
    %v1640 = vadd.f32 %v1526, %v1622
    %v1641 = vadd.f32 %v1527, %v1627
    %v1642 = vadd.f32 %v1528, %v1632
    %v1643 = vadd.f32 %v1529, %v1637
    %s1644 = scalar_lea.vmem %s6, 256
    %v1645 = vld [vmem:[%s1644] sm:$0xff]
    %v1646 = vld [vmem:[%s1644 + $0x8] sm:$0xff]
    %v1647 = vld [vmem:[%s1644 + $0x10] sm:$0xff]
    %v1648 = vld [vmem:[%s1644 + $0x18] sm:$0xff]
    %v1649 = vld [vmem:[%s1644 + $0x20] sm:$0xff]
    %v1650 = vld [vmem:[%s1644 + $0x28] sm:$0xff]
    %v1651 = vld [vmem:[%s1644 + $0x30] sm:$0xff]
    %v1652 = vld [vmem:[%s1644 + $0x38] sm:$0xff]
    %v1653 = vrot.slane %v1196, 4
    %v1654 = vrot.slane %v1197, 4
    %v1655 = vsel %vm116, %v1653, %v1654
    %v1656 = vrot.slane %v1198, 4
    %v1657 = vsel %vm116, %v1654, %v1656
    %v1658 = vrot.slane %v1199, 4
    %v1659 = vsel %vm116, %v1656, %v1658
    %v1660 = vsel %vm1229, %v1655, 0
    %v1662 = vsel %vm1229, %v1657, 0
    %v1664 = vsel %vm1229, %v1659, 0
    %v1666 = vsel %vm1229, %v1658, 0
    %1668 = vmatprep.subr.mxu0 0.0
    %1669 = vmatpush1.msra.mxu0 0.0
    %1670 = vmatprep.subr.mxu0 0.0
    %1671 = vmatpush1.msra.mxu0 0.0
    %1672 = vmatprep.subr.mxu0 0.0
    %1673 = vmatpush1.msra.mxu0 0.0
    %1674 = vmatprep.subr.mxu0 0.0
    %1675 = vmatpush1.msra.mxu0 0.0
    %1676 = vmatprep.subr.mxu0 0.0
    %1677 = vmatpush1.msra.mxu0 0.0
    %1678 = vmatprep.subr.mxu0 0.0
    %1679 = vmatpush1.msra.mxu0 0.0
    %1680 = vmatprep.subr.mxu0 0.0
    %1681 = vmatpush1.msra.mxu0 0.0
    %1682 = vmatprep.subr.mxu0 0.0
    %1683 = vmatpush1.msra.mxu0 0.0
    %1684 = vmatprep.subr.mxu0 0.0
    %1685 = vmatpush1.msra.mxu0 %v1652
    %1686 = vmatprep.subr.mxu0 0.0
    %1687 = vmatpush1.msra.mxu0 %v1651
    %1688 = vmatprep.subr.mxu0 0.0
    %1689 = vmatpush1.msra.mxu0 %v1650
    %1690 = vmatprep.subr.mxu0 0.0
    %1691 = vmatpush1.msra.mxu0 %v1649
    %1692 = vmatprep.subr.mxu0 0.0
    %1693 = vmatpush1.msra.mxu0 %v1648
    %1694 = vmatprep.subr.mxu0 0.0
    %1695 = vmatpush1.msra.mxu0 %v1647
    %1696 = vmatprep.subr.mxu0 0.0
    %1697 = vmatpush1.msra.mxu0 %v1646
    %1698 = vmatprep.subr.mxu0 0.0
    %1699 = vmatpush1.msra.mxu0 %v1645
    %1700 = vmatprep.subr.mxu0 0.0
    %1701 = vmatpush2.msra.mxu0 0.0
    %1702 = vmatprep.subr.mxu0 0.0
    %1703 = vmatpush2.msra.mxu0 0.0
    %1704 = vmatprep.subr.mxu0 0.0
    %1705 = vmatpush2.msra.mxu0 0.0
    %1706 = vmatprep.subr.mxu0 0.0
    %1707 = vmatpush2.msra.mxu0 0.0
    %1708 = vmatprep.subr.mxu0 0.0
    %1709 = vmatpush2.msra.mxu0 0.0
    %1710 = vmatprep.subr.mxu0 0.0
    %1711 = vmatpush2.msra.mxu0 0.0
    %1712 = vmatprep.subr.mxu0 0.0
    %1713 = vmatpush2.msra.mxu0 0.0
    %1714 = vmatprep.subr.mxu0 0.0
    %1715 = vmatpush2.msra.mxu0 0.0
    %1716 = vmatprep.subr.mxu0 0.0
    %1717 = vmatpush2.msra.mxu0 0.0
    %1718 = vmatprep.subr.mxu0 0.0
    %1719 = vmatpush2.msra.mxu0 0.0
    %1720 = vmatprep.subr.mxu0 0.0
    %1721 = vmatpush2.msra.mxu0 0.0
    %1722 = vmatprep.subr.mxu0 0.0
    %1723 = vmatpush2.msra.mxu0 0.0
    %1724 = vmatprep.subr.mxu0 0.0
    %1725 = vmatpush2.msra.mxu0 0.0
    %1726 = vmatprep.subr.mxu0 0.0
    %1727 = vmatpush2.msra.mxu0 0.0
    %1728 = vmatprep.subr.mxu0 0.0
    %1729 = vmatpush2.msra.mxu0 0.0
    %1730 = vmatprep.subr.mxu0 0.0
    %1731 = vmatpush2.msra.mxu0 0.0
    %1732 = vmatprep.mubr.f32.mxu0 0.0
    %1733 = vmatmul.mubr.f32.gmra.mxu0 %v1660
    %v1734 = vpop.f32.mrf.mxu0
    %v1735 = vadd.f32 0.0, %v1734
    %v1736 = vpop.f32.mrf.mxu0
    %1737 = vmatprep.mubr.f32.mxu0 0.0
    %1738 = vmatmul.mubr.f32.gmra.mxu0 %v1662
    %v1739 = vpop.f32.mrf.mxu0
    %v1740 = vadd.f32 0.0, %v1739
    %v1741 = vpop.f32.mrf.mxu0
    %1742 = vmatprep.mubr.f32.mxu0 0.0
    %1743 = vmatmul.mubr.f32.gmra.mxu0 %v1664
    %v1744 = vpop.f32.mrf.mxu0
    %v1745 = vadd.f32 0.0, %v1744
    %v1746 = vpop.f32.mrf.mxu0
    %1747 = vmatprep.mubr.f32.mxu0 0.0
    %1748 = vmatmul.mubr.f32.gmra.mxu0 %v1666
    %v1749 = vpop.f32.mrf.mxu0
    %v1750 = vadd.f32 0.0, %v1749
    %v1751 = vpop.f32.mrf.mxu0
    %1752 = vdwg.mxu0
    %v1753 = vadd.f32 %v1640, %v1735
    %v1754 = vadd.f32 %v1641, %v1740
    %v1755 = vadd.f32 %v1642, %v1745
    %v1756 = vadd.f32 %v1643, %v1750
    %v1757 = vmax.f32 %v1753, 0.0
    %v1758 = vmax.f32 %v1754, 0.0
    %v1759 = vmax.f32 %v1755, 0.0
    %v1760 = vmax.f32 %v1756, 0.0
    %v1761 = vld [vmem:[%s7] sm:$0xff]
    %v1762 = vld [vmem:[%s7 + $0x8] sm:$0x3f]
    %v1764 = vsel %vm45, %v1761, 0
    %v1767 = vsel %vm45, %v1762, 0
    %v1770 = vsel %vm116, %v1760, 0
    %1772 = vmatprep.subr.mxu0 0.0
    %1773 = vmatpush1.msra.mxu0 0.0
    %1774 = vmatprep.subr.mxu0 0.0
    %1775 = vmatpush1.msra.mxu0 0.0
    %1776 = vmatprep.subr.mxu0 0.0
    %1777 = vmatpush1.msra.mxu0 0.0
    %1778 = vmatprep.subr.mxu0 0.0
    %1779 = vmatpush1.msra.mxu0 0.0
    %1780 = vmatprep.subr.mxu0 0.0
    %1781 = vmatpush1.msra.mxu0 0.0
    %1782 = vmatprep.subr.mxu0 0.0
    %1783 = vmatpush1.msra.mxu0 0.0
    %1784 = vmatprep.subr.mxu0 0.0
    %1785 = vmatpush1.msra.mxu0 0.0
    %1786 = vmatprep.subr.mxu0 0.0
    %1787 = vmatpush1.msra.mxu0 0.0
    %1788 = vmatprep.subr.mxu0 0.0
    %1789 = vmatpush1.msra.mxu0 0.0
    %1790 = vmatprep.subr.mxu0 0.0
    %1791 = vmatpush1.msra.mxu0 0.0
    %1792 = vmatprep.subr.mxu0 0.0
    %1793 = vmatpush1.msra.mxu0 0.0
    %1794 = vmatprep.subr.mxu0 0.0
    %1795 = vmatpush1.msra.mxu0 0.0
    %1796 = vmatprep.subr.mxu0 0.0
    %1797 = vmatpush1.msra.mxu0 %v1770
    %1798 = vmatprep.subr.mxu0 0.0
    %1799 = vmatpush1.msra.mxu0 %v1759
    %1800 = vmatprep.subr.mxu0 0.0
    %1801 = vmatpush1.msra.mxu0 %v1758
    %1802 = vmatprep.subr.mxu0 0.0
    %1803 = vmatpush1.msra.mxu0 %v1757
    %1804 = vmatprep.subr.mxu0 0.0
    %1805 = vmatpush2.msra.mxu0 0.0
    %1806 = vmatprep.subr.mxu0 0.0
    %1807 = vmatpush2.msra.mxu0 0.0
    %1808 = vmatprep.subr.mxu0 0.0
    %1809 = vmatpush2.msra.mxu0 0.0
    %1810 = vmatprep.subr.mxu0 0.0
    %1811 = vmatpush2.msra.mxu0 0.0
    %1812 = vmatprep.subr.mxu0 0.0
    %1813 = vmatpush2.msra.mxu0 0.0
    %1814 = vmatprep.subr.mxu0 0.0
    %1815 = vmatpush2.msra.mxu0 0.0
    %1816 = vmatprep.subr.mxu0 0.0
    %1817 = vmatpush2.msra.mxu0 0.0
    %1818 = vmatprep.subr.mxu0 0.0
    %1819 = vmatpush2.msra.mxu0 0.0
    %1820 = vmatprep.subr.mxu0 0.0
    %1821 = vmatpush2.msra.mxu0 0.0
    %1822 = vmatprep.subr.mxu0 0.0
    %1823 = vmatpush2.msra.mxu0 0.0
    %1824 = vmatprep.subr.mxu0 0.0
    %1825 = vmatpush2.msra.mxu0 0.0
    %1826 = vmatprep.subr.mxu0 0.0
    %1827 = vmatpush2.msra.mxu0 0.0
    %1828 = vmatprep.subr.mxu0 0.0
    %1829 = vmatpush2.msra.mxu0 0.0
    %1830 = vmatprep.subr.mxu0 0.0
    %1831 = vmatpush2.msra.mxu0 0.0
    %1832 = vmatprep.subr.mxu0 0.0
    %1833 = vmatpush2.msra.mxu0 0.0
    %1834 = vmatprep.subr.mxu0 0.0
    %1835 = vmatpush2.msra.mxu0 0.0
    %1836 = vmatprep.mubr.f32.mxu0 0.0
    %1837 = vmatmul.mubr.f32.gmra.mxu0 %v1764
    %v1838 = vpop.f32.mrf.mxu0
    %v1839 = vadd.f32 0.0, %v1838
    %v1840 = vpop.f32.mrf.mxu0
    %1841 = vmatprep.mubr.f32.mxu0 0.0
    %1842 = vmatmul.mubr.f32.gmra.mxu0 %v1767
    %v1843 = vpop.f32.mrf.mxu0
    %v1844 = vadd.f32 0.0, %v1843
    %v1845 = vpop.f32.mrf.mxu0
    %1846 = vdwg.mxu0
    %v1847 = vld [vmem:[%s8] sm:$0xff]
    %v1848 = vld [vmem:[%s8 + $0x8] sm:$0x3f]
    %v1850 = vsel %vm45, %v1847, 0
    %v1853 = vsel %vm45, %v1848, 0
    %1855 = vmatprep.subr.mxu0 0.0
    %1856 = vmatpush1.msra.mxu0 0.0
    %1857 = vmatprep.subr.mxu0 0.0
    %1858 = vmatpush1.msra.mxu0 0.0
    %1859 = vmatprep.subr.mxu0 0.0
    %1860 = vmatpush1.msra.mxu0 0.0
    %1861 = vmatprep.subr.mxu0 0.0
    %1862 = vmatpush1.msra.mxu0 0.0
    %1863 = vmatprep.subr.mxu0 0.0
    %1864 = vmatpush1.msra.mxu0 0.0
    %1865 = vmatprep.subr.mxu0 0.0
    %1866 = vmatpush1.msra.mxu0 0.0
    %1867 = vmatprep.subr.mxu0 0.0
    %1868 = vmatpush1.msra.mxu0 0.0
    %1869 = vmatprep.subr.mxu0 0.0
    %1870 = vmatpush1.msra.mxu0 0.0
    %1871 = vmatprep.subr.mxu0 0.0
    %1872 = vmatpush1.msra.mxu0 0.0
    %1873 = vmatprep.subr.mxu0 0.0
    %1874 = vmatpush1.msra.mxu0 0.0
    %1875 = vmatprep.subr.mxu0 0.0
    %1876 = vmatpush1.msra.mxu0 0.0
    %1877 = vmatprep.subr.mxu0 0.0
    %1878 = vmatpush1.msra.mxu0 0.0
    %1879 = vmatprep.subr.mxu0 0.0
    %1880 = vmatpush1.msra.mxu0 %v1770
    %1881 = vmatprep.subr.mxu0 0.0
    %1882 = vmatpush1.msra.mxu0 %v1759
    %1883 = vmatprep.subr.mxu0 0.0
    %1884 = vmatpush1.msra.mxu0 %v1758
    %1885 = vmatprep.subr.mxu0 0.0
    %1886 = vmatpush1.msra.mxu0 %v1757
    %1887 = vmatprep.subr.mxu0 0.0
    %1888 = vmatpush2.msra.mxu0 0.0
    %1889 = vmatprep.subr.mxu0 0.0
    %1890 = vmatpush2.msra.mxu0 0.0
    %1891 = vmatprep.subr.mxu0 0.0
    %1892 = vmatpush2.msra.mxu0 0.0
    %1893 = vmatprep.subr.mxu0 0.0
    %1894 = vmatpush2.msra.mxu0 0.0
    %1895 = vmatprep.subr.mxu0 0.0
    %1896 = vmatpush2.msra.mxu0 0.0
    %1897 = vmatprep.subr.mxu0 0.0
    %1898 = vmatpush2.msra.mxu0 0.0
    %1899 = vmatprep.subr.mxu0 0.0
    %1900 = vmatpush2.msra.mxu0 0.0
    %1901 = vmatprep.subr.mxu0 0.0
    %1902 = vmatpush2.msra.mxu0 0.0
    %1903 = vmatprep.subr.mxu0 0.0
    %1904 = vmatpush2.msra.mxu0 0.0
    %1905 = vmatprep.subr.mxu0 0.0
    %1906 = vmatpush2.msra.mxu0 0.0
    %1907 = vmatprep.subr.mxu0 0.0
    %1908 = vmatpush2.msra.mxu0 0.0
    %1909 = vmatprep.subr.mxu0 0.0
    %1910 = vmatpush2.msra.mxu0 0.0
    %1911 = vmatprep.subr.mxu0 0.0
    %1912 = vmatpush2.msra.mxu0 0.0
    %1913 = vmatprep.subr.mxu0 0.0
    %1914 = vmatpush2.msra.mxu0 0.0
    %1915 = vmatprep.subr.mxu0 0.0
    %1916 = vmatpush2.msra.mxu0 0.0
    %1917 = vmatprep.subr.mxu0 0.0
    %1918 = vmatpush2.msra.mxu0 0.0
    %1919 = vmatprep.mubr.f32.mxu0 0.0
    %1920 = vmatmul.mubr.f32.gmra.mxu0 %v1850
    %v1921 = vpop.f32.mrf.mxu0
    %v1922 = vadd.f32 0.0, %v1921
    %v1923 = vpop.f32.mrf.mxu0
    %1924 = vmatprep.mubr.f32.mxu0 0.0
    %1925 = vmatmul.mubr.f32.gmra.mxu0 %v1853
    %v1926 = vpop.f32.mrf.mxu0
    %v1927 = vadd.f32 0.0, %v1926
    %v1928 = vpop.f32.mrf.mxu0
    %1929 = vdwg.mxu0
    %v1930 = vmax.f32 %v1839, %v1922
    %v1931 = vmax.f32 %v1844, %v1927
    %v1932 = vld [vmem:[%s9] sm:$0xff]
    %v1933 = vld [vmem:[%s9 + $0x8] sm:$0xff]
    %v1934 = vld [vmem:[%s9 + $0x10] sm:$0xff]
    %v1935 = vld [vmem:[%s9 + $0x18] sm:$0xff]
    %v1936 = vld [vmem:[%s9 + $0x20] sm:$0xff]
    %v1937 = vld [vmem:[%s9 + $0x28] sm:$0xff]
    %v1938 = vld [vmem:[%s9 + $0x30] sm:$0xff]
    %v1939 = vld [vmem:[%s9 + $0x38] sm:$0xff]
    %v1940 = vld [vmem:[%s9 + $0x40] sm:$0xff]
    %v1941 = vld [vmem:[%s9 + $0x48] sm:$0xff]
    %v1942 = vld [vmem:[%s9 + $0x50] sm:$0xff]
    %v1943 = vld [vmem:[%s9 + $0x58] sm:$0xff]
    %vm1944 = vcmask 785408
    %v1946 = vsel %vm1944, %v1930, 0
    %v1949 = vsel %vm1944, %v1931, 0
    %1951 = vmatprep.subr.mxu0 0.0
    %1952 = vmatpush1.msra.mxu0 0.0
    %1953 = vmatprep.subr.mxu0 0.0
    %1954 = vmatpush1.msra.mxu0 0.0
    %1955 = vmatprep.subr.mxu0 0.0
    %1956 = vmatpush1.msra.mxu0 0.0
    %1957 = vmatprep.subr.mxu0 0.0
    %1958 = vmatpush1.msra.mxu0 0.0
    %1959 = vmatprep.subr.mxu0 0.0
    %1960 = vmatpush1.msra.mxu0 %v1943
    %1961 = vmatprep.subr.mxu0 0.0
    %1962 = vmatpush1.msra.mxu0 %v1942
    %1963 = vmatprep.subr.mxu0 0.0
    %1964 = vmatpush1.msra.mxu0 %v1941
    %1965 = vmatprep.subr.mxu0 0.0
    %1966 = vmatpush1.msra.mxu0 %v1940
    %1967 = vmatprep.subr.mxu0 0.0
    %1968 = vmatpush1.msra.mxu0 %v1939
    %1969 = vmatprep.subr.mxu0 0.0
    %1970 = vmatpush1.msra.mxu0 %v1938
    %1971 = vmatprep.subr.mxu0 0.0
    %1972 = vmatpush1.msra.mxu0 %v1937
    %1973 = vmatprep.subr.mxu0 0.0
    %1974 = vmatpush1.msra.mxu0 %v1936
    %1975 = vmatprep.subr.mxu0 0.0
    %1976 = vmatpush1.msra.mxu0 %v1935
    %1977 = vmatprep.subr.mxu0 0.0
    %1978 = vmatpush1.msra.mxu0 %v1934
    %1979 = vmatprep.subr.mxu0 0.0
    %1980 = vmatpush1.msra.mxu0 %v1933
    %1981 = vmatprep.subr.mxu0 0.0
    %1982 = vmatpush1.msra.mxu0 %v1932
    %1983 = vmatprep.subr.mxu0 0.0
    %1984 = vmatpush2.msra.mxu0 0.0
    %1985 = vmatprep.subr.mxu0 0.0
    %1986 = vmatpush2.msra.mxu0 0.0
    %1987 = vmatprep.subr.mxu0 0.0
    %1988 = vmatpush2.msra.mxu0 0.0
    %1989 = vmatprep.subr.mxu0 0.0
    %1990 = vmatpush2.msra.mxu0 0.0
    %1991 = vmatprep.subr.mxu0 0.0
    %1992 = vmatpush2.msra.mxu0 0.0
    %1993 = vmatprep.subr.mxu0 0.0
    %1994 = vmatpush2.msra.mxu0 0.0
    %1995 = vmatprep.subr.mxu0 0.0
    %1996 = vmatpush2.msra.mxu0 0.0
    %1997 = vmatprep.subr.mxu0 0.0
    %1998 = vmatpush2.msra.mxu0 0.0
    %1999 = vmatprep.subr.mxu0 0.0
    %2000 = vmatpush2.msra.mxu0 0.0
    %2001 = vmatprep.subr.mxu0 0.0
    %2002 = vmatpush2.msra.mxu0 0.0
    %2003 = vmatprep.subr.mxu0 0.0
    %2004 = vmatpush2.msra.mxu0 0.0
    %2005 = vmatprep.subr.mxu0 0.0
    %2006 = vmatpush2.msra.mxu0 0.0
    %2007 = vmatprep.subr.mxu0 0.0
    %2008 = vmatpush2.msra.mxu0 0.0
    %2009 = vmatprep.subr.mxu0 0.0
    %2010 = vmatpush2.msra.mxu0 0.0
    %2011 = vmatprep.subr.mxu0 0.0
    %2012 = vmatpush2.msra.mxu0 0.0
    %2013 = vmatprep.subr.mxu0 0.0
    %2014 = vmatpush2.msra.mxu0 0.0
    %2015 = vmatprep.mubr.f32.mxu0 0.0
    %2016 = vmatmul.mubr.f32.gmra.mxu0 %v1946
    %v2017 = vpop.f32.mrf.mxu0
    %v2018 = vadd.f32 0.0, %v2017
    %v2019 = vpop.f32.mrf.mxu0
    %2020 = vmatprep.mubr.f32.mxu0 0.0
    %2021 = vmatmul.mubr.f32.gmra.mxu0 %v1949
    %v2022 = vpop.f32.mrf.mxu0
    %v2023 = vadd.f32 0.0, %v2022
    %v2024 = vpop.f32.mrf.mxu0
    %2025 = vdwg.mxu0
    %v2026 = vld [vmem:[%s10] sm:$0xff]
    %v2027 = vld [vmem:[%s10 + $0x8] sm:$0xff]
    %v2028 = vld [vmem:[%s10 + $0x10] sm:$0xff]
    %v2029 = vld [vmem:[%s10 + $0x18] sm:$0xff]
    %v2030 = vld [vmem:[%s10 + $0x20] sm:$0xff]
    %v2031 = vld [vmem:[%s10 + $0x28] sm:$0xff]
    %v2032 = vld [vmem:[%s10 + $0x30] sm:$0xff]
    %v2033 = vld [vmem:[%s10 + $0x38] sm:$0xff]
    %v2034 = vld [vmem:[%s10 + $0x40] sm:$0xff]
    %v2035 = vld [vmem:[%s10 + $0x48] sm:$0xff]
    %v2036 = vld [vmem:[%s10 + $0x50] sm:$0xff]
    %v2037 = vld [vmem:[%s10 + $0x58] sm:$0xff]
    %2038 = vmatprep.subr.mxu0 0.0
    %2039 = vmatpush1.msra.mxu0 0.0
    %2040 = vmatprep.subr.mxu0 0.0
    %2041 = vmatpush1.msra.mxu0 0.0
    %2042 = vmatprep.subr.mxu0 0.0
    %2043 = vmatpush1.msra.mxu0 0.0
    %2044 = vmatprep.subr.mxu0 0.0
    %2045 = vmatpush1.msra.mxu0 0.0
    %2046 = vmatprep.subr.mxu0 0.0
    %2047 = vmatpush1.msra.mxu0 %v2037
    %2048 = vmatprep.subr.mxu0 0.0
    %2049 = vmatpush1.msra.mxu0 %v2036
    %2050 = vmatprep.subr.mxu0 0.0
    %2051 = vmatpush1.msra.mxu0 %v2035
    %2052 = vmatprep.subr.mxu0 0.0
    %2053 = vmatpush1.msra.mxu0 %v2034
    %2054 = vmatprep.subr.mxu0 0.0
    %2055 = vmatpush1.msra.mxu0 %v2033
    %2056 = vmatprep.subr.mxu0 0.0
    %2057 = vmatpush1.msra.mxu0 %v2032
    %2058 = vmatprep.subr.mxu0 0.0
    %2059 = vmatpush1.msra.mxu0 %v2031
    %2060 = vmatprep.subr.mxu0 0.0
    %2061 = vmatpush1.msra.mxu0 %v2030
    %2062 = vmatprep.subr.mxu0 0.0
    %2063 = vmatpush1.msra.mxu0 %v2029
    %2064 = vmatprep.subr.mxu0 0.0
    %2065 = vmatpush1.msra.mxu0 %v2028
    %2066 = vmatprep.subr.mxu0 0.0
    %2067 = vmatpush1.msra.mxu0 %v2027
    %2068 = vmatprep.subr.mxu0 0.0
    %2069 = vmatpush1.msra.mxu0 %v2026
    %2070 = vmatprep.subr.mxu0 0.0
    %2071 = vmatpush2.msra.mxu0 0.0
    %2072 = vmatprep.subr.mxu0 0.0
    %2073 = vmatpush2.msra.mxu0 0.0
    %2074 = vmatprep.subr.mxu0 0.0
    %2075 = vmatpush2.msra.mxu0 0.0
    %2076 = vmatprep.subr.mxu0 0.0
    %2077 = vmatpush2.msra.mxu0 0.0
    %2078 = vmatprep.subr.mxu0 0.0
    %2079 = vmatpush2.msra.mxu0 0.0
    %2080 = vmatprep.subr.mxu0 0.0
    %2081 = vmatpush2.msra.mxu0 0.0
    %2082 = vmatprep.subr.mxu0 0.0
    %2083 = vmatpush2.msra.mxu0 0.0
    %2084 = vmatprep.subr.mxu0 0.0
    %2085 = vmatpush2.msra.mxu0 0.0
    %2086 = vmatprep.subr.mxu0 0.0
    %2087 = vmatpush2.msra.mxu0 0.0
    %2088 = vmatprep.subr.mxu0 0.0
    %2089 = vmatpush2.msra.mxu0 0.0
    %2090 = vmatprep.subr.mxu0 0.0
    %2091 = vmatpush2.msra.mxu0 0.0
    %2092 = vmatprep.subr.mxu0 0.0
    %2093 = vmatpush2.msra.mxu0 0.0
    %2094 = vmatprep.subr.mxu0 0.0
    %2095 = vmatpush2.msra.mxu0 0.0
    %2096 = vmatprep.subr.mxu0 0.0
    %2097 = vmatpush2.msra.mxu0 0.0
    %2098 = vmatprep.subr.mxu0 0.0
    %2099 = vmatpush2.msra.mxu0 0.0
    %2100 = vmatprep.subr.mxu0 0.0
    %2101 = vmatpush2.msra.mxu0 0.0
    %2102 = vmatprep.mubr.f32.mxu0 0.0
    %2103 = vmatmul.mubr.f32.gmra.mxu0 %v1946
    %v2104 = vpop.f32.mrf.mxu0
    %v2105 = vadd.f32 0.0, %v2104
    %v2106 = vpop.f32.mrf.mxu0
    %2107 = vmatprep.mubr.f32.mxu0 0.0
    %2108 = vmatmul.mubr.f32.gmra.mxu0 %v1949
    %v2109 = vpop.f32.mrf.mxu0
    %v2110 = vadd.f32 0.0, %v2109
    %v2111 = vpop.f32.mrf.mxu0
    %2112 = vdwg.mxu0
    %v2113 = vmax.f32 %v2018, %v2105
    %v2114 = vmax.f32 %v2023, %v2110
    %v2115 = vld [vmem:[%s11] sm:$0xff]
    %v2116 = vld [vmem:[%s11 + $0x8] sm:$0xff]
    %v2117 = vld [vmem:[%s11 + $0x10] sm:$0xff]
    %v2118 = vld [vmem:[%s11 + $0x18] sm:$0xff]
    %v2119 = vld [vmem:[%s11 + $0x20] sm:$0xff]
    %v2120 = vld [vmem:[%s11 + $0x28] sm:$0xff]
    %v2121 = vld [vmem:[%s11 + $0x30] sm:$0xff]
    %s2122 = scalar_lea.vmem %s11, 56
    %v2123 = vld [vmem:[%s2122] sm:$0xff]
    %v2124 = vld [vmem:[%s2122 + $0x8] sm:$0xff]
    %v2125 = vld [vmem:[%s2122 + $0x10] sm:$0xff]
    %v2126 = vld [vmem:[%s2122 + $0x18] sm:$0xff]
    %v2127 = vld [vmem:[%s2122 + $0x20] sm:$0xff]
    %v2128 = vld [vmem:[%s2122 + $0x28] sm:$0xff]
    %v2129 = vld [vmem:[%s2122 + $0x30] sm:$0xff]
    %s2130 = scalar_lea.vmem %s11, 112
    %v2131 = vld [vmem:[%s2130] sm:$0xff]
    %v2132 = vld [vmem:[%s2130 + $0x8] sm:$0xff]
    %v2133 = vld [vmem:[%s2130 + $0x10] sm:$0xff]
    %v2134 = vld [vmem:[%s2130 + $0x18] sm:$0xff]
    %v2135 = vld [vmem:[%s2130 + $0x20] sm:$0xff]
    %v2136 = vld [vmem:[%s2130 + $0x28] sm:$0xff]
    %v2137 = vld [vmem:[%s2130 + $0x30] sm:$0xff]
    %s2138 = scalar_lea.vmem %s11, 168
    %v2139 = vld [vmem:[%s2138] sm:$0xff]
    %v2140 = vld [vmem:[%s2138 + $0x8] sm:$0xff]
    %v2141 = vld [vmem:[%s2138 + $0x10] sm:$0xff]
    %v2142 = vld [vmem:[%s2138 + $0x18] sm:$0xff]
    %v2143 = vld [vmem:[%s2138 + $0x20] sm:$0xff]
    %v2144 = vld [vmem:[%s2138 + $0x28] sm:$0xff]
    %v2145 = vld [vmem:[%s2138 + $0x30] sm:$0xff]
    %s2146 = scalar_lea.vmem %s11, 224
    %v2147 = vld [vmem:[%s2146] sm:$0xff]
    %v2148 = vld [vmem:[%s2146 + $0x8] sm:$0xff]
    %v2149 = vld [vmem:[%s2146 + $0x10] sm:$0xff]
    %v2150 = vld [vmem:[%s2146 + $0x18] sm:$0xff]
    %v2151 = vld [vmem:[%s2146 + $0x20] sm:$0xff]
    %v2152 = vld [vmem:[%s2146 + $0x28] sm:$0xff]
    %v2153 = vld [vmem:[%s2146 + $0x30] sm:$0xff]
    %s2154 = scalar_lea.vmem %s11, 280
    %v2155 = vld [vmem:[%s2154] sm:$0xff]
    %v2156 = vld [vmem:[%s2154 + $0x8] sm:$0xff]
    %v2157 = vld [vmem:[%s2154 + $0x10] sm:$0xff]
    %v2158 = vld [vmem:[%s2154 + $0x18] sm:$0xff]
    %v2159 = vld [vmem:[%s2154 + $0x20] sm:$0xff]
    %v2160 = vld [vmem:[%s2154 + $0x28] sm:$0xff]
    %v2161 = vld [vmem:[%s2154 + $0x30] sm:$0xff]
    %s2162 = scalar_lea.vmem %s11, 336
    %v2163 = vld [vmem:[%s2162] sm:$0xff]
    %v2164 = vld [vmem:[%s2162 + $0x8] sm:$0xff]
    %v2165 = vld [vmem:[%s2162 + $0x10] sm:$0xff]
    %v2166 = vld [vmem:[%s2162 + $0x18] sm:$0xff]
    %v2167 = vld [vmem:[%s2162 + $0x20] sm:$0xff]
    %v2168 = vld [vmem:[%s2162 + $0x28] sm:$0xff]
    %v2169 = vld [vmem:[%s2162 + $0x30] sm:$0xff]
    %v2170 = vld [vmem:[%s12] sm:$0xff]
    %v2171 = vld [vmem:[%s12 + $0x8] sm:$0xff]
    %v2172 = vld [vmem:[%s12 + $0x10] sm:$0xff]
    %v2173 = vld [vmem:[%s12 + $0x18] sm:$0xff]
    %v2175 = vrot.slane %v2113, 1
    %v2176 = vsel %vm784, %v2175, 0
    %2178 = vmatprep.subr.mxu0 0.0
    %2179 = vmatpush1.msra.mxu0 0.0
    %2180 = vmatprep.subr.mxu0 0.0
    %2181 = vmatpush1.msra.mxu0 0.0
    %2182 = vmatprep.subr.mxu0 0.0
    %2183 = vmatpush1.msra.mxu0 0.0
    %2184 = vmatprep.subr.mxu0 0.0
    %2185 = vmatpush1.msra.mxu0 0.0
    %2186 = vmatprep.subr.mxu0 0.0
    %2187 = vmatpush1.msra.mxu0 0.0
    %2188 = vmatprep.subr.mxu0 0.0
    %2189 = vmatpush1.msra.mxu0 0.0
    %2190 = vmatprep.subr.mxu0 0.0
    %2191 = vmatpush1.msra.mxu0 0.0
    %2192 = vmatprep.subr.mxu0 0.0
    %2193 = vmatpush1.msra.mxu0 0.0
    %2194 = vmatprep.subr.mxu0 0.0
    %2195 = vmatpush1.msra.mxu0 0.0
    %2196 = vmatprep.subr.mxu0 0.0
    %2197 = vmatpush1.msra.mxu0 %v2129
    %2198 = vmatprep.subr.mxu0 0.0
    %2199 = vmatpush1.msra.mxu0 %v2128
    %2200 = vmatprep.subr.mxu0 0.0
    %2201 = vmatpush1.msra.mxu0 %v2127
    %2202 = vmatprep.subr.mxu0 0.0
    %2203 = vmatpush1.msra.mxu0 %v2126
    %2204 = vmatprep.subr.mxu0 0.0
    %2205 = vmatpush1.msra.mxu0 %v2125
    %2206 = vmatprep.subr.mxu0 0.0
    %2207 = vmatpush1.msra.mxu0 %v2124
    %2208 = vmatprep.subr.mxu0 0.0
    %2209 = vmatpush1.msra.mxu0 %v2123
    %2210 = vmatprep.subr.mxu0 0.0
    %2211 = vmatpush2.msra.mxu0 0.0
    %2212 = vmatprep.subr.mxu0 0.0
    %2213 = vmatpush2.msra.mxu0 0.0
    %2214 = vmatprep.subr.mxu0 0.0
    %2215 = vmatpush2.msra.mxu0 0.0
    %2216 = vmatprep.subr.mxu0 0.0
    %2217 = vmatpush2.msra.mxu0 0.0
    %2218 = vmatprep.subr.mxu0 0.0
    %2219 = vmatpush2.msra.mxu0 0.0
    %2220 = vmatprep.subr.mxu0 0.0
    %2221 = vmatpush2.msra.mxu0 0.0
    %2222 = vmatprep.subr.mxu0 0.0
    %2223 = vmatpush2.msra.mxu0 0.0
    %2224 = vmatprep.subr.mxu0 0.0
    %2225 = vmatpush2.msra.mxu0 0.0
    %2226 = vmatprep.subr.mxu0 0.0
    %2227 = vmatpush2.msra.mxu0 0.0
    %2228 = vmatprep.subr.mxu0 0.0
    %2229 = vmatpush2.msra.mxu0 0.0
    %2230 = vmatprep.subr.mxu0 0.0
    %2231 = vmatpush2.msra.mxu0 0.0
    %2232 = vmatprep.subr.mxu0 0.0
    %2233 = vmatpush2.msra.mxu0 0.0
    %2234 = vmatprep.subr.mxu0 0.0
    %2235 = vmatpush2.msra.mxu0 0.0
    %2236 = vmatprep.subr.mxu0 0.0
    %2237 = vmatpush2.msra.mxu0 0.0
    %2238 = vmatprep.subr.mxu0 0.0
    %2239 = vmatpush2.msra.mxu0 0.0
    %2240 = vmatprep.subr.mxu0 0.0
    %2241 = vmatpush2.msra.mxu0 0.0
    %2242 = vmatprep.mubr.f32.mxu0 0.0
    %2243 = vmatmul.mubr.f32.gmra.mxu0 %v2176
    %v2244 = vpop.f32.mrf.mxu0
    %v2245 = vadd.f32 0.0, %v2244
    %v2246 = vpop.f32.mrf.mxu0
    %2247 = vdwg.mxu0
    %v2248 = vsel %vm784, %v2113, 0
    %2250 = vmatprep.subr.mxu0 0.0
    %2251 = vmatpush1.msra.mxu0 0.0
    %2252 = vmatprep.subr.mxu0 0.0
    %2253 = vmatpush1.msra.mxu0 0.0
    %2254 = vmatprep.subr.mxu0 0.0
    %2255 = vmatpush1.msra.mxu0 0.0
    %2256 = vmatprep.subr.mxu0 0.0
    %2257 = vmatpush1.msra.mxu0 0.0
    %2258 = vmatprep.subr.mxu0 0.0
    %2259 = vmatpush1.msra.mxu0 0.0
    %2260 = vmatprep.subr.mxu0 0.0
    %2261 = vmatpush1.msra.mxu0 0.0
    %2262 = vmatprep.subr.mxu0 0.0
    %2263 = vmatpush1.msra.mxu0 0.0
    %2264 = vmatprep.subr.mxu0 0.0
    %2265 = vmatpush1.msra.mxu0 0.0
    %2266 = vmatprep.subr.mxu0 0.0
    %2267 = vmatpush1.msra.mxu0 0.0
    %2268 = vmatprep.subr.mxu0 0.0
    %2269 = vmatpush1.msra.mxu0 %v2121
    %2270 = vmatprep.subr.mxu0 0.0
    %2271 = vmatpush1.msra.mxu0 %v2120
    %2272 = vmatprep.subr.mxu0 0.0
    %2273 = vmatpush1.msra.mxu0 %v2119
    %2274 = vmatprep.subr.mxu0 0.0
    %2275 = vmatpush1.msra.mxu0 %v2118
    %2276 = vmatprep.subr.mxu0 0.0
    %2277 = vmatpush1.msra.mxu0 %v2117
    %2278 = vmatprep.subr.mxu0 0.0
    %2279 = vmatpush1.msra.mxu0 %v2116
    %2280 = vmatprep.subr.mxu0 0.0
    %2281 = vmatpush1.msra.mxu0 %v2115
    %2282 = vmatprep.subr.mxu0 0.0
    %2283 = vmatpush2.msra.mxu0 0.0
    %2284 = vmatprep.subr.mxu0 0.0
    %2285 = vmatpush2.msra.mxu0 0.0
    %2286 = vmatprep.subr.mxu0 0.0
    %2287 = vmatpush2.msra.mxu0 0.0
    %2288 = vmatprep.subr.mxu0 0.0
    %2289 = vmatpush2.msra.mxu0 0.0
    %2290 = vmatprep.subr.mxu0 0.0
    %2291 = vmatpush2.msra.mxu0 0.0
    %2292 = vmatprep.subr.mxu0 0.0
    %2293 = vmatpush2.msra.mxu0 0.0
    %2294 = vmatprep.subr.mxu0 0.0
    %2295 = vmatpush2.msra.mxu0 0.0
    %2296 = vmatprep.subr.mxu0 0.0
    %2297 = vmatpush2.msra.mxu0 0.0
    %2298 = vmatprep.subr.mxu0 0.0
    %2299 = vmatpush2.msra.mxu0 0.0
    %2300 = vmatprep.subr.mxu0 0.0
    %2301 = vmatpush2.msra.mxu0 0.0
    %2302 = vmatprep.subr.mxu0 0.0
    %2303 = vmatpush2.msra.mxu0 0.0
    %2304 = vmatprep.subr.mxu0 0.0
    %2305 = vmatpush2.msra.mxu0 0.0
    %2306 = vmatprep.subr.mxu0 0.0
    %2307 = vmatpush2.msra.mxu0 0.0
    %2308 = vmatprep.subr.mxu0 0.0
    %2309 = vmatpush2.msra.mxu0 0.0
    %2310 = vmatprep.subr.mxu0 0.0
    %2311 = vmatpush2.msra.mxu0 0.0
    %2312 = vmatprep.subr.mxu0 0.0
    %2313 = vmatpush2.msra.mxu0 0.0
    %2314 = vmatprep.mubr.f32.mxu0 0.0
    %2315 = vmatmul.mubr.f32.gmra.mxu0 %v2248
    %v2316 = vpop.f32.mrf.mxu0
    %v2317 = vadd.f32 %v2245, %v2316
    %v2318 = vpop.f32.mrf.mxu0
    %2319 = vdwg.mxu0
    %v2320 = vrot.slane %v2113, 2
    %v2321 = vsel %vm784, %v2320, 0
    %2323 = vmatprep.subr.mxu0 0.0
    %2324 = vmatpush1.msra.mxu0 0.0
    %2325 = vmatprep.subr.mxu0 0.0
    %2326 = vmatpush1.msra.mxu0 0.0
    %2327 = vmatprep.subr.mxu0 0.0
    %2328 = vmatpush1.msra.mxu0 0.0
    %2329 = vmatprep.subr.mxu0 0.0
    %2330 = vmatpush1.msra.mxu0 0.0
    %2331 = vmatprep.subr.mxu0 0.0
    %2332 = vmatpush1.msra.mxu0 0.0
    %2333 = vmatprep.subr.mxu0 0.0
    %2334 = vmatpush1.msra.mxu0 0.0
    %2335 = vmatprep.subr.mxu0 0.0
    %2336 = vmatpush1.msra.mxu0 0.0
    %2337 = vmatprep.subr.mxu0 0.0
    %2338 = vmatpush1.msra.mxu0 0.0
    %2339 = vmatprep.subr.mxu0 0.0
    %2340 = vmatpush1.msra.mxu0 0.0
    %2341 = vmatprep.subr.mxu0 0.0
    %2342 = vmatpush1.msra.mxu0 %v2137
    %2343 = vmatprep.subr.mxu0 0.0
    %2344 = vmatpush1.msra.mxu0 %v2136
    %2345 = vmatprep.subr.mxu0 0.0
    %2346 = vmatpush1.msra.mxu0 %v2135
    %2347 = vmatprep.subr.mxu0 0.0
    %2348 = vmatpush1.msra.mxu0 %v2134
    %2349 = vmatprep.subr.mxu0 0.0
    %2350 = vmatpush1.msra.mxu0 %v2133
    %2351 = vmatprep.subr.mxu0 0.0
    %2352 = vmatpush1.msra.mxu0 %v2132
    %2353 = vmatprep.subr.mxu0 0.0
    %2354 = vmatpush1.msra.mxu0 %v2131
    %2355 = vmatprep.subr.mxu0 0.0
    %2356 = vmatpush2.msra.mxu0 0.0
    %2357 = vmatprep.subr.mxu0 0.0
    %2358 = vmatpush2.msra.mxu0 0.0
    %2359 = vmatprep.subr.mxu0 0.0
    %2360 = vmatpush2.msra.mxu0 0.0
    %2361 = vmatprep.subr.mxu0 0.0
    %2362 = vmatpush2.msra.mxu0 0.0
    %2363 = vmatprep.subr.mxu0 0.0
    %2364 = vmatpush2.msra.mxu0 0.0
    %2365 = vmatprep.subr.mxu0 0.0
    %2366 = vmatpush2.msra.mxu0 0.0
    %2367 = vmatprep.subr.mxu0 0.0
    %2368 = vmatpush2.msra.mxu0 0.0
    %2369 = vmatprep.subr.mxu0 0.0
    %2370 = vmatpush2.msra.mxu0 0.0
    %2371 = vmatprep.subr.mxu0 0.0
    %2372 = vmatpush2.msra.mxu0 0.0
    %2373 = vmatprep.subr.mxu0 0.0
    %2374 = vmatpush2.msra.mxu0 0.0
    %2375 = vmatprep.subr.mxu0 0.0
    %2376 = vmatpush2.msra.mxu0 0.0
    %2377 = vmatprep.subr.mxu0 0.0
    %2378 = vmatpush2.msra.mxu0 0.0
    %2379 = vmatprep.subr.mxu0 0.0
    %2380 = vmatpush2.msra.mxu0 0.0
    %2381 = vmatprep.subr.mxu0 0.0
    %2382 = vmatpush2.msra.mxu0 0.0
    %2383 = vmatprep.subr.mxu0 0.0
    %2384 = vmatpush2.msra.mxu0 0.0
    %2385 = vmatprep.subr.mxu0 0.0
    %2386 = vmatpush2.msra.mxu0 0.0
    %2387 = vmatprep.mubr.f32.mxu0 0.0
    %2388 = vmatmul.mubr.f32.gmra.mxu0 %v2321
    %v2389 = vpop.f32.mrf.mxu0
    %v2390 = vadd.f32 0.0, %v2389
    %v2391 = vpop.f32.mrf.mxu0
    %2392 = vdwg.mxu0
    %v2393 = vadd.f32 %v2317, %v2390
    %v2394 = vrot.slane %v2113, 3
    %v2395 = vsel %vm784, %v2394, 0
    %2397 = vmatprep.subr.mxu0 0.0
    %2398 = vmatpush1.msra.mxu0 0.0
    %2399 = vmatprep.subr.mxu0 0.0
    %2400 = vmatpush1.msra.mxu0 0.0
    %2401 = vmatprep.subr.mxu0 0.0
    %2402 = vmatpush1.msra.mxu0 0.0
    %2403 = vmatprep.subr.mxu0 0.0
    %2404 = vmatpush1.msra.mxu0 0.0
    %2405 = vmatprep.subr.mxu0 0.0
    %2406 = vmatpush1.msra.mxu0 0.0
    %2407 = vmatprep.subr.mxu0 0.0
    %2408 = vmatpush1.msra.mxu0 0.0
    %2409 = vmatprep.subr.mxu0 0.0
    %2410 = vmatpush1.msra.mxu0 0.0
    %2411 = vmatprep.subr.mxu0 0.0
    %2412 = vmatpush1.msra.mxu0 0.0
    %2413 = vmatprep.subr.mxu0 0.0
    %2414 = vmatpush1.msra.mxu0 0.0
    %2415 = vmatprep.subr.mxu0 0.0
    %2416 = vmatpush1.msra.mxu0 %v2145
    %2417 = vmatprep.subr.mxu0 0.0
    %2418 = vmatpush1.msra.mxu0 %v2144
    %2419 = vmatprep.subr.mxu0 0.0
    %2420 = vmatpush1.msra.mxu0 %v2143
    %2421 = vmatprep.subr.mxu0 0.0
    %2422 = vmatpush1.msra.mxu0 %v2142
    %2423 = vmatprep.subr.mxu0 0.0
    %2424 = vmatpush1.msra.mxu0 %v2141
    %2425 = vmatprep.subr.mxu0 0.0
    %2426 = vmatpush1.msra.mxu0 %v2140
    %2427 = vmatprep.subr.mxu0 0.0
    %2428 = vmatpush1.msra.mxu0 %v2139
    %2429 = vmatprep.subr.mxu0 0.0
    %2430 = vmatpush2.msra.mxu0 0.0
    %2431 = vmatprep.subr.mxu0 0.0
    %2432 = vmatpush2.msra.mxu0 0.0
    %2433 = vmatprep.subr.mxu0 0.0
    %2434 = vmatpush2.msra.mxu0 0.0
    %2435 = vmatprep.subr.mxu0 0.0
    %2436 = vmatpush2.msra.mxu0 0.0
    %2437 = vmatprep.subr.mxu0 0.0
    %2438 = vmatpush2.msra.mxu0 0.0
    %2439 = vmatprep.subr.mxu0 0.0
    %2440 = vmatpush2.msra.mxu0 0.0
    %2441 = vmatprep.subr.mxu0 0.0
    %2442 = vmatpush2.msra.mxu0 0.0
    %2443 = vmatprep.subr.mxu0 0.0
    %2444 = vmatpush2.msra.mxu0 0.0
    %2445 = vmatprep.subr.mxu0 0.0
    %2446 = vmatpush2.msra.mxu0 0.0
    %2447 = vmatprep.subr.mxu0 0.0
    %2448 = vmatpush2.msra.mxu0 0.0
    %2449 = vmatprep.subr.mxu0 0.0
    %2450 = vmatpush2.msra.mxu0 0.0
    %2451 = vmatprep.subr.mxu0 0.0
    %2452 = vmatpush2.msra.mxu0 0.0
    %2453 = vmatprep.subr.mxu0 0.0
    %2454 = vmatpush2.msra.mxu0 0.0
    %2455 = vmatprep.subr.mxu0 0.0
    %2456 = vmatpush2.msra.mxu0 0.0
    %2457 = vmatprep.subr.mxu0 0.0
    %2458 = vmatpush2.msra.mxu0 0.0
    %2459 = vmatprep.subr.mxu0 0.0
    %2460 = vmatpush2.msra.mxu0 0.0
    %2461 = vmatprep.mubr.f32.mxu0 0.0
    %2462 = vmatmul.mubr.f32.gmra.mxu0 %v2395
    %v2463 = vpop.f32.mrf.mxu0
    %v2464 = vadd.f32 0.0, %v2463
    %v2465 = vpop.f32.mrf.mxu0
    %2466 = vdwg.mxu0
    %v2467 = vadd.f32 %v2393, %v2464
    %v2468 = vrot.slane %v2113, 4
    %v2469 = vsel %vm784, %v2468, 0
    %2471 = vmatprep.subr.mxu0 0.0
    %2472 = vmatpush1.msra.mxu0 0.0
    %2473 = vmatprep.subr.mxu0 0.0
    %2474 = vmatpush1.msra.mxu0 0.0
    %2475 = vmatprep.subr.mxu0 0.0
    %2476 = vmatpush1.msra.mxu0 0.0
    %2477 = vmatprep.subr.mxu0 0.0
    %2478 = vmatpush1.msra.mxu0 0.0
    %2479 = vmatprep.subr.mxu0 0.0
    %2480 = vmatpush1.msra.mxu0 0.0
    %2481 = vmatprep.subr.mxu0 0.0
    %2482 = vmatpush1.msra.mxu0 0.0
    %2483 = vmatprep.subr.mxu0 0.0
    %2484 = vmatpush1.msra.mxu0 0.0
    %2485 = vmatprep.subr.mxu0 0.0
    %2486 = vmatpush1.msra.mxu0 0.0
    %2487 = vmatprep.subr.mxu0 0.0
    %2488 = vmatpush1.msra.mxu0 0.0
    %2489 = vmatprep.subr.mxu0 0.0
    %2490 = vmatpush1.msra.mxu0 %v2153
    %2491 = vmatprep.subr.mxu0 0.0
    %2492 = vmatpush1.msra.mxu0 %v2152
    %2493 = vmatprep.subr.mxu0 0.0
    %2494 = vmatpush1.msra.mxu0 %v2151
    %2495 = vmatprep.subr.mxu0 0.0
    %2496 = vmatpush1.msra.mxu0 %v2150
    %2497 = vmatprep.subr.mxu0 0.0
    %2498 = vmatpush1.msra.mxu0 %v2149
    %2499 = vmatprep.subr.mxu0 0.0
    %2500 = vmatpush1.msra.mxu0 %v2148
    %2501 = vmatprep.subr.mxu0 0.0
    %2502 = vmatpush1.msra.mxu0 %v2147
    %2503 = vmatprep.subr.mxu0 0.0
    %2504 = vmatpush2.msra.mxu0 0.0
    %2505 = vmatprep.subr.mxu0 0.0
    %2506 = vmatpush2.msra.mxu0 0.0
    %2507 = vmatprep.subr.mxu0 0.0
    %2508 = vmatpush2.msra.mxu0 0.0
    %2509 = vmatprep.subr.mxu0 0.0
    %2510 = vmatpush2.msra.mxu0 0.0
    %2511 = vmatprep.subr.mxu0 0.0
    %2512 = vmatpush2.msra.mxu0 0.0
    %2513 = vmatprep.subr.mxu0 0.0
    %2514 = vmatpush2.msra.mxu0 0.0
    %2515 = vmatprep.subr.mxu0 0.0
    %2516 = vmatpush2.msra.mxu0 0.0
    %2517 = vmatprep.subr.mxu0 0.0
    %2518 = vmatpush2.msra.mxu0 0.0
    %2519 = vmatprep.subr.mxu0 0.0
    %2520 = vmatpush2.msra.mxu0 0.0
    %2521 = vmatprep.subr.mxu0 0.0
    %2522 = vmatpush2.msra.mxu0 0.0
    %2523 = vmatprep.subr.mxu0 0.0
    %2524 = vmatpush2.msra.mxu0 0.0
    %2525 = vmatprep.subr.mxu0 0.0
    %2526 = vmatpush2.msra.mxu0 0.0
    %2527 = vmatprep.subr.mxu0 0.0
    %2528 = vmatpush2.msra.mxu0 0.0
    %2529 = vmatprep.subr.mxu0 0.0
    %2530 = vmatpush2.msra.mxu0 0.0
    %2531 = vmatprep.subr.mxu0 0.0
    %2532 = vmatpush2.msra.mxu0 0.0
    %2533 = vmatprep.subr.mxu0 0.0
    %2534 = vmatpush2.msra.mxu0 0.0
    %2535 = vmatprep.mubr.f32.mxu0 0.0
    %2536 = vmatmul.mubr.f32.gmra.mxu0 %v2469
    %v2537 = vpop.f32.mrf.mxu0
    %v2538 = vadd.f32 0.0, %v2537
    %v2539 = vpop.f32.mrf.mxu0
    %2540 = vdwg.mxu0
    %v2541 = vadd.f32 %v2467, %v2538
    %v2542 = vrot.slane %v2113, 5
    %v2543 = vsel %vm784, %v2542, 0
    %2545 = vmatprep.subr.mxu0 0.0
    %2546 = vmatpush1.msra.mxu0 0.0
    %2547 = vmatprep.subr.mxu0 0.0
    %2548 = vmatpush1.msra.mxu0 0.0
    %2549 = vmatprep.subr.mxu0 0.0
    %2550 = vmatpush1.msra.mxu0 0.0
    %2551 = vmatprep.subr.mxu0 0.0
    %2552 = vmatpush1.msra.mxu0 0.0
    %2553 = vmatprep.subr.mxu0 0.0
    %2554 = vmatpush1.msra.mxu0 0.0
    %2555 = vmatprep.subr.mxu0 0.0
    %2556 = vmatpush1.msra.mxu0 0.0
    %2557 = vmatprep.subr.mxu0 0.0
    %2558 = vmatpush1.msra.mxu0 0.0
    %2559 = vmatprep.subr.mxu0 0.0
    %2560 = vmatpush1.msra.mxu0 0.0
    %2561 = vmatprep.subr.mxu0 0.0
    %2562 = vmatpush1.msra.mxu0 0.0
    %2563 = vmatprep.subr.mxu0 0.0
    %2564 = vmatpush1.msra.mxu0 %v2161
    %2565 = vmatprep.subr.mxu0 0.0
    %2566 = vmatpush1.msra.mxu0 %v2160
    %2567 = vmatprep.subr.mxu0 0.0
    %2568 = vmatpush1.msra.mxu0 %v2159
    %2569 = vmatprep.subr.mxu0 0.0
    %2570 = vmatpush1.msra.mxu0 %v2158
    %2571 = vmatprep.subr.mxu0 0.0
    %2572 = vmatpush1.msra.mxu0 %v2157
    %2573 = vmatprep.subr.mxu0 0.0
    %2574 = vmatpush1.msra.mxu0 %v2156
    %2575 = vmatprep.subr.mxu0 0.0
    %2576 = vmatpush1.msra.mxu0 %v2155
    %2577 = vmatprep.subr.mxu0 0.0
    %2578 = vmatpush2.msra.mxu0 0.0
    %2579 = vmatprep.subr.mxu0 0.0
    %2580 = vmatpush2.msra.mxu0 0.0
    %2581 = vmatprep.subr.mxu0 0.0
    %2582 = vmatpush2.msra.mxu0 0.0
    %2583 = vmatprep.subr.mxu0 0.0
    %2584 = vmatpush2.msra.mxu0 0.0
    %2585 = vmatprep.subr.mxu0 0.0
    %2586 = vmatpush2.msra.mxu0 0.0
    %2587 = vmatprep.subr.mxu0 0.0
    %2588 = vmatpush2.msra.mxu0 0.0
    %2589 = vmatprep.subr.mxu0 0.0
    %2590 = vmatpush2.msra.mxu0 0.0
    %2591 = vmatprep.subr.mxu0 0.0
    %2592 = vmatpush2.msra.mxu0 0.0
    %2593 = vmatprep.subr.mxu0 0.0
    %2594 = vmatpush2.msra.mxu0 0.0
    %2595 = vmatprep.subr.mxu0 0.0
    %2596 = vmatpush2.msra.mxu0 0.0
    %2597 = vmatprep.subr.mxu0 0.0
    %2598 = vmatpush2.msra.mxu0 0.0
    %2599 = vmatprep.subr.mxu0 0.0
    %2600 = vmatpush2.msra.mxu0 0.0
    %2601 = vmatprep.subr.mxu0 0.0
    %2602 = vmatpush2.msra.mxu0 0.0
    %2603 = vmatprep.subr.mxu0 0.0
    %2604 = vmatpush2.msra.mxu0 0.0
    %2605 = vmatprep.subr.mxu0 0.0
    %2606 = vmatpush2.msra.mxu0 0.0
    %2607 = vmatprep.subr.mxu0 0.0
    %2608 = vmatpush2.msra.mxu0 0.0
    %2609 = vmatprep.mubr.f32.mxu0 0.0
    %2610 = vmatmul.mubr.f32.gmra.mxu0 %v2543
    %v2611 = vpop.f32.mrf.mxu0
    %v2612 = vadd.f32 0.0, %v2611
    %v2613 = vpop.f32.mrf.mxu0
    %2614 = vdwg.mxu0
    %v2615 = vadd.f32 %v2541, %v2612
    %v2616 = vrot.slane %v2113, 6
    %v2617 = vsel %vm784, %v2616, 0
    %2619 = vmatprep.subr.mxu0 0.0
    %2620 = vmatpush1.msra.mxu0 0.0
    %2621 = vmatprep.subr.mxu0 0.0
    %2622 = vmatpush1.msra.mxu0 0.0
    %2623 = vmatprep.subr.mxu0 0.0
    %2624 = vmatpush1.msra.mxu0 0.0
    %2625 = vmatprep.subr.mxu0 0.0
    %2626 = vmatpush1.msra.mxu0 0.0
    %2627 = vmatprep.subr.mxu0 0.0
    %2628 = vmatpush1.msra.mxu0 0.0
    %2629 = vmatprep.subr.mxu0 0.0
    %2630 = vmatpush1.msra.mxu0 0.0
    %2631 = vmatprep.subr.mxu0 0.0
    %2632 = vmatpush1.msra.mxu0 0.0
    %2633 = vmatprep.subr.mxu0 0.0
    %2634 = vmatpush1.msra.mxu0 0.0
    %2635 = vmatprep.subr.mxu0 0.0
    %2636 = vmatpush1.msra.mxu0 0.0
    %2637 = vmatprep.subr.mxu0 0.0
    %2638 = vmatpush1.msra.mxu0 %v2169
    %2639 = vmatprep.subr.mxu0 0.0
    %2640 = vmatpush1.msra.mxu0 %v2168
    %2641 = vmatprep.subr.mxu0 0.0
    %2642 = vmatpush1.msra.mxu0 %v2167
    %2643 = vmatprep.subr.mxu0 0.0
    %2644 = vmatpush1.msra.mxu0 %v2166
    %2645 = vmatprep.subr.mxu0 0.0
    %2646 = vmatpush1.msra.mxu0 %v2165
    %2647 = vmatprep.subr.mxu0 0.0
    %2648 = vmatpush1.msra.mxu0 %v2164
    %2649 = vmatprep.subr.mxu0 0.0
    %2650 = vmatpush1.msra.mxu0 %v2163
    %2651 = vmatprep.subr.mxu0 0.0
    %2652 = vmatpush2.msra.mxu0 0.0
    %2653 = vmatprep.subr.mxu0 0.0
    %2654 = vmatpush2.msra.mxu0 0.0
    %2655 = vmatprep.subr.mxu0 0.0
    %2656 = vmatpush2.msra.mxu0 0.0
    %2657 = vmatprep.subr.mxu0 0.0
    %2658 = vmatpush2.msra.mxu0 0.0
    %2659 = vmatprep.subr.mxu0 0.0
    %2660 = vmatpush2.msra.mxu0 0.0
    %2661 = vmatprep.subr.mxu0 0.0
    %2662 = vmatpush2.msra.mxu0 0.0
    %2663 = vmatprep.subr.mxu0 0.0
    %2664 = vmatpush2.msra.mxu0 0.0
    %2665 = vmatprep.subr.mxu0 0.0
    %2666 = vmatpush2.msra.mxu0 0.0
    %2667 = vmatprep.subr.mxu0 0.0
    %2668 = vmatpush2.msra.mxu0 0.0
    %2669 = vmatprep.subr.mxu0 0.0
    %2670 = vmatpush2.msra.mxu0 0.0
    %2671 = vmatprep.subr.mxu0 0.0
    %2672 = vmatpush2.msra.mxu0 0.0
    %2673 = vmatprep.subr.mxu0 0.0
    %2674 = vmatpush2.msra.mxu0 0.0
    %2675 = vmatprep.subr.mxu0 0.0
    %2676 = vmatpush2.msra.mxu0 0.0
    %2677 = vmatprep.subr.mxu0 0.0
    %2678 = vmatpush2.msra.mxu0 0.0
    %2679 = vmatprep.subr.mxu0 0.0
    %2680 = vmatpush2.msra.mxu0 0.0
    %2681 = vmatprep.subr.mxu0 0.0
    %2682 = vmatpush2.msra.mxu0 0.0
    %2683 = vmatprep.mubr.f32.mxu0 0.0
    %2684 = vmatmul.mubr.f32.gmra.mxu0 %v2617
    %v2685 = vpop.f32.mrf.mxu0
    %v2686 = vadd.f32 0.0, %v2685
    %v2687 = vpop.f32.mrf.mxu0
    %2688 = vdwg.mxu0
    %v2689 = vadd.f32 %v2615, %v2686
    %v2690 = vmax.f32 %v2689, 0.0
    %vm2691 = vcmask 261120
    %v2693 = vsel %vm2691, %v2690, 0
    %2695 = vmatprep.subr.mxu0 0.0
    %2696 = vmatpush1.msra.mxu0 0.0
    %2697 = vmatprep.subr.mxu0 0.0
    %2698 = vmatpush1.msra.mxu0 0.0
    %2699 = vmatprep.subr.mxu0 0.0
    %2700 = vmatpush1.msra.mxu0 0.0
    %2701 = vmatprep.subr.mxu0 0.0
    %2702 = vmatpush1.msra.mxu0 0.0
    %2703 = vmatprep.subr.mxu0 0.0
    %2704 = vmatpush1.msra.mxu0 0.0
    %2705 = vmatprep.subr.mxu0 0.0
    %2706 = vmatpush1.msra.mxu0 0.0
    %2707 = vmatprep.subr.mxu0 0.0
    %2708 = vmatpush1.msra.mxu0 0.0
    %2709 = vmatprep.subr.mxu0 0.0
    %2710 = vmatpush1.msra.mxu0 0.0
    %2711 = vmatprep.subr.mxu0 0.0
    %2712 = vmatpush1.msra.mxu0 0.0
    %2713 = vmatprep.subr.mxu0 0.0
    %2714 = vmatpush1.msra.mxu0 0.0
    %2715 = vmatprep.subr.mxu0 0.0
    %2716 = vmatpush1.msra.mxu0 0.0
    %2717 = vmatprep.subr.mxu0 0.0
    %2718 = vmatpush1.msra.mxu0 0.0
    %2719 = vmatprep.subr.mxu0 0.0
    %2720 = vmatpush1.msra.mxu0 %v2173
    %2721 = vmatprep.subr.mxu0 0.0
    %2722 = vmatpush1.msra.mxu0 %v2172
    %2723 = vmatprep.subr.mxu0 0.0
    %2724 = vmatpush1.msra.mxu0 %v2171
    %2725 = vmatprep.subr.mxu0 0.0
    %2726 = vmatpush1.msra.mxu0 %v2170
    %2727 = vmatprep.subr.mxu0 0.0
    %2728 = vmatpush2.msra.mxu0 0.0
    %2729 = vmatprep.subr.mxu0 0.0
    %2730 = vmatpush2.msra.mxu0 0.0
    %2731 = vmatprep.subr.mxu0 0.0
    %2732 = vmatpush2.msra.mxu0 0.0
    %2733 = vmatprep.subr.mxu0 0.0
    %2734 = vmatpush2.msra.mxu0 0.0
    %2735 = vmatprep.subr.mxu0 0.0
    %2736 = vmatpush2.msra.mxu0 0.0
    %2737 = vmatprep.subr.mxu0 0.0
    %2738 = vmatpush2.msra.mxu0 0.0
    %2739 = vmatprep.subr.mxu0 0.0
    %2740 = vmatpush2.msra.mxu0 0.0
    %2741 = vmatprep.subr.mxu0 0.0
    %2742 = vmatpush2.msra.mxu0 0.0
    %2743 = vmatprep.subr.mxu0 0.0
    %2744 = vmatpush2.msra.mxu0 0.0
    %2745 = vmatprep.subr.mxu0 0.0
    %2746 = vmatpush2.msra.mxu0 0.0
    %2747 = vmatprep.subr.mxu0 0.0
    %2748 = vmatpush2.msra.mxu0 0.0
    %2749 = vmatprep.subr.mxu0 0.0
    %2750 = vmatpush2.msra.mxu0 0.0
    %2751 = vmatprep.subr.mxu0 0.0
    %2752 = vmatpush2.msra.mxu0 0.0
    %2753 = vmatprep.subr.mxu0 0.0
    %2754 = vmatpush2.msra.mxu0 0.0
    %2755 = vmatprep.subr.mxu0 0.0
    %2756 = vmatpush2.msra.mxu0 0.0
    %2757 = vmatprep.subr.mxu0 0.0
    %2758 = vmatpush2.msra.mxu0 0.0
    %2759 = vmatprep.mubr.f32.mxu0 0.0
    %2760 = vmatmul.mubr.f32.gmra.mxu0 %v2693
    %v2761 = vpop.f32.mrf.mxu0
    %v2762 = vadd.f32 0.0, %v2761
    %v2763 = vpop.f32.mrf.mxu0
    %2764 = vdwg.mxu0
    %vm2765 = vcmask 73728
    %2766 = vst.msk [vmem:[#allocation3] sm:$0x1] %vm2765, %v2762
    %v2768 = vsel %vm784, %v2114, 0
    %2770 = vmatprep.subr.mxu0 0.0
    %2771 = vmatpush1.msra.mxu0 0.0
    %2772 = vmatprep.subr.mxu0 0.0
    %2773 = vmatpush1.msra.mxu0 0.0
    %2774 = vmatprep.subr.mxu0 0.0
    %2775 = vmatpush1.msra.mxu0 0.0
    %2776 = vmatprep.subr.mxu0 0.0
    %2777 = vmatpush1.msra.mxu0 0.0
    %2778 = vmatprep.subr.mxu0 0.0
    %2779 = vmatpush1.msra.mxu0 0.0
    %2780 = vmatprep.subr.mxu0 0.0
    %2781 = vmatpush1.msra.mxu0 0.0
    %2782 = vmatprep.subr.mxu0 0.0
    %2783 = vmatpush1.msra.mxu0 0.0
    %2784 = vmatprep.subr.mxu0 0.0
    %2785 = vmatpush1.msra.mxu0 0.0
    %2786 = vmatprep.subr.mxu0 0.0
    %2787 = vmatpush1.msra.mxu0 0.0
    %2788 = vmatprep.subr.mxu0 0.0
    %2789 = vmatpush1.msra.mxu0 %v2129
    %2790 = vmatprep.subr.mxu0 0.0
    %2791 = vmatpush1.msra.mxu0 %v2128
    %2792 = vmatprep.subr.mxu0 0.0
    %2793 = vmatpush1.msra.mxu0 %v2127
    %2794 = vmatprep.subr.mxu0 0.0
    %2795 = vmatpush1.msra.mxu0 %v2126
    %2796 = vmatprep.subr.mxu0 0.0
    %2797 = vmatpush1.msra.mxu0 %v2125
    %2798 = vmatprep.subr.mxu0 0.0
    %2799 = vmatpush1.msra.mxu0 %v2124
    %2800 = vmatprep.subr.mxu0 0.0
    %2801 = vmatpush1.msra.mxu0 %v2123
    %2802 = vmatprep.subr.mxu0 0.0
    %2803 = vmatpush2.msra.mxu0 0.0
    %2804 = vmatprep.subr.mxu0 0.0
    %2805 = vmatpush2.msra.mxu0 0.0
    %2806 = vmatprep.subr.mxu0 0.0
    %2807 = vmatpush2.msra.mxu0 0.0
    %2808 = vmatprep.subr.mxu0 0.0
    %2809 = vmatpush2.msra.mxu0 0.0
    %2810 = vmatprep.subr.mxu0 0.0
    %2811 = vmatpush2.msra.mxu0 0.0
    %2812 = vmatprep.subr.mxu0 0.0
    %2813 = vmatpush2.msra.mxu0 0.0
    %2814 = vmatprep.subr.mxu0 0.0
    %2815 = vmatpush2.msra.mxu0 0.0
    %2816 = vmatprep.subr.mxu0 0.0
    %2817 = vmatpush2.msra.mxu0 0.0
    %2818 = vmatprep.subr.mxu0 0.0
    %2819 = vmatpush2.msra.mxu0 0.0
    %2820 = vmatprep.subr.mxu0 0.0
    %2821 = vmatpush2.msra.mxu0 0.0
    %2822 = vmatprep.subr.mxu0 0.0
    %2823 = vmatpush2.msra.mxu0 0.0
    %2824 = vmatprep.subr.mxu0 0.0
    %2825 = vmatpush2.msra.mxu0 0.0
    %2826 = vmatprep.subr.mxu0 0.0
    %2827 = vmatpush2.msra.mxu0 0.0
    %2828 = vmatprep.subr.mxu0 0.0
    %2829 = vmatpush2.msra.mxu0 0.0
    %2830 = vmatprep.subr.mxu0 0.0
    %2831 = vmatpush2.msra.mxu0 0.0
    %2832 = vmatprep.subr.mxu0 0.0
    %2833 = vmatpush2.msra.mxu0 0.0
    %2834 = vmatprep.mubr.f32.mxu0 0.0
    %2835 = vmatmul.mubr.f32.gmra.mxu0 %v2768
    %v2836 = vpop.f32.mrf.mxu0
    %v2837 = vadd.f32 0.0, %v2836
    %v2838 = vpop.f32.mrf.mxu0
    %2839 = vdwg.mxu0
    %v2840 = vrot.slane %v2113, 7
    %v2841 = vsel %vm784, %v2840, 0
    %2843 = vmatprep.subr.mxu0 0.0
    %2844 = vmatpush1.msra.mxu0 0.0
    %2845 = vmatprep.subr.mxu0 0.0
    %2846 = vmatpush1.msra.mxu0 0.0
    %2847 = vmatprep.subr.mxu0 0.0
    %2848 = vmatpush1.msra.mxu0 0.0
    %2849 = vmatprep.subr.mxu0 0.0
    %2850 = vmatpush1.msra.mxu0 0.0
    %2851 = vmatprep.subr.mxu0 0.0
    %2852 = vmatpush1.msra.mxu0 0.0
    %2853 = vmatprep.subr.mxu0 0.0
    %2854 = vmatpush1.msra.mxu0 0.0
    %2855 = vmatprep.subr.mxu0 0.0
    %2856 = vmatpush1.msra.mxu0 0.0
    %2857 = vmatprep.subr.mxu0 0.0
    %2858 = vmatpush1.msra.mxu0 0.0
    %2859 = vmatprep.subr.mxu0 0.0
    %2860 = vmatpush1.msra.mxu0 0.0
    %2861 = vmatprep.subr.mxu0 0.0
    %2862 = vmatpush1.msra.mxu0 %v2121
    %2863 = vmatprep.subr.mxu0 0.0
    %2864 = vmatpush1.msra.mxu0 %v2120
    %2865 = vmatprep.subr.mxu0 0.0
    %2866 = vmatpush1.msra.mxu0 %v2119
    %2867 = vmatprep.subr.mxu0 0.0
    %2868 = vmatpush1.msra.mxu0 %v2118
    %2869 = vmatprep.subr.mxu0 0.0
    %2870 = vmatpush1.msra.mxu0 %v2117
    %2871 = vmatprep.subr.mxu0 0.0
    %2872 = vmatpush1.msra.mxu0 %v2116
    %2873 = vmatprep.subr.mxu0 0.0
    %2874 = vmatpush1.msra.mxu0 %v2115
    %2875 = vmatprep.subr.mxu0 0.0
    %2876 = vmatpush2.msra.mxu0 0.0
    %2877 = vmatprep.subr.mxu0 0.0
    %2878 = vmatpush2.msra.mxu0 0.0
    %2879 = vmatprep.subr.mxu0 0.0
    %2880 = vmatpush2.msra.mxu0 0.0
    %2881 = vmatprep.subr.mxu0 0.0
    %2882 = vmatpush2.msra.mxu0 0.0
    %2883 = vmatprep.subr.mxu0 0.0
    %2884 = vmatpush2.msra.mxu0 0.0
    %2885 = vmatprep.subr.mxu0 0.0
    %2886 = vmatpush2.msra.mxu0 0.0
    %2887 = vmatprep.subr.mxu0 0.0
    %2888 = vmatpush2.msra.mxu0 0.0
    %2889 = vmatprep.subr.mxu0 0.0
    %2890 = vmatpush2.msra.mxu0 0.0
    %2891 = vmatprep.subr.mxu0 0.0
    %2892 = vmatpush2.msra.mxu0 0.0
    %2893 = vmatprep.subr.mxu0 0.0
    %2894 = vmatpush2.msra.mxu0 0.0
    %2895 = vmatprep.subr.mxu0 0.0
    %2896 = vmatpush2.msra.mxu0 0.0
    %2897 = vmatprep.subr.mxu0 0.0
    %2898 = vmatpush2.msra.mxu0 0.0
    %2899 = vmatprep.subr.mxu0 0.0
    %2900 = vmatpush2.msra.mxu0 0.0
    %2901 = vmatprep.subr.mxu0 0.0
    %2902 = vmatpush2.msra.mxu0 0.0
    %2903 = vmatprep.subr.mxu0 0.0
    %2904 = vmatpush2.msra.mxu0 0.0
    %2905 = vmatprep.subr.mxu0 0.0
    %2906 = vmatpush2.msra.mxu0 0.0
    %2907 = vmatprep.mubr.f32.mxu0 0.0
    %2908 = vmatmul.mubr.f32.gmra.mxu0 %v2841
    %v2909 = vpop.f32.mrf.mxu0
    %v2910 = vadd.f32 %v2837, %v2909
    %v2911 = vpop.f32.mrf.mxu0
    %2912 = vdwg.mxu0
    %v2913 = vrot.slane %v2114, 1
    %v2914 = vsel %vm784, %v2913, 0
    %2916 = vmatprep.subr.mxu0 0.0
    %2917 = vmatpush1.msra.mxu0 0.0
    %2918 = vmatprep.subr.mxu0 0.0
    %2919 = vmatpush1.msra.mxu0 0.0
    %2920 = vmatprep.subr.mxu0 0.0
    %2921 = vmatpush1.msra.mxu0 0.0
    %2922 = vmatprep.subr.mxu0 0.0
    %2923 = vmatpush1.msra.mxu0 0.0
    %2924 = vmatprep.subr.mxu0 0.0
    %2925 = vmatpush1.msra.mxu0 0.0
    %2926 = vmatprep.subr.mxu0 0.0
    %2927 = vmatpush1.msra.mxu0 0.0
    %2928 = vmatprep.subr.mxu0 0.0
    %2929 = vmatpush1.msra.mxu0 0.0
    %2930 = vmatprep.subr.mxu0 0.0
    %2931 = vmatpush1.msra.mxu0 0.0
    %2932 = vmatprep.subr.mxu0 0.0
    %2933 = vmatpush1.msra.mxu0 0.0
    %2934 = vmatprep.subr.mxu0 0.0
    %2935 = vmatpush1.msra.mxu0 %v2137
    %2936 = vmatprep.subr.mxu0 0.0
    %2937 = vmatpush1.msra.mxu0 %v2136
    %2938 = vmatprep.subr.mxu0 0.0
    %2939 = vmatpush1.msra.mxu0 %v2135
    %2940 = vmatprep.subr.mxu0 0.0
    %2941 = vmatpush1.msra.mxu0 %v2134
    %2942 = vmatprep.subr.mxu0 0.0
    %2943 = vmatpush1.msra.mxu0 %v2133
    %2944 = vmatprep.subr.mxu0 0.0
    %2945 = vmatpush1.msra.mxu0 %v2132
    %2946 = vmatprep.subr.mxu0 0.0
    %2947 = vmatpush1.msra.mxu0 %v2131
    %2948 = vmatprep.subr.mxu0 0.0
    %2949 = vmatpush2.msra.mxu0 0.0
    %2950 = vmatprep.subr.mxu0 0.0
    %2951 = vmatpush2.msra.mxu0 0.0
    %2952 = vmatprep.subr.mxu0 0.0
    %2953 = vmatpush2.msra.mxu0 0.0
    %2954 = vmatprep.subr.mxu0 0.0
    %2955 = vmatpush2.msra.mxu0 0.0
    %2956 = vmatprep.subr.mxu0 0.0
    %2957 = vmatpush2.msra.mxu0 0.0
    %2958 = vmatprep.subr.mxu0 0.0
    %2959 = vmatpush2.msra.mxu0 0.0
    %2960 = vmatprep.subr.mxu0 0.0
    %2961 = vmatpush2.msra.mxu0 0.0
    %2962 = vmatprep.subr.mxu0 0.0
    %2963 = vmatpush2.msra.mxu0 0.0
    %2964 = vmatprep.subr.mxu0 0.0
    %2965 = vmatpush2.msra.mxu0 0.0
    %2966 = vmatprep.subr.mxu0 0.0
    %2967 = vmatpush2.msra.mxu0 0.0
    %2968 = vmatprep.subr.mxu0 0.0
    %2969 = vmatpush2.msra.mxu0 0.0
    %2970 = vmatprep.subr.mxu0 0.0
    %2971 = vmatpush2.msra.mxu0 0.0
    %2972 = vmatprep.subr.mxu0 0.0
    %2973 = vmatpush2.msra.mxu0 0.0
    %2974 = vmatprep.subr.mxu0 0.0
    %2975 = vmatpush2.msra.mxu0 0.0
    %2976 = vmatprep.subr.mxu0 0.0
    %2977 = vmatpush2.msra.mxu0 0.0
    %2978 = vmatprep.subr.mxu0 0.0
    %2979 = vmatpush2.msra.mxu0 0.0
    %2980 = vmatprep.mubr.f32.mxu0 0.0
    %2981 = vmatmul.mubr.f32.gmra.mxu0 %v2914
    %v2982 = vpop.f32.mrf.mxu0
    %v2983 = vadd.f32 0.0, %v2982
    %v2984 = vpop.f32.mrf.mxu0
    %2985 = vdwg.mxu0
    %v2986 = vadd.f32 %v2910, %v2983
    %v2987 = vrot.slane %v2114, 2
    %v2988 = vsel %vm784, %v2987, 0
    %2990 = vmatprep.subr.mxu0 0.0
    %2991 = vmatpush1.msra.mxu0 0.0
    %2992 = vmatprep.subr.mxu0 0.0
    %2993 = vmatpush1.msra.mxu0 0.0
    %2994 = vmatprep.subr.mxu0 0.0
    %2995 = vmatpush1.msra.mxu0 0.0
    %2996 = vmatprep.subr.mxu0 0.0
    %2997 = vmatpush1.msra.mxu0 0.0
    %2998 = vmatprep.subr.mxu0 0.0
    %2999 = vmatpush1.msra.mxu0 0.0
    %3000 = vmatprep.subr.mxu0 0.0
    %3001 = vmatpush1.msra.mxu0 0.0
    %3002 = vmatprep.subr.mxu0 0.0
    %3003 = vmatpush1.msra.mxu0 0.0
    %3004 = vmatprep.subr.mxu0 0.0
    %3005 = vmatpush1.msra.mxu0 0.0
    %3006 = vmatprep.subr.mxu0 0.0
    %3007 = vmatpush1.msra.mxu0 0.0
    %3008 = vmatprep.subr.mxu0 0.0
    %3009 = vmatpush1.msra.mxu0 %v2145
    %3010 = vmatprep.subr.mxu0 0.0
    %3011 = vmatpush1.msra.mxu0 %v2144
    %3012 = vmatprep.subr.mxu0 0.0
    %3013 = vmatpush1.msra.mxu0 %v2143
    %3014 = vmatprep.subr.mxu0 0.0
    %3015 = vmatpush1.msra.mxu0 %v2142
    %3016 = vmatprep.subr.mxu0 0.0
    %3017 = vmatpush1.msra.mxu0 %v2141
    %3018 = vmatprep.subr.mxu0 0.0
    %3019 = vmatpush1.msra.mxu0 %v2140
    %3020 = vmatprep.subr.mxu0 0.0
    %3021 = vmatpush1.msra.mxu0 %v2139
    %3022 = vmatprep.subr.mxu0 0.0
    %3023 = vmatpush2.msra.mxu0 0.0
    %3024 = vmatprep.subr.mxu0 0.0
    %3025 = vmatpush2.msra.mxu0 0.0
    %3026 = vmatprep.subr.mxu0 0.0
    %3027 = vmatpush2.msra.mxu0 0.0
    %3028 = vmatprep.subr.mxu0 0.0
    %3029 = vmatpush2.msra.mxu0 0.0
    %3030 = vmatprep.subr.mxu0 0.0
    %3031 = vmatpush2.msra.mxu0 0.0
    %3032 = vmatprep.subr.mxu0 0.0
    %3033 = vmatpush2.msra.mxu0 0.0
    %3034 = vmatprep.subr.mxu0 0.0
    %3035 = vmatpush2.msra.mxu0 0.0
    %3036 = vmatprep.subr.mxu0 0.0
    %3037 = vmatpush2.msra.mxu0 0.0
    %3038 = vmatprep.subr.mxu0 0.0
    %3039 = vmatpush2.msra.mxu0 0.0
    %3040 = vmatprep.subr.mxu0 0.0
    %3041 = vmatpush2.msra.mxu0 0.0
    %3042 = vmatprep.subr.mxu0 0.0
    %3043 = vmatpush2.msra.mxu0 0.0
    %3044 = vmatprep.subr.mxu0 0.0
    %3045 = vmatpush2.msra.mxu0 0.0
    %3046 = vmatprep.subr.mxu0 0.0
    %3047 = vmatpush2.msra.mxu0 0.0
    %3048 = vmatprep.subr.mxu0 0.0
    %3049 = vmatpush2.msra.mxu0 0.0
    %3050 = vmatprep.subr.mxu0 0.0
    %3051 = vmatpush2.msra.mxu0 0.0
    %3052 = vmatprep.subr.mxu0 0.0
    %3053 = vmatpush2.msra.mxu0 0.0
    %3054 = vmatprep.mubr.f32.mxu0 0.0
    %3055 = vmatmul.mubr.f32.gmra.mxu0 %v2988
    %v3056 = vpop.f32.mrf.mxu0
    %v3057 = vadd.f32 0.0, %v3056
    %v3058 = vpop.f32.mrf.mxu0
    %3059 = vdwg.mxu0
    %v3060 = vadd.f32 %v2986, %v3057
    %v3061 = vrot.slane %v2114, 3
    %v3062 = vsel %vm784, %v3061, 0
    %3064 = vmatprep.subr.mxu0 0.0
    %3065 = vmatpush1.msra.mxu0 0.0
    %3066 = vmatprep.subr.mxu0 0.0
    %3067 = vmatpush1.msra.mxu0 0.0
    %3068 = vmatprep.subr.mxu0 0.0
    %3069 = vmatpush1.msra.mxu0 0.0
    %3070 = vmatprep.subr.mxu0 0.0
    %3071 = vmatpush1.msra.mxu0 0.0
    %3072 = vmatprep.subr.mxu0 0.0
    %3073 = vmatpush1.msra.mxu0 0.0
    %3074 = vmatprep.subr.mxu0 0.0
    %3075 = vmatpush1.msra.mxu0 0.0
    %3076 = vmatprep.subr.mxu0 0.0
    %3077 = vmatpush1.msra.mxu0 0.0
    %3078 = vmatprep.subr.mxu0 0.0
    %3079 = vmatpush1.msra.mxu0 0.0
    %3080 = vmatprep.subr.mxu0 0.0
    %3081 = vmatpush1.msra.mxu0 0.0
    %3082 = vmatprep.subr.mxu0 0.0
    %3083 = vmatpush1.msra.mxu0 %v2153
    %3084 = vmatprep.subr.mxu0 0.0
    %3085 = vmatpush1.msra.mxu0 %v2152
    %3086 = vmatprep.subr.mxu0 0.0
    %3087 = vmatpush1.msra.mxu0 %v2151
    %3088 = vmatprep.subr.mxu0 0.0
    %3089 = vmatpush1.msra.mxu0 %v2150
    %3090 = vmatprep.subr.mxu0 0.0
    %3091 = vmatpush1.msra.mxu0 %v2149
    %3092 = vmatprep.subr.mxu0 0.0
    %3093 = vmatpush1.msra.mxu0 %v2148
    %3094 = vmatprep.subr.mxu0 0.0
    %3095 = vmatpush1.msra.mxu0 %v2147
    %3096 = vmatprep.subr.mxu0 0.0
    %3097 = vmatpush2.msra.mxu0 0.0
    %3098 = vmatprep.subr.mxu0 0.0
    %3099 = vmatpush2.msra.mxu0 0.0
    %3100 = vmatprep.subr.mxu0 0.0
    %3101 = vmatpush2.msra.mxu0 0.0
    %3102 = vmatprep.subr.mxu0 0.0
    %3103 = vmatpush2.msra.mxu0 0.0
    %3104 = vmatprep.subr.mxu0 0.0
    %3105 = vmatpush2.msra.mxu0 0.0
    %3106 = vmatprep.subr.mxu0 0.0
    %3107 = vmatpush2.msra.mxu0 0.0
    %3108 = vmatprep.subr.mxu0 0.0
    %3109 = vmatpush2.msra.mxu0 0.0
    %3110 = vmatprep.subr.mxu0 0.0
    %3111 = vmatpush2.msra.mxu0 0.0
    %3112 = vmatprep.subr.mxu0 0.0
    %3113 = vmatpush2.msra.mxu0 0.0
    %3114 = vmatprep.subr.mxu0 0.0
    %3115 = vmatpush2.msra.mxu0 0.0
    %3116 = vmatprep.subr.mxu0 0.0
    %3117 = vmatpush2.msra.mxu0 0.0
    %3118 = vmatprep.subr.mxu0 0.0
    %3119 = vmatpush2.msra.mxu0 0.0
    %3120 = vmatprep.subr.mxu0 0.0
    %3121 = vmatpush2.msra.mxu0 0.0
    %3122 = vmatprep.subr.mxu0 0.0
    %3123 = vmatpush2.msra.mxu0 0.0
    %3124 = vmatprep.subr.mxu0 0.0
    %3125 = vmatpush2.msra.mxu0 0.0
    %3126 = vmatprep.subr.mxu0 0.0
    %3127 = vmatpush2.msra.mxu0 0.0
    %3128 = vmatprep.mubr.f32.mxu0 0.0
    %3129 = vmatmul.mubr.f32.gmra.mxu0 %v3062
    %v3130 = vpop.f32.mrf.mxu0
    %v3131 = vadd.f32 0.0, %v3130
    %v3132 = vpop.f32.mrf.mxu0
    %3133 = vdwg.mxu0
    %v3134 = vadd.f32 %v3060, %v3131
    %v3135 = vrot.slane %v2114, 4
    %v3136 = vsel %vm784, %v3135, 0
    %3138 = vmatprep.subr.mxu0 0.0
    %3139 = vmatpush1.msra.mxu0 0.0
    %3140 = vmatprep.subr.mxu0 0.0
    %3141 = vmatpush1.msra.mxu0 0.0
    %3142 = vmatprep.subr.mxu0 0.0
    %3143 = vmatpush1.msra.mxu0 0.0
    %3144 = vmatprep.subr.mxu0 0.0
    %3145 = vmatpush1.msra.mxu0 0.0
    %3146 = vmatprep.subr.mxu0 0.0
    %3147 = vmatpush1.msra.mxu0 0.0
    %3148 = vmatprep.subr.mxu0 0.0
    %3149 = vmatpush1.msra.mxu0 0.0
    %3150 = vmatprep.subr.mxu0 0.0
    %3151 = vmatpush1.msra.mxu0 0.0
    %3152 = vmatprep.subr.mxu0 0.0
    %3153 = vmatpush1.msra.mxu0 0.0
    %3154 = vmatprep.subr.mxu0 0.0
    %3155 = vmatpush1.msra.mxu0 0.0
    %3156 = vmatprep.subr.mxu0 0.0
    %3157 = vmatpush1.msra.mxu0 %v2161
    %3158 = vmatprep.subr.mxu0 0.0
    %3159 = vmatpush1.msra.mxu0 %v2160
    %3160 = vmatprep.subr.mxu0 0.0
    %3161 = vmatpush1.msra.mxu0 %v2159
    %3162 = vmatprep.subr.mxu0 0.0
    %3163 = vmatpush1.msra.mxu0 %v2158
    %3164 = vmatprep.subr.mxu0 0.0
    %3165 = vmatpush1.msra.mxu0 %v2157
    %3166 = vmatprep.subr.mxu0 0.0
    %3167 = vmatpush1.msra.mxu0 %v2156
    %3168 = vmatprep.subr.mxu0 0.0
    %3169 = vmatpush1.msra.mxu0 %v2155
    %3170 = vmatprep.subr.mxu0 0.0
    %3171 = vmatpush2.msra.mxu0 0.0
    %3172 = vmatprep.subr.mxu0 0.0
    %3173 = vmatpush2.msra.mxu0 0.0
    %3174 = vmatprep.subr.mxu0 0.0
    %3175 = vmatpush2.msra.mxu0 0.0
    %3176 = vmatprep.subr.mxu0 0.0
    %3177 = vmatpush2.msra.mxu0 0.0
    %3178 = vmatprep.subr.mxu0 0.0
    %3179 = vmatpush2.msra.mxu0 0.0
    %3180 = vmatprep.subr.mxu0 0.0
    %3181 = vmatpush2.msra.mxu0 0.0
    %3182 = vmatprep.subr.mxu0 0.0
    %3183 = vmatpush2.msra.mxu0 0.0
    %3184 = vmatprep.subr.mxu0 0.0
    %3185 = vmatpush2.msra.mxu0 0.0
    %3186 = vmatprep.subr.mxu0 0.0
    %3187 = vmatpush2.msra.mxu0 0.0
    %3188 = vmatprep.subr.mxu0 0.0
    %3189 = vmatpush2.msra.mxu0 0.0
    %3190 = vmatprep.subr.mxu0 0.0
    %3191 = vmatpush2.msra.mxu0 0.0
    %3192 = vmatprep.subr.mxu0 0.0
    %3193 = vmatpush2.msra.mxu0 0.0
    %3194 = vmatprep.subr.mxu0 0.0
    %3195 = vmatpush2.msra.mxu0 0.0
    %3196 = vmatprep.subr.mxu0 0.0
    %3197 = vmatpush2.msra.mxu0 0.0
    %3198 = vmatprep.subr.mxu0 0.0
    %3199 = vmatpush2.msra.mxu0 0.0
    %3200 = vmatprep.subr.mxu0 0.0
    %3201 = vmatpush2.msra.mxu0 0.0
    %3202 = vmatprep.mubr.f32.mxu0 0.0
    %3203 = vmatmul.mubr.f32.gmra.mxu0 %v3136
    %v3204 = vpop.f32.mrf.mxu0
    %v3205 = vadd.f32 0.0, %v3204
    %v3206 = vpop.f32.mrf.mxu0
    %3207 = vdwg.mxu0
    %v3208 = vadd.f32 %v3134, %v3205
    %v3209 = vrot.slane %v2114, 5
    %v3210 = vsel %vm784, %v3209, 0
    %3212 = vmatprep.subr.mxu0 0.0
    %3213 = vmatpush1.msra.mxu0 0.0
    %3214 = vmatprep.subr.mxu0 0.0
    %3215 = vmatpush1.msra.mxu0 0.0
    %3216 = vmatprep.subr.mxu0 0.0
    %3217 = vmatpush1.msra.mxu0 0.0
    %3218 = vmatprep.subr.mxu0 0.0
    %3219 = vmatpush1.msra.mxu0 0.0
    %3220 = vmatprep.subr.mxu0 0.0
    %3221 = vmatpush1.msra.mxu0 0.0
    %3222 = vmatprep.subr.mxu0 0.0
    %3223 = vmatpush1.msra.mxu0 0.0
    %3224 = vmatprep.subr.mxu0 0.0
    %3225 = vmatpush1.msra.mxu0 0.0
    %3226 = vmatprep.subr.mxu0 0.0
    %3227 = vmatpush1.msra.mxu0 0.0
    %3228 = vmatprep.subr.mxu0 0.0
    %3229 = vmatpush1.msra.mxu0 0.0
    %3230 = vmatprep.subr.mxu0 0.0
    %3231 = vmatpush1.msra.mxu0 %v2169
    %3232 = vmatprep.subr.mxu0 0.0
    %3233 = vmatpush1.msra.mxu0 %v2168
    %3234 = vmatprep.subr.mxu0 0.0
    %3235 = vmatpush1.msra.mxu0 %v2167
    %3236 = vmatprep.subr.mxu0 0.0
    %3237 = vmatpush1.msra.mxu0 %v2166
    %3238 = vmatprep.subr.mxu0 0.0
    %3239 = vmatpush1.msra.mxu0 %v2165
    %3240 = vmatprep.subr.mxu0 0.0
    %3241 = vmatpush1.msra.mxu0 %v2164
    %3242 = vmatprep.subr.mxu0 0.0
    %3243 = vmatpush1.msra.mxu0 %v2163
    %3244 = vmatprep.subr.mxu0 0.0
    %3245 = vmatpush2.msra.mxu0 0.0
    %3246 = vmatprep.subr.mxu0 0.0
    %3247 = vmatpush2.msra.mxu0 0.0
    %3248 = vmatprep.subr.mxu0 0.0
    %3249 = vmatpush2.msra.mxu0 0.0
    %3250 = vmatprep.subr.mxu0 0.0
    %3251 = vmatpush2.msra.mxu0 0.0
    %3252 = vmatprep.subr.mxu0 0.0
    %3253 = vmatpush2.msra.mxu0 0.0
    %3254 = vmatprep.subr.mxu0 0.0
    %3255 = vmatpush2.msra.mxu0 0.0
    %3256 = vmatprep.subr.mxu0 0.0
    %3257 = vmatpush2.msra.mxu0 0.0
    %3258 = vmatprep.subr.mxu0 0.0
    %3259 = vmatpush2.msra.mxu0 0.0
    %3260 = vmatprep.subr.mxu0 0.0
    %3261 = vmatpush2.msra.mxu0 0.0
    %3262 = vmatprep.subr.mxu0 0.0
    %3263 = vmatpush2.msra.mxu0 0.0
    %3264 = vmatprep.subr.mxu0 0.0
    %3265 = vmatpush2.msra.mxu0 0.0
    %3266 = vmatprep.subr.mxu0 0.0
    %3267 = vmatpush2.msra.mxu0 0.0
    %3268 = vmatprep.subr.mxu0 0.0
    %3269 = vmatpush2.msra.mxu0 0.0
    %3270 = vmatprep.subr.mxu0 0.0
    %3271 = vmatpush2.msra.mxu0 0.0
    %3272 = vmatprep.subr.mxu0 0.0
    %3273 = vmatpush2.msra.mxu0 0.0
    %3274 = vmatprep.subr.mxu0 0.0
    %3275 = vmatpush2.msra.mxu0 0.0
    %3276 = vmatprep.mubr.f32.mxu0 0.0
    %3277 = vmatmul.mubr.f32.gmra.mxu0 %v3210
    %v3278 = vpop.f32.mrf.mxu0
    %v3279 = vadd.f32 0.0, %v3278
    %v3280 = vpop.f32.mrf.mxu0
    %3281 = vdwg.mxu0
    %v3282 = vadd.f32 %v3208, %v3279
    %v3283 = vmax.f32 %v3282, 0.0
    %v3285 = vsel %vm2691, %v3283, 0
    %3287 = vmatprep.subr.mxu0 0.0
    %3288 = vmatpush1.msra.mxu0 0.0
    %3289 = vmatprep.subr.mxu0 0.0
    %3290 = vmatpush1.msra.mxu0 0.0
    %3291 = vmatprep.subr.mxu0 0.0
    %3292 = vmatpush1.msra.mxu0 0.0
    %3293 = vmatprep.subr.mxu0 0.0
    %3294 = vmatpush1.msra.mxu0 0.0
    %3295 = vmatprep.subr.mxu0 0.0
    %3296 = vmatpush1.msra.mxu0 0.0
    %3297 = vmatprep.subr.mxu0 0.0
    %3298 = vmatpush1.msra.mxu0 0.0
    %3299 = vmatprep.subr.mxu0 0.0
    %3300 = vmatpush1.msra.mxu0 0.0
    %3301 = vmatprep.subr.mxu0 0.0
    %3302 = vmatpush1.msra.mxu0 0.0
    %3303 = vmatprep.subr.mxu0 0.0
    %3304 = vmatpush1.msra.mxu0 0.0
    %3305 = vmatprep.subr.mxu0 0.0
    %3306 = vmatpush1.msra.mxu0 0.0
    %3307 = vmatprep.subr.mxu0 0.0
    %3308 = vmatpush1.msra.mxu0 0.0
    %3309 = vmatprep.subr.mxu0 0.0
    %3310 = vmatpush1.msra.mxu0 0.0
    %3311 = vmatprep.subr.mxu0 0.0
    %3312 = vmatpush1.msra.mxu0 %v2173
    %3313 = vmatprep.subr.mxu0 0.0
    %3314 = vmatpush1.msra.mxu0 %v2172
    %3315 = vmatprep.subr.mxu0 0.0
    %3316 = vmatpush1.msra.mxu0 %v2171
    %3317 = vmatprep.subr.mxu0 0.0
    %3318 = vmatpush1.msra.mxu0 %v2170
    %3319 = vmatprep.subr.mxu0 0.0
    %3320 = vmatpush2.msra.mxu0 0.0
    %3321 = vmatprep.subr.mxu0 0.0
    %3322 = vmatpush2.msra.mxu0 0.0
    %3323 = vmatprep.subr.mxu0 0.0
    %3324 = vmatpush2.msra.mxu0 0.0
    %3325 = vmatprep.subr.mxu0 0.0
    %3326 = vmatpush2.msra.mxu0 0.0
    %3327 = vmatprep.subr.mxu0 0.0
    %3328 = vmatpush2.msra.mxu0 0.0
    %3329 = vmatprep.subr.mxu0 0.0
    %3330 = vmatpush2.msra.mxu0 0.0
    %3331 = vmatprep.subr.mxu0 0.0
    %3332 = vmatpush2.msra.mxu0 0.0
    %3333 = vmatprep.subr.mxu0 0.0
    %3334 = vmatpush2.msra.mxu0 0.0
    %3335 = vmatprep.subr.mxu0 0.0
    %3336 = vmatpush2.msra.mxu0 0.0
    %3337 = vmatprep.subr.mxu0 0.0
    %3338 = vmatpush2.msra.mxu0 0.0
    %3339 = vmatprep.subr.mxu0 0.0
    %3340 = vmatpush2.msra.mxu0 0.0
    %3341 = vmatprep.subr.mxu0 0.0
    %3342 = vmatpush2.msra.mxu0 0.0
    %3343 = vmatprep.subr.mxu0 0.0
    %3344 = vmatpush2.msra.mxu0 0.0
    %3345 = vmatprep.subr.mxu0 0.0
    %3346 = vmatpush2.msra.mxu0 0.0
    %3347 = vmatprep.subr.mxu0 0.0
    %3348 = vmatpush2.msra.mxu0 0.0
    %3349 = vmatprep.subr.mxu0 0.0
    %3350 = vmatpush2.msra.mxu0 0.0
    %3351 = vmatprep.mubr.f32.mxu0 0.0
    %3352 = vmatmul.mubr.f32.gmra.mxu0 %v3285
    %v3353 = vpop.f32.mrf.mxu0
    %v3354 = vadd.f32 0.0, %v3353
    %v3355 = vpop.f32.mrf.mxu0
    %3356 = vdwg.mxu0
    %3357 = vst.msk [vmem:[#allocation3 + $0x1] sm:$0x1] %vm2765, %v3354
    // Predicated region
    $region54: #{cnn_forward.1} parent=1 // pred_check
      _
    $region55: #{cnn_forward.1} parent=1 // pred_check_branch
      %3359 = sbr.rel (0) target = $region57
    $region56: #{cnn_forward.1} parent=1 // pred_region
      %s3361 = ssub.s32 32, 32
      %3362 = vsyncadd [#allocation4], %s3361
      %s3364 = sshll.u32 [#allocation3], 4
      %s3365 = int_to_ptr.vmem [resolvable:$true] %s3364
      %3367 = dma.vmem_to_hbm [thread:$0]  %s3365, 32, %s13, [#allocation4]
    $region57: #{cnn_forward.1} parent=1 // pred_fallthru
      _
    // Predicated region
    $region58: #{cnn_forward.1} parent=1 // pred_check
      _
    $region59: #{cnn_forward.1} parent=1 // pred_check_branch
      %3369 = sbr.rel (0) target = $region61
    $region60: #{cnn_forward.1} parent=1 // pred_region
      %3370 = dma.done [#allocation4], 32
    $region61: #{cnn_forward.1} parent=1 // pred_fallthru
      _
    %3371 = vsyncpa [#allocation4], 1

</llo_original>
